<compile_context>
chip_gen: v5e
topology: v5e:2x2
jax: 0.10.0
libtpu: 0.0.40
codegen_flags: <defaults>
</compile_context>

<pallas_src>
import jax
import jax.numpy as jnp
from jax.experimental import pallas as pl
from jax.experimental.pallas import tpu as pltpu


# ----------------------------------------------------------------------------
# Fused forward kernel: one batch block (Bt batch elements) per grid step.
# In-kernel activation layout: node-major, batch stacked on lanes:
#     X[n, b*f + j]  ==  x[batch b, node n, feature j]
# ----------------------------------------------------------------------------
def _make_fused_kernel(n_layers, bt, nfg, nfl, n_coarse, gr, lr, compute_dtype):
    fg_last = nfg[-1]

    def mm(a, b):
        # MXU matmul with f32 accumulation.  Static operands are pre-cast in the
        # wrapper, so the astype is a no-op for them (and for f32 activations).
        return jnp.dot(a.astype(compute_dtype), b.astype(compute_dtype),
                       preferred_element_type=jnp.float32)

    def leaky(v):                       # F.leaky_relu default slope (f32, VPU)
        return jnp.where(v > 0, v, 0.01 * v)

    def feat_transform(x, w, f_in):
        # Per-batch X @ W on the lane-stacked layout:
        #   x: (n, bt*f_in), w: (f_in, f_out)  ->  (n, bt*f_out)
        pieces = [mm(x[:, b * f_in:(b + 1) * f_in], w) for b in range(bt)]
        return pieces[0] if bt == 1 else jnp.concatenate(pieces, axis=-1)

    def kernel(*refs):
        xg_seed_ref, xl0_ref, a0_ref = refs[:3]
        idx = 3
        m_refs = refs[idx:idx + n_layers]; idx += n_layers   # A_norm[-2-i] @ U[-1-i]
        wg_refs = refs[idx:idx + n_layers]; idx += n_layers
        bg_refs = refs[idx:idx + n_layers]; idx += n_layers  # (1, bt*f_out), f32
        wl_refs = refs[idx:idx + n_layers]; idx += n_layers
        bl_refs = refs[idx:idx + n_layers]; idx += n_layers
        o_ref = refs[idx]

        # ----------------------------- global branch ------------------------
        # Repeat the (1, bt*fg_last) seed over the coarsest-level nodes.
        xg = jnp.broadcast_to(xg_seed_ref[0], (n_coarse, bt * fg_last))
        for i in range(n_layers):                              # static unroll
            h = feat_transform(xg, wg_refs[i][...], nfg[-1 - i])   # X @ W per batch
            xg = mm(m_refs[i][...], h) + bg_refs[i][...]           # (A@U) @ h + b
            if i < n_layers - 1:
                xg = leaky(xg)
        # TODO(synk): training-mode BatchNorm1d not implemented; the config uses
        # batch_norm=False so the torch reference skips it as well.

        # ----------------------------- local branch -------------------------
        xl = xl0_ref[0]                                        # (n0, bt*fl_last)
        for i in range(n_layers):
            h = feat_transform(xl, wl_refs[i][...], nfl[-1 - i])
            xl = mm(a0_ref[...], h) + bl_refs[i][...]              # A0 @ h + b
            if i < n_layers - 1:
                xl = leaky(xl)

        # ----------------------------- merge (fused epilogue) ----------------
        o_ref[0] = (gr * xg + lr * xl).astype(o_ref.dtype)

    return kernel


def _const_spec(a):
    """Full-array block with a constant index map: DMA'd once, stays VMEM-resident
    across the (sequential) grid steps."""
    nd = a.ndim
    return pl.BlockSpec(a.shape, lambda k, _nd=nd: (0,) * _nd)


# ----------------------------------------------------------------------------
# Graph helper (glue, plain JAX): row-normalised D^{-1}(A+I) of a ring graph.
# ----------------------------------------------------------------------------
def ring_adj_norm(n_nodes):
    idx = jnp.arange(n_nodes)
    a = jnp.zeros((n_nodes, n_nodes), jnp.float32)
    a = a.at[idx, (idx + 1) % n_nodes].set(1.0)
    a = a.at[idx, (idx - 1) % n_nodes].set(1.0)
    a = a + jnp.eye(n_nodes, dtype=jnp.float32)        # add_self_loops=True
    return a / a.sum(axis=1, keepdims=True)            # aggr='mean'


# ----------------------------------------------------------------------------
# FMGenDecoder (JAX/Pallas)
# ----------------------------------------------------------------------------
class FMGenDecoderPallas:
    """A_norm[k]: dense (n_k, n_k) row-normalised D^{-1}(A+I) per mesh level (finest
    first), applied identically to every batch element (== the reference's batch
    block-diagonal edge_index).  U[k]: (n_k, n_{k+1}) upsampling matrix."""

    def __init__(self, config, A_norm, U, key, compute_dtype=jnp.float32):
        self.batch_norm = config["batch_norm"]
        self.n_layers = config["n_layers"]
        self.z_length = config["z_length"]
        self.nfg = list(config["num_features_global"])
        self.nfl = list(config["num_features_local"])
        assert self.nfg[0] == self.nfl[0], (
            "merge requires num_features_global[0] == num_features_local[0]")
        self.global_ratio = 0.01
        self.local_ratio = 1.0 - self.global_ratio
        # compute_dtype=jnp.bfloat16 -> bf16 MXU path (v6e/v7x peak, half the weight
        # DMA/VMEM); f32 accumulation + f32 elementwise either way.  f32 == torch.
        self.compute_dtype = compute_dtype

        self.A_list = [jnp.asarray(a, jnp.float32) for a in A_norm]
        self.U_list = [jnp.asarray(u, jnp.float32) for u in U]
        nl = self.n_layers
        zl = self.z_length
        self.n0 = n0 = self.U_list[0].shape[0]
        self.n_coarse = self.U_list[-1].shape[1]
        fg_last, fl_last = self.nfg[-1], self.nfl[-1]

        keys = jax.random.split(key, 4 + 4 * nl)
        # torch.nn.init.normal_(weight, 0, 0.1); weights stored (in, out).
        self.Wlin = 0.1 * jax.random.normal(keys[0], (zl, zl + fg_last), jnp.float32)
        self.blin = 0.01 * jax.random.normal(keys[1], (zl + fg_last,), jnp.float32)
        self.Wloc = 0.1 * jax.random.normal(keys[2], (zl, fl_last * n0), jnp.float32)
        self.bloc = 0.01 * jax.random.normal(keys[3], (fl_last * n0,), jnp.float32)

        # FeaStConv (heads=1) weights per decoder layer, stored (in, out).
        self.Wg, self.bg, self.Wl, self.bl = [], [], [], []
        for k in range(nl):
            fin_g, fout_g = self.nfg[-1 - k], self.nfg[-2 - k]
            fin_l, fout_l = self.nfl[-1 - k], self.nfl[-2 - k]
            kg_w, kg_b, kl_w, kl_b = keys[4 + 4 * k: 8 + 4 * k]
            self.Wg.append(jax.random.normal(kg_w, (fin_g, fout_g), jnp.float32)
                           / jnp.sqrt(fin_g))
            self.bg.append((0.01 * jax.random.normal(kg_b, (fout_g,), jnp.float32))
                           .reshape(1, fout_g))
            self.Wl.append(jax.random.normal(kl_w, (fin_l, fout_l), jnp.float32)
                           / jnp.sqrt(fin_l))
            self.bl.append((0.01 * jax.random.normal(kl_b, (fout_l,), jnp.float32))
                           .reshape(1, fout_l))

        # Pre-compose upsample + mean aggregation (exact, associativity):
        #   A[-2-i] @ ((U[-1-i] @ X) @ W) == (A[-2-i] @ U[-1-i]) @ (X @ W)
        self.M = [self.A_list[-2 - i] @ self.U_list[-1 - i] for i in range(nl)]

        # Pre-cast static MXU operands ONCE (no per-step casts; bf16 halves the DMA
        # and VMEM of the dense adjacencies when selected).
        cd = compute_dtype
        self.M_c = [m.astype(cd) for m in self.M]
        self.A0_c = self.A_list[0].astype(cd)          # passed exactly once (dedup)
        self.Wg_c = [w.astype(cd) for w in self.Wg]
        self.Wl_c = [w.astype(cd) for w in self.Wl]

    def forward(self, z, batch_size, batch_block=2):
        B = batch_size
        nl, zl, n0 = self.n_layers, self.z_length, self.n0
        fg_last, fl_last, f0 = self.nfg[-1], self.nfl[-1], self.nfg[0]

        # Batch block size: largest divisor of B that is <= batch_block.
        bt = max(d for d in range(1, min(B, batch_block) + 1) if B % d == 0)
        nblk = B // bt

        # ---- tiny z-GEMMs + layout prep in the wrapper (plain XLA, HBM) ----------
        z = z.astype(jnp.float32).reshape(B, zl)
        x = z @ self.Wlin + self.blin                          # decoder_lin
        x_g = x[:, :fg_last]                                   # (B, fg_last)
        x_l = x[:, fg_last:]                                   # (B, zl)
        # decoder_local_lin as a plain GEMM + HBM reshape (no in-kernel block-diag).
        xl0 = (x_l @ self.Wloc + self.bloc).reshape(B, n0, fl_last)

        # Lane-stack the batch (batch-major within the lane dim) per batch block.
        xg_seed = x_g.reshape(nblk, 1, bt * fg_last)
        xl0_blk = (xl0.reshape(nblk, bt, n0, fl_last)
                   .transpose(0, 2, 1, 3).reshape(nblk, n0, bt * fl_last))

        # Lane-tiled biases (f32).
        bg_lane = [jnp.tile(b, (1, bt)) for b in self.bg]
        bl_lane = [jnp.tile(b, (1, bt)) for b in self.bl]

        operands = ([xg_seed, xl0_blk, self.A0_c] + self.M_c
                    + self.Wg_c + bg_lane + self.Wl_c + bl_lane)

        in_specs = [
            pl.BlockSpec((1, 1, bt * fg_last), lambda k: (k, 0, 0)),
            pl.BlockSpec((1, n0, bt * fl_last), lambda k: (k, 0, 0)),
        ] + [_const_spec(a) for a in operands[2:]]
        # NOTE: for very large meshes, additionally single-buffer the constant
        # operands (pipeline_mode=pl.Buffered(1)) to halve their VMEM footprint.

        kernel = _make_fused_kernel(
            n_layers=nl, bt=bt, nfg=self.nfg, nfl=self.nfl,
            n_coarse=self.n_coarse, gr=self.global_ratio, lr=self.local_ratio,
            compute_dtype=self.compute_dtype)

        out = pl.pallas_call(
            kernel,
            out_shape=jax.ShapeDtypeStruct((nblk, n0, bt * f0), jnp.float32),
            grid=(nblk,),
            in_specs=in_specs,
            out_specs=pl.BlockSpec((1, n0, bt * f0), lambda k: (k, 0, 0)),
            compiler_params=pltpu.CompilerParams(
                dimension_semantics=("parallel",),        # 2 slabs -> 2 TCs on v7x
                vmem_limit_bytes=56 * 1024 * 1024),
        )(*operands)

        # Un-stack the lane-packed batch back to (B*n0, f0).
        out = (out.reshape(nblk, n0, bt, f0).transpose(0, 2, 1, 3)
               .reshape(B * n0, f0))
        return out


# ----------------------------------------------------------------------------
# Pure-JAX reference (mirrors the torch forward) — used only for verification.
# ----------------------------------------------------------------------------
def _reference_forward(dec, z, batch_size):
    B = batch_size
    fg_last = dec.nfg[-1]
    x = z.astype(jnp.float32) @ dec.Wlin + dec.blin
    x_g, x_l = x[:, :fg_last], x[:, fg_last:]
    # global
    xg = jnp.repeat(x_g[:, None, :], dec.n_coarse, axis=1)
    for i in range(dec.n_layers):
        xg = jnp.einsum("mn,bnf->bmf", dec.U_list[-1 - i], xg)
        xg = jnp.einsum("mn,bnf->bmf", dec.A_list[-2 - i], xg @ dec.Wg[i]) + dec.bg[i]
        if i < dec.n_layers - 1:
            xg = jnp.where(xg > 0, xg, 0.01 * xg)
    # local
    xl = (x_l @ dec.Wloc + dec.bloc).reshape(B, dec.n0, dec.nfl[-1])
    for i in range(dec.n_layers):
        xl = jnp.einsum("mn,bnf->bmf", dec.A_list[0], xl @ dec.Wl[i]) + dec.bl[i]
        if i < dec.n_layers - 1:
            xl = jnp.where(xl > 0, xl, 0.01 * xl)
    out = dec.global_ratio * xg + dec.local_ratio * xl
    return out.reshape(B * dec.n0, dec.nfg[0])


# ----------------------------------------------------------------------------
if __name__ == "__main__":
    # Full-precision XLA matmuls so the pure-JAX reference check is tight.
    jax.config.update("jax_default_matmul_precision", "highest")

    key = jax.random.PRNGKey(0)
    k_model, k_u0, k_u1, k_z = jax.random.split(key, 4)

    config = dict(
        batch_norm=False,
        n_layers=2,
        z_length=32,
        num_features_global=[16, 32, 64],
        num_features_local=[16, 32, 64],
    )
    batch_size = 4
    n_nodes = [16, 8, 4]   # node counts per mesh level (fine -> coarse)

    # Upsampling matrices U[k]: (n_nodes[k], n_nodes[k+1])
    U = [
        0.3 * jax.random.normal(k_u0, (n_nodes[0], n_nodes[1]), jnp.float32),
        0.3 * jax.random.normal(k_u1, (n_nodes[1], n_nodes[2]), jnp.float32),
    ]
    # Dense per-level normalised adjacencies (applied per batch element).
    A_norm = [ring_adj_norm(n) for n in n_nodes]

    decoder = FMGenDecoderPallas(config, A_norm, U, k_model)

    z = jax.random.normal(k_z, (batch_size, config["z_length"]), jnp.float32)
    out = decoder.forward(z, batch_size, batch_block=2)
    out = jax.block_until_ready(out)

    expected = (batch_size * n_nodes[0], config["num_features_global"][0])
    assert out.shape == expected, (out.shape, expected)
    assert bool(jnp.all(jnp.isfinite(out)))

    ref = _reference_forward(decoder, z, batch_size)
    max_err = float(jnp.max(jnp.abs(out - ref)))
    assert max_err < 1e-3, f"mismatch vs pure-JAX reference: {max_err}"

    print("KERNEL_OK")
</pallas_src>

<mosaic_0001>
module attributes {stable_mosaic.version = 11 : i64} {
  func.func @kernel(%arg0: i32, %arg1: memref<1x1x128xf32, #tpu.memory_space<vmem>>, %arg2: memref<1x16x128xf32, #tpu.memory_space<vmem>>, %arg3: memref<16x16xf32, #tpu.memory_space<vmem>>, %arg4: memref<8x4xf32, #tpu.memory_space<vmem>>, %arg5: memref<16x8xf32, #tpu.memory_space<vmem>>, %arg6: memref<64x32xf32, #tpu.memory_space<vmem>>, %arg7: memref<32x16xf32, #tpu.memory_space<vmem>>, %arg8: memref<1x64xf32, #tpu.memory_space<vmem>>, %arg9: memref<1x32xf32, #tpu.memory_space<vmem>>, %arg10: memref<64x32xf32, #tpu.memory_space<vmem>>, %arg11: memref<32x16xf32, #tpu.memory_space<vmem>>, %arg12: memref<1x64xf32, #tpu.memory_space<vmem>>, %arg13: memref<1x32xf32, #tpu.memory_space<vmem>>, %arg14: memref<1x16x32xf32, #tpu.memory_space<vmem>>) attributes {dimension_semantics = [#tpu.dimension_semantics<parallel>], iteration_bounds = array<i64: 2>, scalar_prefetch = 0 : i64, scratch_operands = 0 : i64, tpu.core_type = #tpu.core_type<tc>, window_params = [{transform_indices = @transform_0, window_bounds = array<i64: 1, 1, 128>}, {transform_indices = @transform_1, window_bounds = array<i64: 1, 16, 128>}, {pipeline_mode = #tpu.pipeline_mode<synchronous>, transform_indices = @transform_2, window_bounds = array<i64: 16, 16>}, {pipeline_mode = #tpu.pipeline_mode<synchronous>, transform_indices = @transform_3, window_bounds = array<i64: 8, 4>}, {pipeline_mode = #tpu.pipeline_mode<synchronous>, transform_indices = @transform_4, window_bounds = array<i64: 16, 8>}, {pipeline_mode = #tpu.pipeline_mode<synchronous>, transform_indices = @transform_5, window_bounds = array<i64: 64, 32>}, {pipeline_mode = #tpu.pipeline_mode<synchronous>, transform_indices = @transform_6, window_bounds = array<i64: 32, 16>}, {pipeline_mode = #tpu.pipeline_mode<synchronous>, transform_indices = @transform_7, window_bounds = array<i64: 1, 64>}, {pipeline_mode = #tpu.pipeline_mode<synchronous>, transform_indices = @transform_8, window_bounds = array<i64: 1, 32>}, {pipeline_mode = #tpu.pipeline_mode<synchronous>, transform_indices = @transform_9, window_bounds = array<i64: 64, 32>}, {pipeline_mode = #tpu.pipeline_mode<synchronous>, transform_indices = @transform_10, window_bounds = array<i64: 32, 16>}, {pipeline_mode = #tpu.pipeline_mode<synchronous>, transform_indices = @transform_11, window_bounds = array<i64: 1, 64>}, {pipeline_mode = #tpu.pipeline_mode<synchronous>, transform_indices = @transform_12, window_bounds = array<i64: 1, 32>}, {transform_indices = @transform_13, window_bounds = array<i64: 1, 16, 32>}]} {
    %c0 = arith.constant 0 : index
    %c0_0 = arith.constant 0 : index
    %c0_1 = arith.constant 0 : index
    %0 = vector.load %arg1[%c0, %c0_0, %c0_1] : memref<1x1x128xf32, #tpu.memory_space<vmem>>, vector<1x1x128xf32>
    %1 = vector.shape_cast %0 : vector<1x1x128xf32> to vector<1x128xf32>
    %2 = vector.shape_cast %1 : vector<1x128xf32> to vector<1x128xf32>
    %3 = vector.broadcast %2 : vector<1x128xf32> to vector<4x128xf32>
    %c0_2 = arith.constant 0 : index
    %c0_3 = arith.constant 0 : index
    %4 = vector.load %arg6[%c0_2, %c0_3] : memref<64x32xf32, #tpu.memory_space<vmem>>, vector<64x32xf32>
    %5 = vector.extract_strided_slice %3 {offsets = [0, 0], sizes = [4, 64], strides = [1, 1]} : vector<4x128xf32> to vector<4x64xf32>
    %cst = arith.constant dense<0.000000e+00> : vector<4x32xf32>
    %6 = tpu.matmul %5, %4, %cst {dimension_numbers = #tpu.dot_dimension_numbers<[1], [0], [0], [1], [0, 0, 1, 1], [], []>, precision = #tpu.contract_precision<fp32>} : vector<4x64xf32>, vector<64x32xf32>, vector<4x32xf32> -> vector<4x32xf32>
    %7 = vector.extract_strided_slice %3 {offsets = [0, 64], sizes = [4, 64], strides = [1, 1]} : vector<4x128xf32> to vector<4x64xf32>
    %cst_4 = arith.constant dense<0.000000e+00> : vector<4x32xf32>
    %8 = tpu.matmul %7, %4, %cst_4 {dimension_numbers = #tpu.dot_dimension_numbers<[1], [0], [0], [1], [0, 0, 1, 1], [], []>, precision = #tpu.contract_precision<fp32>} : vector<4x64xf32>, vector<64x32xf32>, vector<4x32xf32> -> vector<4x32xf32>
    %9 = tpu.concatenate %6, %8 in 1 : vector<4x32xf32>, vector<4x32xf32> -> vector<4x64xf32>
    %c0_5 = arith.constant 0 : index
    %c0_6 = arith.constant 0 : index
    %10 = vector.load %arg4[%c0_5, %c0_6] : memref<8x4xf32, #tpu.memory_space<vmem>>, vector<8x4xf32>
    %cst_7 = arith.constant dense<0.000000e+00> : vector<8x64xf32>
    %11 = tpu.matmul %10, %9, %cst_7 {dimension_numbers = #tpu.dot_dimension_numbers<[1], [0], [0], [1], [0, 0, 1, 1], [], []>, precision = #tpu.contract_precision<fp32>} : vector<8x4xf32>, vector<4x64xf32>, vector<8x64xf32> -> vector<8x64xf32>
    %c0_8 = arith.constant 0 : index
    %c0_9 = arith.constant 0 : index
    %12 = vector.load %arg8[%c0_8, %c0_9] : memref<1x64xf32, #tpu.memory_space<vmem>>, vector<1x64xf32>
    %13 = vector.broadcast %12 : vector<1x64xf32> to vector<8x64xf32>
    %14 = arith.addf %11, %13 : vector<8x64xf32>
    %cst_10 = arith.constant 0.000000e+00 : f32
    %15 = vector.broadcast %cst_10 : f32 to vector<8x64xf32>
    %16 = arith.cmpf ogt, %14, %15 : vector<8x64xf32>
    %cst_11 = arith.constant 0.00999999977 : f32
    %17 = vector.broadcast %cst_11 : f32 to vector<8x64xf32>
    %18 = arith.mulf %17, %14 : vector<8x64xf32>
    %19 = arith.select %16, %14, %18 : vector<8x64xi1>, vector<8x64xf32>
    %c0_12 = arith.constant 0 : index
    %c0_13 = arith.constant 0 : index
    %20 = vector.load %arg7[%c0_12, %c0_13] : memref<32x16xf32, #tpu.memory_space<vmem>>, vector<32x16xf32>
    %21 = vector.extract_strided_slice %19 {offsets = [0, 0], sizes = [8, 32], strides = [1, 1]} : vector<8x64xf32> to vector<8x32xf32>
    %cst_14 = arith.constant dense<0.000000e+00> : vector<8x16xf32>
    %22 = tpu.matmul %21, %20, %cst_14 {dimension_numbers = #tpu.dot_dimension_numbers<[1], [0], [0], [1], [0, 0, 1, 1], [], []>, precision = #tpu.contract_precision<fp32>} : vector<8x32xf32>, vector<32x16xf32>, vector<8x16xf32> -> vector<8x16xf32>
    %23 = vector.extract_strided_slice %19 {offsets = [0, 32], sizes = [8, 32], strides = [1, 1]} : vector<8x64xf32> to vector<8x32xf32>
    %cst_15 = arith.constant dense<0.000000e+00> : vector<8x16xf32>
    %24 = tpu.matmul %23, %20, %cst_15 {dimension_numbers = #tpu.dot_dimension_numbers<[1], [0], [0], [1], [0, 0, 1, 1], [], []>, precision = #tpu.contract_precision<fp32>} : vector<8x32xf32>, vector<32x16xf32>, vector<8x16xf32> -> vector<8x16xf32>
    %25 = tpu.concatenate %22, %24 in 1 : vector<8x16xf32>, vector<8x16xf32> -> vector<8x32xf32>
    %c0_16 = arith.constant 0 : index
    %c0_17 = arith.constant 0 : index
    %26 = vector.load %arg5[%c0_16, %c0_17] : memref<16x8xf32, #tpu.memory_space<vmem>>, vector<16x8xf32>
    %cst_18 = arith.constant dense<0.000000e+00> : vector<16x32xf32>
    %27 = tpu.matmul %26, %25, %cst_18 {dimension_numbers = #tpu.dot_dimension_numbers<[1], [0], [0], [1], [0, 0, 1, 1], [], []>, precision = #tpu.contract_precision<fp32>} : vector<16x8xf32>, vector<8x32xf32>, vector<16x32xf32> -> vector<16x32xf32>
    %c0_19 = arith.constant 0 : index
    %c0_20 = arith.constant 0 : index
    %28 = vector.load %arg9[%c0_19, %c0_20] : memref<1x32xf32, #tpu.memory_space<vmem>>, vector<1x32xf32>
    %29 = vector.broadcast %28 : vector<1x32xf32> to vector<16x32xf32>
    %30 = arith.addf %27, %29 : vector<16x32xf32>
    %c0_21 = arith.constant 0 : index
    %c0_22 = arith.constant 0 : index
    %c0_23 = arith.constant 0 : index
    %31 = vector.load %arg2[%c0_21, %c0_22, %c0_23] : memref<1x16x128xf32, #tpu.memory_space<vmem>>, vector<1x16x128xf32>
    %32 = vector.shape_cast %31 : vector<1x16x128xf32> to vector<16x128xf32>
    %c0_24 = arith.constant 0 : index
    %c0_25 = arith.constant 0 : index
    %33 = vector.load %arg10[%c0_24, %c0_25] : memref<64x32xf32, #tpu.memory_space<vmem>>, vector<64x32xf32>
    %34 = vector.extract_strided_slice %32 {offsets = [0, 0], sizes = [16, 64], strides = [1, 1]} : vector<16x128xf32> to vector<16x64xf32>
    %cst_26 = arith.constant dense<0.000000e+00> : vector<16x32xf32>
    %35 = tpu.matmul %34, %33, %cst_26 {dimension_numbers = #tpu.dot_dimension_numbers<[1], [0], [0], [1], [0, 0, 1, 1], [], []>, precision = #tpu.contract_precision<fp32>} : vector<16x64xf32>, vector<64x32xf32>, vector<16x32xf32> -> vector<16x32xf32>
    %36 = vector.extract_strided_slice %32 {offsets = [0, 64], sizes = [16, 64], strides = [1, 1]} : vector<16x128xf32> to vector<16x64xf32>
    %cst_27 = arith.constant dense<0.000000e+00> : vector<16x32xf32>
    %37 = tpu.matmul %36, %33, %cst_27 {dimension_numbers = #tpu.dot_dimension_numbers<[1], [0], [0], [1], [0, 0, 1, 1], [], []>, precision = #tpu.contract_precision<fp32>} : vector<16x64xf32>, vector<64x32xf32>, vector<16x32xf32> -> vector<16x32xf32>
    %38 = tpu.concatenate %35, %37 in 1 : vector<16x32xf32>, vector<16x32xf32> -> vector<16x64xf32>
    %c0_28 = arith.constant 0 : index
    %c0_29 = arith.constant 0 : index
    %39 = vector.load %arg3[%c0_28, %c0_29] : memref<16x16xf32, #tpu.memory_space<vmem>>, vector<16x16xf32>
    %cst_30 = arith.constant dense<0.000000e+00> : vector<16x64xf32>
    %40 = tpu.matmul %39, %38, %cst_30 {dimension_numbers = #tpu.dot_dimension_numbers<[1], [0], [0], [1], [0, 0, 1, 1], [], []>, precision = #tpu.contract_precision<fp32>} : vector<16x16xf32>, vector<16x64xf32>, vector<16x64xf32> -> vector<16x64xf32>
    %c0_31 = arith.constant 0 : index
    %c0_32 = arith.constant 0 : index
    %41 = vector.load %arg12[%c0_31, %c0_32] : memref<1x64xf32, #tpu.memory_space<vmem>>, vector<1x64xf32>
    %42 = vector.broadcast %41 : vector<1x64xf32> to vector<16x64xf32>
    %43 = arith.addf %40, %42 : vector<16x64xf32>
    %cst_33 = arith.constant 0.000000e+00 : f32
    %44 = vector.broadcast %cst_33 : f32 to vector<16x64xf32>
    %45 = arith.cmpf ogt, %43, %44 : vector<16x64xf32>
    %cst_34 = arith.constant 0.00999999977 : f32
    %46 = vector.broadcast %cst_34 : f32 to vector<16x64xf32>
    %47 = arith.mulf %46, %43 : vector<16x64xf32>
    %48 = arith.select %45, %43, %47 : vector<16x64xi1>, vector<16x64xf32>
    %c0_35 = arith.constant 0 : index
    %c0_36 = arith.constant 0 : index
    %49 = vector.load %arg11[%c0_35, %c0_36] : memref<32x16xf32, #tpu.memory_space<vmem>>, vector<32x16xf32>
    %50 = vector.extract_strided_slice %48 {offsets = [0, 0], sizes = [16, 32], strides = [1, 1]} : vector<16x64xf32> to vector<16x32xf32>
    %cst_37 = arith.constant dense<0.000000e+00> : vector<16x16xf32>
    %51 = tpu.matmul %50, %49, %cst_37 {dimension_numbers = #tpu.dot_dimension_numbers<[1], [0], [0], [1], [0, 0, 1, 1], [], []>, precision = #tpu.contract_precision<fp32>} : vector<16x32xf32>, vector<32x16xf32>, vector<16x16xf32> -> vector<16x16xf32>
    %52 = vector.extract_strided_slice %48 {offsets = [0, 32], sizes = [16, 32], strides = [1, 1]} : vector<16x64xf32> to vector<16x32xf32>
    %cst_38 = arith.constant dense<0.000000e+00> : vector<16x16xf32>
    %53 = tpu.matmul %52, %49, %cst_38 {dimension_numbers = #tpu.dot_dimension_numbers<[1], [0], [0], [1], [0, 0, 1, 1], [], []>, precision = #tpu.contract_precision<fp32>} : vector<16x32xf32>, vector<32x16xf32>, vector<16x16xf32> -> vector<16x16xf32>
    %54 = tpu.concatenate %51, %53 in 1 : vector<16x16xf32>, vector<16x16xf32> -> vector<16x32xf32>
    %c0_39 = arith.constant 0 : index
    %c0_40 = arith.constant 0 : index
    %55 = vector.load %arg3[%c0_39, %c0_40] : memref<16x16xf32, #tpu.memory_space<vmem>>, vector<16x16xf32>
    %cst_41 = arith.constant dense<0.000000e+00> : vector<16x32xf32>
    %56 = tpu.matmul %55, %54, %cst_41 {dimension_numbers = #tpu.dot_dimension_numbers<[1], [0], [0], [1], [0, 0, 1, 1], [], []>, precision = #tpu.contract_precision<fp32>} : vector<16x16xf32>, vector<16x32xf32>, vector<16x32xf32> -> vector<16x32xf32>
    %c0_42 = arith.constant 0 : index
    %c0_43 = arith.constant 0 : index
    %57 = vector.load %arg13[%c0_42, %c0_43] : memref<1x32xf32, #tpu.memory_space<vmem>>, vector<1x32xf32>
    %58 = vector.broadcast %57 : vector<1x32xf32> to vector<16x32xf32>
    %59 = arith.addf %56, %58 : vector<16x32xf32>
    %cst_44 = arith.constant 0.00999999977 : f32
    %60 = vector.broadcast %cst_44 : f32 to vector<16x32xf32>
    %61 = arith.mulf %60, %30 : vector<16x32xf32>
    %cst_45 = arith.constant 9.900000e-01 : f32
    %62 = vector.broadcast %cst_45 : f32 to vector<16x32xf32>
    %63 = arith.mulf %62, %59 : vector<16x32xf32>
    %64 = arith.addf %61, %63 : vector<16x32xf32>
    %c0_46 = arith.constant 0 : index
    %c0_47 = arith.constant 0 : index
    %c0_48 = arith.constant 0 : index
    %65 = vector.load %arg14[%c0_46, %c0_47, %c0_48] : memref<1x16x32xf32, #tpu.memory_space<vmem>>, vector<1x16x32xf32>
    %66 = vector.shape_cast %65 : vector<1x16x32xf32> to vector<16x32xf32>
    %67 = vector.shape_cast %64 : vector<16x32xf32> to vector<1x16x32xf32>
    tpu.vector_store %arg14[%c0_46, %c0_47, %c0_48], %67 {strides = array<i32>} : memref<1x16x32xf32, #tpu.memory_space<vmem>>, vector<1x16x32xf32>,
    return
  }
  func.func @transform_0(%arg0: i32) -> (i32, i32, i32) {
    %c0_i32 = arith.constant 0 : i32
    %c0_i32_0 = arith.constant 0 : i32
    %c0_i32_1 = arith.constant 0 : i32
    return %arg0, %c0_i32, %c0_i32_0 : i32, i32, i32
  }
  func.func @transform_1(%arg0: i32) -> (i32, i32, i32) {
    %c0_i32 = arith.constant 0 : i32
    %c0_i32_0 = arith.constant 0 : i32
    %c0_i32_1 = arith.constant 0 : i32
    return %arg0, %c0_i32, %c0_i32_0 : i32, i32, i32
  }
  func.func @transform_2(%arg0: i32) -> (i32, i32) {
    %c0_i32 = arith.constant 0 : i32
    %c0_i32_0 = arith.constant 0 : i32
    %c0_i32_1 = arith.constant 0 : i32
    return %c0_i32, %c0_i32_0 : i32, i32
  }
  func.func @transform_3(%arg0: i32) -> (i32, i32) {
    %c0_i32 = arith.constant 0 : i32
    %c0_i32_0 = arith.constant 0 : i32
    %c0_i32_1 = arith.constant 0 : i32
    return %c0_i32, %c0_i32_0 : i32, i32
  }
  func.func @transform_4(%arg0: i32) -> (i32, i32) {
    %c0_i32 = arith.constant 0 : i32
    %c0_i32_0 = arith.constant 0 : i32
    %c0_i32_1 = arith.constant 0 : i32
    return %c0_i32, %c0_i32_0 : i32, i32
  }
  func.func @transform_5(%arg0: i32) -> (i32, i32) {
    %c0_i32 = arith.constant 0 : i32
    %c0_i32_0 = arith.constant 0 : i32
    %c0_i32_1 = arith.constant 0 : i32
    return %c0_i32, %c0_i32_0 : i32, i32
  }
  func.func @transform_6(%arg0: i32) -> (i32, i32) {
    %c0_i32 = arith.constant 0 : i32
    %c0_i32_0 = arith.constant 0 : i32
    %c0_i32_1 = arith.constant 0 : i32
    return %c0_i32, %c0_i32_0 : i32, i32
  }
  func.func @transform_7(%arg0: i32) -> (i32, i32) {
    %c0_i32 = arith.constant 0 : i32
    %c0_i32_0 = arith.constant 0 : i32
    %c0_i32_1 = arith.constant 0 : i32
    return %c0_i32, %c0_i32_0 : i32, i32
  }
  func.func @transform_8(%arg0: i32) -> (i32, i32) {
    %c0_i32 = arith.constant 0 : i32
    %c0_i32_0 = arith.constant 0 : i32
    %c0_i32_1 = arith.constant 0 : i32
    return %c0_i32, %c0_i32_0 : i32, i32
  }
  func.func @transform_9(%arg0: i32) -> (i32, i32) {
    %c0_i32 = arith.constant 0 : i32
    %c0_i32_0 = arith.constant 0 : i32
    %c0_i32_1 = arith.constant 0 : i32
    return %c0_i32, %c0_i32_0 : i32, i32
  }
  func.func @transform_10(%arg0: i32) -> (i32, i32) {
    %c0_i32 = arith.constant 0 : i32
    %c0_i32_0 = arith.constant 0 : i32
    %c0_i32_1 = arith.constant 0 : i32
    return %c0_i32, %c0_i32_0 : i32, i32
  }
  func.func @transform_11(%arg0: i32) -> (i32, i32) {
    %c0_i32 = arith.constant 0 : i32
    %c0_i32_0 = arith.constant 0 : i32
    %c0_i32_1 = arith.constant 0 : i32
    return %c0_i32, %c0_i32_0 : i32, i32
  }
  func.func @transform_12(%arg0: i32) -> (i32, i32) {
    %c0_i32 = arith.constant 0 : i32
    %c0_i32_0 = arith.constant 0 : i32
    %c0_i32_1 = arith.constant 0 : i32
    return %c0_i32, %c0_i32_0 : i32, i32
  }
  func.func @transform_13(%arg0: i32) -> (i32, i32, i32) {
    %c0_i32 = arith.constant 0 : i32
    %c0_i32_0 = arith.constant 0 : i32
    %c0_i32_1 = arith.constant 0 : i32
    return %arg0, %c0_i32, %c0_i32_0 : i32, i32, i32
  }
}

</mosaic_0001>

<llo_original>
// kernel: tpu_custom_call.1
$region0: #{tpu_custom_call.1}
  #allocation0 [shape = 'u32[]', space=smem, size = 0x4, offset = 0x4, fixed_abs, tag = 'smem constant byte address 0x4 - core index']
  #allocation1 [shape = 'u32[72,128]{1,0:T(1,128)}', space=vmem, size = 0x9000, scoped, tag = 'internal scratch']
  %s0 = inlined_call_operand.vmem [shape: f32[2,1,128], index: 0, kind: input, shape index: {}]
  %s1 = inlined_call_operand.vmem [shape: f32[2,16,128], index: 1, kind: input, shape index: {}]
  %s2 = inlined_call_operand.vmem [shape: f32[16,16], index: 2, kind: input, shape index: {}]
  %s3 = inlined_call_operand.vmem [shape: f32[8,4], index: 3, kind: input, shape index: {}]
  %s4 = inlined_call_operand.vmem [shape: f32[16,8], index: 4, kind: input, shape index: {}]
  %s5 = inlined_call_operand.vmem [shape: f32[64,32], index: 5, kind: input, shape index: {}]
  %s6 = inlined_call_operand.vmem [shape: f32[32,16], index: 6, kind: input, shape index: {}]
  %s7 = inlined_call_operand.vmem [shape: f32[1,64], index: 7, kind: input, shape index: {}]
  %s8 = inlined_call_operand.vmem [shape: f32[1,32], index: 8, kind: input, shape index: {}]
  %s9 = inlined_call_operand.vmem [shape: f32[64,32], index: 9, kind: input, shape index: {}]
  %s10 = inlined_call_operand.vmem [shape: f32[32,16], index: 10, kind: input, shape index: {}]
  %s11 = inlined_call_operand.vmem [shape: f32[1,64], index: 11, kind: input, shape index: {}]
  %s12 = inlined_call_operand.vmem [shape: f32[1,32], index: 12, kind: input, shape index: {}]
  %s13 = inlined_call_operand.hbm [shape: f32[2,16,32], index: 13, kind: output, shape index: {}]
  %s14 = sld [smem:[#allocation0]]
  $region85: #{tpu_custom_call.1} parent=0
    _
  %s16 = ssub.s32 1, %s14
  %s17 = scalar_select 0, %s16, %s14
  $region1: #{tpu_custom_call.1} parent=0
    #allocation2 [shape = 'u8[16384]{0}', space=vmem, size = 0x4000, scoped, tag = 'output window, operand 0']
    #allocation3 [shape = 's32[2]{0}', space=sflag, size = 0x8, scoped, tag = 'scoped memory for tpu_custom_call.1']
    %18 = vsyncpa [#allocation3], 0
    %s19 = scalar_lea.sflag [#allocation3], 1
    %20 = vsyncpa %s19, 0
    loop: start=0, step=1, limit=4
    $region2: #{tpu_custom_call.1} parent=1 // loop_pre_header
      _
    $region3: #{tpu_custom_call.1} parent=1 // loop_header
      %s22 = sphi 0, %s26
      %p23 = scmp.ge.s32.totalorder %s22, 4
      %s32 = sphi 0, %s34
      %s35 = sphi 0, %s32
      %s36 = sphi 0, %s35
      %s52 = sphi 0, %s36
      %s58 = sphi 0, %s60
      %s61 = sphi 0, %s58
      %s62 = sphi 0, %s61
      %s78 = sphi 0, %s62
      %s82 = sphi 0, %s82
      %s84 = sphi 0, %s82
      %s85 = sphi 0, %s84
      %s99 = sphi 0, %s85
      %s103 = sphi 0, %s103
      %s105 = sphi 0, %s103
      %s106 = sphi 0, %s105
      %s120 = sphi 0, %s106
      %s124 = sphi 0, %s124
      %s126 = sphi 0, %s124
      %s127 = sphi 0, %s126
      %s141 = sphi 0, %s127
      %s145 = sphi 0, %s145
      %s147 = sphi 0, %s145
      %s148 = sphi 0, %s147
      %s162 = sphi 0, %s148
      %s166 = sphi 0, %s166
      %s168 = sphi 0, %s166
      %s169 = sphi 0, %s168
      %s183 = sphi 0, %s169
      %s187 = sphi 0, %s187
      %s189 = sphi 0, %s187
      %s190 = sphi 0, %s189
      %s204 = sphi 0, %s190
      %s208 = sphi 0, %s208
      %s210 = sphi 0, %s208
      %s211 = sphi 0, %s210
      %s225 = sphi 0, %s211
      %s229 = sphi 0, %s229
      %s231 = sphi 0, %s229
      %s232 = sphi 0, %s231
      %s246 = sphi 0, %s232
      %s250 = sphi 0, %s250
      %s252 = sphi 0, %s250
      %s253 = sphi 0, %s252
      %s267 = sphi 0, %s253
      %s271 = sphi 0, %s271
      %s273 = sphi 0, %s271
      %s274 = sphi 0, %s273
      %s288 = sphi 0, %s274
      %s292 = sphi 0, %s292
      %s294 = sphi 0, %s292
      %s295 = sphi 0, %s294
      %s309 = sphi 0, %s295
      %s315 = sphi 0, %s317
      %s318 = sphi 0, %s315
      %s319 = sphi 0, %s318
      %s335 = sphi 0, %s319
    $region4: #{tpu_custom_call.1} parent=1 // loop_header_branch
      %25 = sbr.rel (%p23) target = $region8
    $region5: #{tpu_custom_call.1} parent=1 // loop_body
      %s27 = ssub.s32 %s22, 1
      %s28 = ssub.s32 %s22, 2
      %s29 = sadd.s32 %s22, 1
      %s30 = ssub.s32 %s22, %s29
      %p31 = scmp.eq.s32.totalorder %s30, 0
      %s33 = sadd.s32 %s32, 1
      %s34 = scalar_select %p31, %s32, %s33
      %p37 = pneg %p31
      %p38 = scmp.eq.s32.totalorder %s22, 1
      %p39 = por %p37, %p38
      %p40 = scmp.ne.s32.totalorder %s32, %s35
      %p41 = scmp.eq.s32.totalorder %s22, 0
      %p42 = por %p40, %p41
      %p43 = scmp.ne.s32.totalorder %s32, %s35
      %p44 = scmp.eq.s32.totalorder %s27, 1
      %p45 = por %p43, %p44
      %p46 = scmp.ne.s32.totalorder %s35, %s36
      %p47 = scmp.eq.s32.totalorder %s27, 0
      %p48 = por %p46, %p47
      %p49 = scmp.ne.s32.totalorder %s35, %s36
      %p50 = scmp.eq.s32.totalorder %s28, 1
      %p51 = por %p49, %p50
      %p53 = scmp.ne.s32.totalorder %s36, %s52
      %p54 = scmp.eq.s32.totalorder %s28, 0
      %p55 = por %p53, %p54
      %s56 = ssub.s32 %s22, %s29
      %p57 = scmp.eq.s32.totalorder %s56, 0
      %s59 = sadd.s32 %s58, 1
      %s60 = scalar_select %p57, %s58, %s59
      %p63 = pneg %p57
      %p64 = scmp.eq.s32.totalorder %s22, 1
      %p65 = por %p63, %p64
      %p66 = scmp.ne.s32.totalorder %s58, %s61
      %p67 = scmp.eq.s32.totalorder %s22, 0
      %p68 = por %p66, %p67
      %p69 = scmp.ne.s32.totalorder %s58, %s61
      %p70 = scmp.eq.s32.totalorder %s27, 1
      %p71 = por %p69, %p70
      %p72 = scmp.ne.s32.totalorder %s61, %s62
      %p73 = scmp.eq.s32.totalorder %s27, 0
      %p74 = por %p72, %p73
      %p75 = scmp.ne.s32.totalorder %s61, %s62
      %p76 = scmp.eq.s32.totalorder %s28, 1
      %p77 = por %p75, %p76
      %p79 = scmp.ne.s32.totalorder %s62, %s78
      %p80 = scmp.eq.s32.totalorder %s28, 0
      %p81 = por %p79, %p80
      %s83 = sadd.s32 %s82, 1
      %p86 = scmp.eq.s32.totalorder %s22, 1
      %p87 = scmp.ne.s32.totalorder %s82, %s84
      %p88 = scmp.eq.s32.totalorder %s22, 0
      %p89 = por %p87, %p88
      %p90 = scmp.ne.s32.totalorder %s82, %s84
      %p91 = scmp.eq.s32.totalorder %s27, 1
      %p92 = por %p90, %p91
      %p93 = scmp.ne.s32.totalorder %s84, %s85
      %p94 = scmp.eq.s32.totalorder %s27, 0
      %p95 = por %p93, %p94
      %p96 = scmp.ne.s32.totalorder %s84, %s85
      %p97 = scmp.eq.s32.totalorder %s28, 1
      %p98 = por %p96, %p97
      %p100 = scmp.ne.s32.totalorder %s85, %s99
      %p101 = scmp.eq.s32.totalorder %s28, 0
      %p102 = por %p100, %p101
      %s104 = sadd.s32 %s103, 1
      %p107 = scmp.eq.s32.totalorder %s22, 1
      %p108 = scmp.ne.s32.totalorder %s103, %s105
      %p109 = scmp.eq.s32.totalorder %s22, 0
      %p110 = por %p108, %p109
      %p111 = scmp.ne.s32.totalorder %s103, %s105
      %p112 = scmp.eq.s32.totalorder %s27, 1
      %p113 = por %p111, %p112
      %p114 = scmp.ne.s32.totalorder %s105, %s106
      %p115 = scmp.eq.s32.totalorder %s27, 0
      %p116 = por %p114, %p115
      %p117 = scmp.ne.s32.totalorder %s105, %s106
      %p118 = scmp.eq.s32.totalorder %s28, 1
      %p119 = por %p117, %p118
      %p121 = scmp.ne.s32.totalorder %s106, %s120
      %p122 = scmp.eq.s32.totalorder %s28, 0
      %p123 = por %p121, %p122
      %s125 = sadd.s32 %s124, 1
      %p128 = scmp.eq.s32.totalorder %s22, 1
      %p129 = scmp.ne.s32.totalorder %s124, %s126
      %p130 = scmp.eq.s32.totalorder %s22, 0
      %p131 = por %p129, %p130
      %p132 = scmp.ne.s32.totalorder %s124, %s126
      %p133 = scmp.eq.s32.totalorder %s27, 1
      %p134 = por %p132, %p133
      %p135 = scmp.ne.s32.totalorder %s126, %s127
      %p136 = scmp.eq.s32.totalorder %s27, 0
      %p137 = por %p135, %p136
      %p138 = scmp.ne.s32.totalorder %s126, %s127
      %p139 = scmp.eq.s32.totalorder %s28, 1
      %p140 = por %p138, %p139
      %p142 = scmp.ne.s32.totalorder %s127, %s141
      %p143 = scmp.eq.s32.totalorder %s28, 0
      %p144 = por %p142, %p143
      %s146 = sadd.s32 %s145, 1
      %p149 = scmp.eq.s32.totalorder %s22, 1
      %p150 = scmp.ne.s32.totalorder %s145, %s147
      %p151 = scmp.eq.s32.totalorder %s22, 0
      %p152 = por %p150, %p151
      %p153 = scmp.ne.s32.totalorder %s145, %s147
      %p154 = scmp.eq.s32.totalorder %s27, 1
      %p155 = por %p153, %p154
      %p156 = scmp.ne.s32.totalorder %s147, %s148
      %p157 = scmp.eq.s32.totalorder %s27, 0
      %p158 = por %p156, %p157
      %p159 = scmp.ne.s32.totalorder %s147, %s148
      %p160 = scmp.eq.s32.totalorder %s28, 1
      %p161 = por %p159, %p160
      %p163 = scmp.ne.s32.totalorder %s148, %s162
      %p164 = scmp.eq.s32.totalorder %s28, 0
      %p165 = por %p163, %p164
      %s167 = sadd.s32 %s166, 1
      %p170 = scmp.eq.s32.totalorder %s22, 1
      %p171 = scmp.ne.s32.totalorder %s166, %s168
      %p172 = scmp.eq.s32.totalorder %s22, 0
      %p173 = por %p171, %p172
      %p174 = scmp.ne.s32.totalorder %s166, %s168
      %p175 = scmp.eq.s32.totalorder %s27, 1
      %p176 = por %p174, %p175
      %p177 = scmp.ne.s32.totalorder %s168, %s169
      %p178 = scmp.eq.s32.totalorder %s27, 0
      %p179 = por %p177, %p178
      %p180 = scmp.ne.s32.totalorder %s168, %s169
      %p181 = scmp.eq.s32.totalorder %s28, 1
      %p182 = por %p180, %p181
      %p184 = scmp.ne.s32.totalorder %s169, %s183
      %p185 = scmp.eq.s32.totalorder %s28, 0
      %p186 = por %p184, %p185
      %s188 = sadd.s32 %s187, 1
      %p191 = scmp.eq.s32.totalorder %s22, 1
      %p192 = scmp.ne.s32.totalorder %s187, %s189
      %p193 = scmp.eq.s32.totalorder %s22, 0
      %p194 = por %p192, %p193
      %p195 = scmp.ne.s32.totalorder %s187, %s189
      %p196 = scmp.eq.s32.totalorder %s27, 1
      %p197 = por %p195, %p196
      %p198 = scmp.ne.s32.totalorder %s189, %s190
      %p199 = scmp.eq.s32.totalorder %s27, 0
      %p200 = por %p198, %p199
      %p201 = scmp.ne.s32.totalorder %s189, %s190
      %p202 = scmp.eq.s32.totalorder %s28, 1
      %p203 = por %p201, %p202
      %p205 = scmp.ne.s32.totalorder %s190, %s204
      %p206 = scmp.eq.s32.totalorder %s28, 0
      %p207 = por %p205, %p206
      %s209 = sadd.s32 %s208, 1
      %p212 = scmp.eq.s32.totalorder %s22, 1
      %p213 = scmp.ne.s32.totalorder %s208, %s210
      %p214 = scmp.eq.s32.totalorder %s22, 0
      %p215 = por %p213, %p214
      %p216 = scmp.ne.s32.totalorder %s208, %s210
      %p217 = scmp.eq.s32.totalorder %s27, 1
      %p218 = por %p216, %p217
      %p219 = scmp.ne.s32.totalorder %s210, %s211
      %p220 = scmp.eq.s32.totalorder %s27, 0
      %p221 = por %p219, %p220
      %p222 = scmp.ne.s32.totalorder %s210, %s211
      %p223 = scmp.eq.s32.totalorder %s28, 1
      %p224 = por %p222, %p223
      %p226 = scmp.ne.s32.totalorder %s211, %s225
      %p227 = scmp.eq.s32.totalorder %s28, 0
      %p228 = por %p226, %p227
      %s230 = sadd.s32 %s229, 1
      %p233 = scmp.eq.s32.totalorder %s22, 1
      %p234 = scmp.ne.s32.totalorder %s229, %s231
      %p235 = scmp.eq.s32.totalorder %s22, 0
      %p236 = por %p234, %p235
      %p237 = scmp.ne.s32.totalorder %s229, %s231
      %p238 = scmp.eq.s32.totalorder %s27, 1
      %p239 = por %p237, %p238
      %p240 = scmp.ne.s32.totalorder %s231, %s232
      %p241 = scmp.eq.s32.totalorder %s27, 0
      %p242 = por %p240, %p241
      %p243 = scmp.ne.s32.totalorder %s231, %s232
      %p244 = scmp.eq.s32.totalorder %s28, 1
      %p245 = por %p243, %p244
      %p247 = scmp.ne.s32.totalorder %s232, %s246
      %p248 = scmp.eq.s32.totalorder %s28, 0
      %p249 = por %p247, %p248
      %s251 = sadd.s32 %s250, 1
      %p254 = scmp.eq.s32.totalorder %s22, 1
      %p255 = scmp.ne.s32.totalorder %s250, %s252
      %p256 = scmp.eq.s32.totalorder %s22, 0
      %p257 = por %p255, %p256
      %p258 = scmp.ne.s32.totalorder %s250, %s252
      %p259 = scmp.eq.s32.totalorder %s27, 1
      %p260 = por %p258, %p259
      %p261 = scmp.ne.s32.totalorder %s252, %s253
      %p262 = scmp.eq.s32.totalorder %s27, 0
      %p263 = por %p261, %p262
      %p264 = scmp.ne.s32.totalorder %s252, %s253
      %p265 = scmp.eq.s32.totalorder %s28, 1
      %p266 = por %p264, %p265
      %p268 = scmp.ne.s32.totalorder %s253, %s267
      %p269 = scmp.eq.s32.totalorder %s28, 0
      %p270 = por %p268, %p269
      %s272 = sadd.s32 %s271, 1
      %p275 = scmp.eq.s32.totalorder %s22, 1
      %p276 = scmp.ne.s32.totalorder %s271, %s273
      %p277 = scmp.eq.s32.totalorder %s22, 0
      %p278 = por %p276, %p277
      %p279 = scmp.ne.s32.totalorder %s271, %s273
      %p280 = scmp.eq.s32.totalorder %s27, 1
      %p281 = por %p279, %p280
      %p282 = scmp.ne.s32.totalorder %s273, %s274
      %p283 = scmp.eq.s32.totalorder %s27, 0
      %p284 = por %p282, %p283
      %p285 = scmp.ne.s32.totalorder %s273, %s274
      %p286 = scmp.eq.s32.totalorder %s28, 1
      %p287 = por %p285, %p286
      %p289 = scmp.ne.s32.totalorder %s274, %s288
      %p290 = scmp.eq.s32.totalorder %s28, 0
      %p291 = por %p289, %p290
      %s293 = sadd.s32 %s292, 1
      %p296 = scmp.eq.s32.totalorder %s22, 1
      %p297 = scmp.ne.s32.totalorder %s292, %s294
      %p298 = scmp.eq.s32.totalorder %s22, 0
      %p299 = por %p297, %p298
      %p300 = scmp.ne.s32.totalorder %s292, %s294
      %p301 = scmp.eq.s32.totalorder %s27, 1
      %p302 = por %p300, %p301
      %p303 = scmp.ne.s32.totalorder %s294, %s295
      %p304 = scmp.eq.s32.totalorder %s27, 0
      %p305 = por %p303, %p304
      %p306 = scmp.ne.s32.totalorder %s294, %s295
      %p307 = scmp.eq.s32.totalorder %s28, 1
      %p308 = por %p306, %p307
      %p310 = scmp.ne.s32.totalorder %s295, %s309
      %p311 = scmp.eq.s32.totalorder %s28, 0
      %p312 = por %p310, %p311
      %s313 = ssub.s32 %s22, %s29
      %p314 = scmp.eq.s32.totalorder %s313, 0
      %s316 = sadd.s32 %s315, 1
      %s317 = scalar_select %p314, %s315, %s316
      %p320 = pneg %p314
      %p321 = scmp.eq.s32.totalorder %s22, 1
      %p322 = por %p320, %p321
      %p323 = scmp.ne.s32.totalorder %s315, %s318
      %p324 = scmp.eq.s32.totalorder %s22, 0
      %p325 = por %p323, %p324
      %p326 = scmp.ne.s32.totalorder %s315, %s318
      %p327 = scmp.eq.s32.totalorder %s27, 1
      %p328 = por %p326, %p327
      %p329 = scmp.ne.s32.totalorder %s318, %s319
      %p330 = scmp.eq.s32.totalorder %s27, 0
      %p331 = por %p329, %p330
      %p332 = scmp.ne.s32.totalorder %s318, %s319
      %p333 = scmp.eq.s32.totalorder %s28, 1
      %p334 = por %p332, %p333
      %p336 = scmp.ne.s32.totalorder %s319, %s335
      %p337 = scmp.eq.s32.totalorder %s28, 0
      %p338 = por %p336, %p337
      %p339 = scmp.le.s32.totalorder 1, %s22
      %p340 = scmp.lt.s32.totalorder %s22, 3
      %p341 = pnand %p339, %p340
      %p342 = pneg %p341
      // Predicated region
      $region9: #{tpu_custom_call.1} parent=5 // pred_check
        _
      $region10: #{tpu_custom_call.1} parent=5 // pred_check_branch
        %344 = sbr.rel (%p341) target = $region12
      $region11: #{tpu_custom_call.1} parent=5 // pred_region
        %s345 = ssub.s32 %s22, 1
        // Predicated region
        $region13: #{tpu_custom_call.1} parent=11 // pred_check
          %p346 = pneg %p95
        $region14: #{tpu_custom_call.1} parent=11 // pred_check_branch
          %348 = sbr.rel (%p346) target = $region16
        $region15: #{tpu_custom_call.1} parent=11 // pred_region
          _
        $region16: #{tpu_custom_call.1} parent=11 // pred_fallthru
          _
        // Predicated region
        $region17: #{tpu_custom_call.1} parent=11 // pred_check
          %p349 = pneg %p116
        $region18: #{tpu_custom_call.1} parent=11 // pred_check_branch
          %351 = sbr.rel (%p349) target = $region20
        $region19: #{tpu_custom_call.1} parent=11 // pred_region
          _
        $region20: #{tpu_custom_call.1} parent=11 // pred_fallthru
          _
        // Predicated region
        $region21: #{tpu_custom_call.1} parent=11 // pred_check
          %p352 = pneg %p137
        $region22: #{tpu_custom_call.1} parent=11 // pred_check_branch
          %354 = sbr.rel (%p352) target = $region24
        $region23: #{tpu_custom_call.1} parent=11 // pred_region
          _
        $region24: #{tpu_custom_call.1} parent=11 // pred_fallthru
          _
        // Predicated region
        $region25: #{tpu_custom_call.1} parent=11 // pred_check
          %p355 = pneg %p158
        $region26: #{tpu_custom_call.1} parent=11 // pred_check_branch
          %357 = sbr.rel (%p355) target = $region28
        $region27: #{tpu_custom_call.1} parent=11 // pred_region
          _
        $region28: #{tpu_custom_call.1} parent=11 // pred_fallthru
          _
        // Predicated region
        $region29: #{tpu_custom_call.1} parent=11 // pred_check
          %p358 = pneg %p179
        $region30: #{tpu_custom_call.1} parent=11 // pred_check_branch
          %360 = sbr.rel (%p358) target = $region32
        $region31: #{tpu_custom_call.1} parent=11 // pred_region
          _
        $region32: #{tpu_custom_call.1} parent=11 // pred_fallthru
          _
        // Predicated region
        $region33: #{tpu_custom_call.1} parent=11 // pred_check
          %p361 = pneg %p200
        $region34: #{tpu_custom_call.1} parent=11 // pred_check_branch
          %363 = sbr.rel (%p361) target = $region36
        $region35: #{tpu_custom_call.1} parent=11 // pred_region
          _
        $region36: #{tpu_custom_call.1} parent=11 // pred_fallthru
          _
        // Predicated region
        $region37: #{tpu_custom_call.1} parent=11 // pred_check
          %p364 = pneg %p221
        $region38: #{tpu_custom_call.1} parent=11 // pred_check_branch
          %366 = sbr.rel (%p364) target = $region40
        $region39: #{tpu_custom_call.1} parent=11 // pred_region
          _
        $region40: #{tpu_custom_call.1} parent=11 // pred_fallthru
          _
        // Predicated region
        $region41: #{tpu_custom_call.1} parent=11 // pred_check
          %p367 = pneg %p242
        $region42: #{tpu_custom_call.1} parent=11 // pred_check_branch
          %369 = sbr.rel (%p367) target = $region44
        $region43: #{tpu_custom_call.1} parent=11 // pred_region
          _
        $region44: #{tpu_custom_call.1} parent=11 // pred_fallthru
          _
        // Predicated region
        $region45: #{tpu_custom_call.1} parent=11 // pred_check
          %p370 = pneg %p263
        $region46: #{tpu_custom_call.1} parent=11 // pred_check_branch
          %372 = sbr.rel (%p370) target = $region48
        $region47: #{tpu_custom_call.1} parent=11 // pred_region
          _
        $region48: #{tpu_custom_call.1} parent=11 // pred_fallthru
          _
        // Predicated region
        $region49: #{tpu_custom_call.1} parent=11 // pred_check
          %p373 = pneg %p284
        $region50: #{tpu_custom_call.1} parent=11 // pred_check_branch
          %375 = sbr.rel (%p373) target = $region52
        $region51: #{tpu_custom_call.1} parent=11 // pred_region
          _
        $region52: #{tpu_custom_call.1} parent=11 // pred_fallthru
          _
        // Predicated region
        $region53: #{tpu_custom_call.1} parent=11 // pred_check
          %p376 = pneg %p305
        $region54: #{tpu_custom_call.1} parent=11 // pred_check_branch
          %378 = sbr.rel (%p376) target = $region56
        $region55: #{tpu_custom_call.1} parent=11 // pred_region
          _
        $region56: #{tpu_custom_call.1} parent=11 // pred_fallthru
          _
      $region12: #{tpu_custom_call.1} parent=5 // pred_fallthru
        _
      %p379 = scmp.lt.s32.totalorder %s22, 2
      // Predicated region
      $region57: #{tpu_custom_call.1} parent=5 // pred_check
        %p380 = pneg %p379
      $region58: #{tpu_custom_call.1} parent=5 // pred_check_branch
        %382 = sbr.rel (%p380) target = $region60
      $region59: #{tpu_custom_call.1} parent=5 // pred_region
        // Predicated region
        $region61: #{tpu_custom_call.1} parent=59 // pred_check
          %p383 = pneg %p42
        $region62: #{tpu_custom_call.1} parent=59 // pred_check_branch
          %385 = sbr.rel (%p383) target = $region64
        $region63: #{tpu_custom_call.1} parent=59 // pred_region
          %p386 = scmp.lt.s32.totalorder %s22, 1
          %s387 = scalar_select %p386, %s22, 1
          %s388 = scalar_lea.vmem %s0, %s387
        $region64: #{tpu_custom_call.1} parent=59 // pred_fallthru
          _
        // Predicated region
        $region65: #{tpu_custom_call.1} parent=59 // pred_check
          %p389 = pneg %p68
        $region66: #{tpu_custom_call.1} parent=59 // pred_check_branch
          %391 = sbr.rel (%p389) target = $region68
        $region67: #{tpu_custom_call.1} parent=59 // pred_region
          %p392 = scmp.lt.s32.totalorder %s22, 1
          %s393 = scalar_select %p392, %s22, 1
          %s394 = smul.addr %s393, 2
          %s395 = smul.addr %s394, 8
          %s396 = scalar_lea.vmem %s1, %s395
        $region68: #{tpu_custom_call.1} parent=59 // pred_fallthru
          _
      $region60: #{tpu_custom_call.1} parent=5 // pred_fallthru
        _
      %p397 = scmp.le.s32.totalorder 1, %s22
      %p398 = scmp.lt.s32.totalorder %s22, 3
      %p399 = pnand %p397, %p398
      %p400 = pneg %p399
      // Predicated region
      $region69: #{tpu_custom_call.1} parent=5 // pred_check
        _
      $region70: #{tpu_custom_call.1} parent=5 // pred_check_branch
        %402 = sbr.rel (%p399) target = $region72
      $region71: #{tpu_custom_call.1} parent=5 // pred_region
        %s403 = ssub.s32 %s22, 1
        %p404 = scmp.lt.s32.totalorder %s27, 1
        %s405 = scalar_select %p404, %s27, 1
        %s406 = scalar_lea.vmem %s0, %s405
        %p407 = pneg %p48
        %p408 = pneg %p45
        %p409 = scmp.lt.s32.totalorder %s27, 1
        %s410 = scalar_select %p409, %s27, 1
        %s411 = smul.addr %s410, 2
        %s412 = smul.addr %s411, 8
        %s413 = scalar_lea.vmem %s1, %s412
        %p414 = pneg %p74
        %p415 = pneg %p71
        %p416 = pneg %p95
        %p417 = pneg %p92
        %p418 = pneg %p116
        %p419 = pneg %p113
        %p420 = pneg %p137
        %p421 = pneg %p134
        %p422 = pneg %p158
        %p423 = pneg %p155
        %p424 = pneg %p179
        %p425 = pneg %p176
        %p426 = pneg %p200
        %p427 = pneg %p197
        %p428 = pneg %p221
        %p429 = pneg %p218
        %p430 = pneg %p242
        %p431 = pneg %p239
        %p432 = pneg %p263
        %p433 = pneg %p260
        %p434 = pneg %p284
        %p435 = pneg %p281
        %p436 = pneg %p305
        %p437 = pneg %p302
        %p438 = pneg %p331
        %p439 = pneg %p328
        %s440 = sand.u32 %s318, 1
        %s441 = scalar_lea.sflag [#allocation3], %s440
        %s442 = sand.u32 %s318, 1
        %s443 = smul.addr %s442, 16
        %s444 = scalar_lea.vmem [#allocation2], %s443
        %p445 = scmp.lt.s32.totalorder %s27, 1
        %s446 = scalar_select %p445, %s27, 1
        %s447 = scalar_lea.vmem %s0, %s446
        %p448 = scmp.lt.s32.totalorder %s27, 1
        %s449 = scalar_select %p448, %s27, 1
        %s450 = smul.addr %s449, 2
        %s451 = smul.addr %s450, 8
        %s452 = scalar_lea.vmem %s1, %s451
        %v453 = vld [vmem:[%s447] sm:$0x1]
        %v454 = vld [vmem:[%s5] sm:$0xff]
        %v455 = vld [vmem:[%s5 + $0x8] sm:$0xff]
        %v456 = vld [vmem:[%s5 + $0x10] sm:$0xff]
        %v457 = vld [vmem:[%s5 + $0x18] sm:$0xff]
        %v458 = vld [vmem:[%s5 + $0x20] sm:$0xff]
        %v459 = vld [vmem:[%s5 + $0x28] sm:$0xff]
        %v460 = vld [vmem:[%s5 + $0x30] sm:$0xff]
        %v461 = vld [vmem:[%s5 + $0x38] sm:$0xff]
        %v463 = vperm.slane %v453, 0
        %vm464 = vcmask 523264
        %v465 = vsel %vm464, %v463, 0
        %467 = vmatpush.msra.mxu0 0.0
        %468 = vmatpush.msra.mxu0 0.0
        %469 = vmatpush.msra.mxu0 0.0
        %470 = vmatpush.msra.mxu0 0.0
        %471 = vmatpush.msra.mxu0 0.0
        %472 = vmatpush.msra.mxu0 0.0
        %473 = vmatpush.msra.mxu0 0.0
        %474 = vmatpush.msra.mxu0 0.0
        %v475 = vand.u32 %v461, 4294901760
        %476 = vmatpush.msra.mxu0 %v475
        %v477 = vand.u32 %v460, 4294901760
        %478 = vmatpush.msra.mxu0 %v477
        %v479 = vand.u32 %v459, 4294901760
        %480 = vmatpush.msra.mxu0 %v479
        %v481 = vand.u32 %v458, 4294901760
        %482 = vmatpush.msra.mxu0 %v481
        %v483 = vand.u32 %v457, 4294901760
        %484 = vmatpush.msra.mxu0 %v483
        %v485 = vand.u32 %v456, 4294901760
        %486 = vmatpush.msra.mxu0 %v485
        %v487 = vand.u32 %v455, 4294901760
        %488 = vmatpush.msra.mxu0 %v487
        %v489 = vand.u32 %v454, 4294901760
        %490 = vmatpush.msra.mxu0 %v489
        %v491 = vand.u32 %v465, 4294901760
        %v492 = vsub.f32 %v465, %v491
        %v493 = vand.u32 %v492, 4294901760
        %v494 = vsub.f32 %v492, %v493
        %v495 = vand.u32 %v494, 4294901760
        %496 = vmatmul.f32.gmra.mxu0 %v495
        %v497 = vpop.f32.mrf.mxu0
        %v498 = vadd.f32 0.0, %v497
        %499 = vdwg.mxu0
        %500 = vmatpush.msra.mxu0 0.0
        %501 = vmatpush.msra.mxu0 0.0
        %502 = vmatpush.msra.mxu0 0.0
        %503 = vmatpush.msra.mxu0 0.0
        %504 = vmatpush.msra.mxu0 0.0
        %505 = vmatpush.msra.mxu0 0.0
        %506 = vmatpush.msra.mxu0 0.0
        %507 = vmatpush.msra.mxu0 0.0
        %v508 = vand.u32 %v461, 4294901760
        %v509 = vsub.f32 %v461, %v508
        %v510 = vand.u32 %v509, 4294901760
        %v511 = vsub.f32 %v509, %v510
        %v512 = vand.u32 %v511, 4294901760
        %513 = vmatpush.msra.mxu0 %v512
        %v514 = vand.u32 %v460, 4294901760
        %v515 = vsub.f32 %v460, %v514
        %v516 = vand.u32 %v515, 4294901760
        %v517 = vsub.f32 %v515, %v516
        %v518 = vand.u32 %v517, 4294901760
        %519 = vmatpush.msra.mxu0 %v518
        %v520 = vand.u32 %v459, 4294901760
        %v521 = vsub.f32 %v459, %v520
        %v522 = vand.u32 %v521, 4294901760
        %v523 = vsub.f32 %v521, %v522
        %v524 = vand.u32 %v523, 4294901760
        %525 = vmatpush.msra.mxu0 %v524
        %v526 = vand.u32 %v458, 4294901760
        %v527 = vsub.f32 %v458, %v526
        %v528 = vand.u32 %v527, 4294901760
        %v529 = vsub.f32 %v527, %v528
        %v530 = vand.u32 %v529, 4294901760
        %531 = vmatpush.msra.mxu0 %v530
        %v532 = vand.u32 %v457, 4294901760
        %v533 = vsub.f32 %v457, %v532
        %v534 = vand.u32 %v533, 4294901760
        %v535 = vsub.f32 %v533, %v534
        %v536 = vand.u32 %v535, 4294901760
        %537 = vmatpush.msra.mxu0 %v536
        %v538 = vand.u32 %v456, 4294901760
        %v539 = vsub.f32 %v456, %v538
        %v540 = vand.u32 %v539, 4294901760
        %v541 = vsub.f32 %v539, %v540
        %v542 = vand.u32 %v541, 4294901760
        %543 = vmatpush.msra.mxu0 %v542
        %v544 = vand.u32 %v455, 4294901760
        %v545 = vsub.f32 %v455, %v544
        %v546 = vand.u32 %v545, 4294901760
        %v547 = vsub.f32 %v545, %v546
        %v548 = vand.u32 %v547, 4294901760
        %549 = vmatpush.msra.mxu0 %v548
        %v550 = vand.u32 %v454, 4294901760
        %v551 = vsub.f32 %v454, %v550
        %v552 = vand.u32 %v551, 4294901760
        %v553 = vsub.f32 %v551, %v552
        %v554 = vand.u32 %v553, 4294901760
        %555 = vmatpush.msra.mxu0 %v554
        %v556 = vand.u32 %v465, 4294901760
        %557 = vmatmul.f32.gmra.mxu0 %v556
        %v558 = vpop.f32.mrf.mxu0
        %v559 = vadd.f32 %v498, %v558
        %560 = vdwg.mxu0
        %561 = vmatpush.msra.mxu0 0.0
        %562 = vmatpush.msra.mxu0 0.0
        %563 = vmatpush.msra.mxu0 0.0
        %564 = vmatpush.msra.mxu0 0.0
        %565 = vmatpush.msra.mxu0 0.0
        %566 = vmatpush.msra.mxu0 0.0
        %567 = vmatpush.msra.mxu0 0.0
        %568 = vmatpush.msra.mxu0 0.0
        %v569 = vand.u32 %v461, 4294901760
        %v570 = vsub.f32 %v461, %v569
        %571 = vmatpush.msra.mxu0 %v570
        %v572 = vand.u32 %v460, 4294901760
        %v573 = vsub.f32 %v460, %v572
        %574 = vmatpush.msra.mxu0 %v573
        %v575 = vand.u32 %v459, 4294901760
        %v576 = vsub.f32 %v459, %v575
        %577 = vmatpush.msra.mxu0 %v576
        %v578 = vand.u32 %v458, 4294901760
        %v579 = vsub.f32 %v458, %v578
        %580 = vmatpush.msra.mxu0 %v579
        %v581 = vand.u32 %v457, 4294901760
        %v582 = vsub.f32 %v457, %v581
        %583 = vmatpush.msra.mxu0 %v582
        %v584 = vand.u32 %v456, 4294901760
        %v585 = vsub.f32 %v456, %v584
        %586 = vmatpush.msra.mxu0 %v585
        %v587 = vand.u32 %v455, 4294901760
        %v588 = vsub.f32 %v455, %v587
        %589 = vmatpush.msra.mxu0 %v588
        %v590 = vand.u32 %v454, 4294901760
        %v591 = vsub.f32 %v454, %v590
        %592 = vmatpush.msra.mxu0 %v591
        %v593 = vand.u32 %v465, 4294901760
        %v594 = vsub.f32 %v465, %v593
        %595 = vmatmul.f32.gmra.mxu0 %v594
        %v596 = vpop.f32.mrf.mxu0
        %v597 = vadd.f32 %v559, %v596
        %598 = vdwg.mxu0
        %599 = vmatpush.msra.mxu0 0.0
        %600 = vmatpush.msra.mxu0 0.0
        %601 = vmatpush.msra.mxu0 0.0
        %602 = vmatpush.msra.mxu0 0.0
        %603 = vmatpush.msra.mxu0 0.0
        %604 = vmatpush.msra.mxu0 0.0
        %605 = vmatpush.msra.mxu0 0.0
        %606 = vmatpush.msra.mxu0 0.0
        %v607 = vand.u32 %v461, 4294901760
        %608 = vmatpush.msra.mxu0 %v607
        %v609 = vand.u32 %v460, 4294901760
        %610 = vmatpush.msra.mxu0 %v609
        %v611 = vand.u32 %v459, 4294901760
        %612 = vmatpush.msra.mxu0 %v611
        %v613 = vand.u32 %v458, 4294901760
        %614 = vmatpush.msra.mxu0 %v613
        %v615 = vand.u32 %v457, 4294901760
        %616 = vmatpush.msra.mxu0 %v615
        %v617 = vand.u32 %v456, 4294901760
        %618 = vmatpush.msra.mxu0 %v617
        %v619 = vand.u32 %v455, 4294901760
        %620 = vmatpush.msra.mxu0 %v619
        %v621 = vand.u32 %v454, 4294901760
        %622 = vmatpush.msra.mxu0 %v621
        %v623 = vand.u32 %v465, 4294901760
        %v624 = vsub.f32 %v465, %v623
        %v625 = vand.u32 %v624, 4294901760
        %626 = vmatmul.f32.gmra.mxu0 %v625
        %v627 = vpop.f32.mrf.mxu0
        %v628 = vadd.f32 %v597, %v627
        %629 = vdwg.mxu0
        %630 = vmatpush.msra.mxu0 0.0
        %631 = vmatpush.msra.mxu0 0.0
        %632 = vmatpush.msra.mxu0 0.0
        %633 = vmatpush.msra.mxu0 0.0
        %634 = vmatpush.msra.mxu0 0.0
        %635 = vmatpush.msra.mxu0 0.0
        %636 = vmatpush.msra.mxu0 0.0
        %637 = vmatpush.msra.mxu0 0.0
        %v638 = vand.u32 %v461, 4294901760
        %v639 = vsub.f32 %v461, %v638
        %v640 = vand.u32 %v639, 4294901760
        %641 = vmatpush.msra.mxu0 %v640
        %v642 = vand.u32 %v460, 4294901760
        %v643 = vsub.f32 %v460, %v642
        %v644 = vand.u32 %v643, 4294901760
        %645 = vmatpush.msra.mxu0 %v644
        %v646 = vand.u32 %v459, 4294901760
        %v647 = vsub.f32 %v459, %v646
        %v648 = vand.u32 %v647, 4294901760
        %649 = vmatpush.msra.mxu0 %v648
        %v650 = vand.u32 %v458, 4294901760
        %v651 = vsub.f32 %v458, %v650
        %v652 = vand.u32 %v651, 4294901760
        %653 = vmatpush.msra.mxu0 %v652
        %v654 = vand.u32 %v457, 4294901760
        %v655 = vsub.f32 %v457, %v654
        %v656 = vand.u32 %v655, 4294901760
        %657 = vmatpush.msra.mxu0 %v656
        %v658 = vand.u32 %v456, 4294901760
        %v659 = vsub.f32 %v456, %v658
        %v660 = vand.u32 %v659, 4294901760
        %661 = vmatpush.msra.mxu0 %v660
        %v662 = vand.u32 %v455, 4294901760
        %v663 = vsub.f32 %v455, %v662
        %v664 = vand.u32 %v663, 4294901760
        %665 = vmatpush.msra.mxu0 %v664
        %v666 = vand.u32 %v454, 4294901760
        %v667 = vsub.f32 %v454, %v666
        %v668 = vand.u32 %v667, 4294901760
        %669 = vmatpush.msra.mxu0 %v668
        %v670 = vand.u32 %v465, 4294901760
        %671 = vmatmul.f32.gmra.mxu0 %v670
        %v672 = vpop.f32.mrf.mxu0
        %v673 = vadd.f32 %v628, %v672
        %674 = vdwg.mxu0
        %675 = vmatpush.msra.mxu0 0.0
        %676 = vmatpush.msra.mxu0 0.0
        %677 = vmatpush.msra.mxu0 0.0
        %678 = vmatpush.msra.mxu0 0.0
        %679 = vmatpush.msra.mxu0 0.0
        %680 = vmatpush.msra.mxu0 0.0
        %681 = vmatpush.msra.mxu0 0.0
        %682 = vmatpush.msra.mxu0 0.0
        %v683 = vand.u32 %v461, 4294901760
        %684 = vmatpush.msra.mxu0 %v683
        %v685 = vand.u32 %v460, 4294901760
        %686 = vmatpush.msra.mxu0 %v685
        %v687 = vand.u32 %v459, 4294901760
        %688 = vmatpush.msra.mxu0 %v687
        %v689 = vand.u32 %v458, 4294901760
        %690 = vmatpush.msra.mxu0 %v689
        %v691 = vand.u32 %v457, 4294901760
        %692 = vmatpush.msra.mxu0 %v691
        %v693 = vand.u32 %v456, 4294901760
        %694 = vmatpush.msra.mxu0 %v693
        %v695 = vand.u32 %v455, 4294901760
        %696 = vmatpush.msra.mxu0 %v695
        %v697 = vand.u32 %v454, 4294901760
        %698 = vmatpush.msra.mxu0 %v697
        %v699 = vand.u32 %v465, 4294901760
        %700 = vmatmul.f32.gmra.mxu0 %v699
        %v701 = vpop.f32.mrf.mxu0
        %v702 = vadd.f32 %v673, %v701
        %703 = vdwg.mxu0
        %704 = vrot.lane.b32.xlu0 %v463, 64
        %v705 = vpop.permute.xlu0 %704
        %v706 = vsel %vm464, %v705, 0
        %708 = vmatpush.msra.mxu0 0.0
        %709 = vmatpush.msra.mxu0 0.0
        %710 = vmatpush.msra.mxu0 0.0
        %711 = vmatpush.msra.mxu0 0.0
        %712 = vmatpush.msra.mxu0 0.0
        %713 = vmatpush.msra.mxu0 0.0
        %714 = vmatpush.msra.mxu0 0.0
        %715 = vmatpush.msra.mxu0 0.0
        %v716 = vand.u32 %v461, 4294901760
        %717 = vmatpush.msra.mxu0 %v716
        %v718 = vand.u32 %v460, 4294901760
        %719 = vmatpush.msra.mxu0 %v718
        %v720 = vand.u32 %v459, 4294901760
        %721 = vmatpush.msra.mxu0 %v720
        %v722 = vand.u32 %v458, 4294901760
        %723 = vmatpush.msra.mxu0 %v722
        %v724 = vand.u32 %v457, 4294901760
        %725 = vmatpush.msra.mxu0 %v724
        %v726 = vand.u32 %v456, 4294901760
        %727 = vmatpush.msra.mxu0 %v726
        %v728 = vand.u32 %v455, 4294901760
        %729 = vmatpush.msra.mxu0 %v728
        %v730 = vand.u32 %v454, 4294901760
        %731 = vmatpush.msra.mxu0 %v730
        %v732 = vand.u32 %v706, 4294901760
        %v733 = vsub.f32 %v706, %v732
        %v734 = vand.u32 %v733, 4294901760
        %v735 = vsub.f32 %v733, %v734
        %v736 = vand.u32 %v735, 4294901760
        %737 = vmatmul.f32.gmra.mxu0 %v736
        %v738 = vpop.f32.mrf.mxu0
        %v739 = vadd.f32 0.0, %v738
        %740 = vdwg.mxu0
        %741 = vmatpush.msra.mxu0 0.0
        %742 = vmatpush.msra.mxu0 0.0
        %743 = vmatpush.msra.mxu0 0.0
        %744 = vmatpush.msra.mxu0 0.0
        %745 = vmatpush.msra.mxu0 0.0
        %746 = vmatpush.msra.mxu0 0.0
        %747 = vmatpush.msra.mxu0 0.0
        %748 = vmatpush.msra.mxu0 0.0
        %v749 = vand.u32 %v461, 4294901760
        %v750 = vsub.f32 %v461, %v749
        %v751 = vand.u32 %v750, 4294901760
        %v752 = vsub.f32 %v750, %v751
        %v753 = vand.u32 %v752, 4294901760
        %754 = vmatpush.msra.mxu0 %v753
        %v755 = vand.u32 %v460, 4294901760
        %v756 = vsub.f32 %v460, %v755
        %v757 = vand.u32 %v756, 4294901760
        %v758 = vsub.f32 %v756, %v757
        %v759 = vand.u32 %v758, 4294901760
        %760 = vmatpush.msra.mxu0 %v759
        %v761 = vand.u32 %v459, 4294901760
        %v762 = vsub.f32 %v459, %v761
        %v763 = vand.u32 %v762, 4294901760
        %v764 = vsub.f32 %v762, %v763
        %v765 = vand.u32 %v764, 4294901760
        %766 = vmatpush.msra.mxu0 %v765
        %v767 = vand.u32 %v458, 4294901760
        %v768 = vsub.f32 %v458, %v767
        %v769 = vand.u32 %v768, 4294901760
        %v770 = vsub.f32 %v768, %v769
        %v771 = vand.u32 %v770, 4294901760
        %772 = vmatpush.msra.mxu0 %v771
        %v773 = vand.u32 %v457, 4294901760
        %v774 = vsub.f32 %v457, %v773
        %v775 = vand.u32 %v774, 4294901760
        %v776 = vsub.f32 %v774, %v775
        %v777 = vand.u32 %v776, 4294901760
        %778 = vmatpush.msra.mxu0 %v777
        %v779 = vand.u32 %v456, 4294901760
        %v780 = vsub.f32 %v456, %v779
        %v781 = vand.u32 %v780, 4294901760
        %v782 = vsub.f32 %v780, %v781
        %v783 = vand.u32 %v782, 4294901760
        %784 = vmatpush.msra.mxu0 %v783
        %v785 = vand.u32 %v455, 4294901760
        %v786 = vsub.f32 %v455, %v785
        %v787 = vand.u32 %v786, 4294901760
        %v788 = vsub.f32 %v786, %v787
        %v789 = vand.u32 %v788, 4294901760
        %790 = vmatpush.msra.mxu0 %v789
        %v791 = vand.u32 %v454, 4294901760
        %v792 = vsub.f32 %v454, %v791
        %v793 = vand.u32 %v792, 4294901760
        %v794 = vsub.f32 %v792, %v793
        %v795 = vand.u32 %v794, 4294901760
        %796 = vmatpush.msra.mxu0 %v795
        %v797 = vand.u32 %v706, 4294901760
        %798 = vmatmul.f32.gmra.mxu0 %v797
        %v799 = vpop.f32.mrf.mxu0
        %v800 = vadd.f32 %v739, %v799
        %801 = vdwg.mxu0
        %802 = vmatpush.msra.mxu0 0.0
        %803 = vmatpush.msra.mxu0 0.0
        %804 = vmatpush.msra.mxu0 0.0
        %805 = vmatpush.msra.mxu0 0.0
        %806 = vmatpush.msra.mxu0 0.0
        %807 = vmatpush.msra.mxu0 0.0
        %808 = vmatpush.msra.mxu0 0.0
        %809 = vmatpush.msra.mxu0 0.0
        %v810 = vand.u32 %v461, 4294901760
        %v811 = vsub.f32 %v461, %v810
        %812 = vmatpush.msra.mxu0 %v811
        %v813 = vand.u32 %v460, 4294901760
        %v814 = vsub.f32 %v460, %v813
        %815 = vmatpush.msra.mxu0 %v814
        %v816 = vand.u32 %v459, 4294901760
        %v817 = vsub.f32 %v459, %v816
        %818 = vmatpush.msra.mxu0 %v817
        %v819 = vand.u32 %v458, 4294901760
        %v820 = vsub.f32 %v458, %v819
        %821 = vmatpush.msra.mxu0 %v820
        %v822 = vand.u32 %v457, 4294901760
        %v823 = vsub.f32 %v457, %v822
        %824 = vmatpush.msra.mxu0 %v823
        %v825 = vand.u32 %v456, 4294901760
        %v826 = vsub.f32 %v456, %v825
        %827 = vmatpush.msra.mxu0 %v826
        %v828 = vand.u32 %v455, 4294901760
        %v829 = vsub.f32 %v455, %v828
        %830 = vmatpush.msra.mxu0 %v829
        %v831 = vand.u32 %v454, 4294901760
        %v832 = vsub.f32 %v454, %v831
        %833 = vmatpush.msra.mxu0 %v832
        %v834 = vand.u32 %v706, 4294901760
        %v835 = vsub.f32 %v706, %v834
        %836 = vmatmul.f32.gmra.mxu0 %v835
        %v837 = vpop.f32.mrf.mxu0
        %v838 = vadd.f32 %v800, %v837
        %839 = vdwg.mxu0
        %840 = vmatpush.msra.mxu0 0.0
        %841 = vmatpush.msra.mxu0 0.0
        %842 = vmatpush.msra.mxu0 0.0
        %843 = vmatpush.msra.mxu0 0.0
        %844 = vmatpush.msra.mxu0 0.0
        %845 = vmatpush.msra.mxu0 0.0
        %846 = vmatpush.msra.mxu0 0.0
        %847 = vmatpush.msra.mxu0 0.0
        %v848 = vand.u32 %v461, 4294901760
        %849 = vmatpush.msra.mxu0 %v848
        %v850 = vand.u32 %v460, 4294901760
        %851 = vmatpush.msra.mxu0 %v850
        %v852 = vand.u32 %v459, 4294901760
        %853 = vmatpush.msra.mxu0 %v852
        %v854 = vand.u32 %v458, 4294901760
        %855 = vmatpush.msra.mxu0 %v854
        %v856 = vand.u32 %v457, 4294901760
        %857 = vmatpush.msra.mxu0 %v856
        %v858 = vand.u32 %v456, 4294901760
        %859 = vmatpush.msra.mxu0 %v858
        %v860 = vand.u32 %v455, 4294901760
        %861 = vmatpush.msra.mxu0 %v860
        %v862 = vand.u32 %v454, 4294901760
        %863 = vmatpush.msra.mxu0 %v862
        %v864 = vand.u32 %v706, 4294901760
        %v865 = vsub.f32 %v706, %v864
        %v866 = vand.u32 %v865, 4294901760
        %867 = vmatmul.f32.gmra.mxu0 %v866
        %v868 = vpop.f32.mrf.mxu0
        %v869 = vadd.f32 %v838, %v868
        %870 = vdwg.mxu0
        %871 = vmatpush.msra.mxu0 0.0
        %872 = vmatpush.msra.mxu0 0.0
        %873 = vmatpush.msra.mxu0 0.0
        %874 = vmatpush.msra.mxu0 0.0
        %875 = vmatpush.msra.mxu0 0.0
        %876 = vmatpush.msra.mxu0 0.0
        %877 = vmatpush.msra.mxu0 0.0
        %878 = vmatpush.msra.mxu0 0.0
        %v879 = vand.u32 %v461, 4294901760
        %v880 = vsub.f32 %v461, %v879
        %v881 = vand.u32 %v880, 4294901760
        %882 = vmatpush.msra.mxu0 %v881
        %v883 = vand.u32 %v460, 4294901760
        %v884 = vsub.f32 %v460, %v883
        %v885 = vand.u32 %v884, 4294901760
        %886 = vmatpush.msra.mxu0 %v885
        %v887 = vand.u32 %v459, 4294901760
        %v888 = vsub.f32 %v459, %v887
        %v889 = vand.u32 %v888, 4294901760
        %890 = vmatpush.msra.mxu0 %v889
        %v891 = vand.u32 %v458, 4294901760
        %v892 = vsub.f32 %v458, %v891
        %v893 = vand.u32 %v892, 4294901760
        %894 = vmatpush.msra.mxu0 %v893
        %v895 = vand.u32 %v457, 4294901760
        %v896 = vsub.f32 %v457, %v895
        %v897 = vand.u32 %v896, 4294901760
        %898 = vmatpush.msra.mxu0 %v897
        %v899 = vand.u32 %v456, 4294901760
        %v900 = vsub.f32 %v456, %v899
        %v901 = vand.u32 %v900, 4294901760
        %902 = vmatpush.msra.mxu0 %v901
        %v903 = vand.u32 %v455, 4294901760
        %v904 = vsub.f32 %v455, %v903
        %v905 = vand.u32 %v904, 4294901760
        %906 = vmatpush.msra.mxu0 %v905
        %v907 = vand.u32 %v454, 4294901760
        %v908 = vsub.f32 %v454, %v907
        %v909 = vand.u32 %v908, 4294901760
        %910 = vmatpush.msra.mxu0 %v909
        %v911 = vand.u32 %v706, 4294901760
        %912 = vmatmul.f32.gmra.mxu0 %v911
        %v913 = vpop.f32.mrf.mxu0
        %v914 = vadd.f32 %v869, %v913
        %915 = vdwg.mxu0
        %916 = vmatpush.msra.mxu0 0.0
        %917 = vmatpush.msra.mxu0 0.0
        %918 = vmatpush.msra.mxu0 0.0
        %919 = vmatpush.msra.mxu0 0.0
        %920 = vmatpush.msra.mxu0 0.0
        %921 = vmatpush.msra.mxu0 0.0
        %922 = vmatpush.msra.mxu0 0.0
        %923 = vmatpush.msra.mxu0 0.0
        %v924 = vand.u32 %v461, 4294901760
        %925 = vmatpush.msra.mxu0 %v924
        %v926 = vand.u32 %v460, 4294901760
        %927 = vmatpush.msra.mxu0 %v926
        %v928 = vand.u32 %v459, 4294901760
        %929 = vmatpush.msra.mxu0 %v928
        %v930 = vand.u32 %v458, 4294901760
        %931 = vmatpush.msra.mxu0 %v930
        %v932 = vand.u32 %v457, 4294901760
        %933 = vmatpush.msra.mxu0 %v932
        %v934 = vand.u32 %v456, 4294901760
        %935 = vmatpush.msra.mxu0 %v934
        %v936 = vand.u32 %v455, 4294901760
        %937 = vmatpush.msra.mxu0 %v936
        %v938 = vand.u32 %v454, 4294901760
        %939 = vmatpush.msra.mxu0 %v938
        %v940 = vand.u32 %v706, 4294901760
        %941 = vmatmul.f32.gmra.mxu0 %v940
        %v942 = vpop.f32.mrf.mxu0
        %v943 = vadd.f32 %v914, %v942
        %944 = vdwg.mxu0
        %946 = vrot.lane.b32.xlu0 %v943, 32
        %v947 = vpop.permute.xlu0 %946
        %vm949 = vcmask 261120
        %v950 = vsel %vm949, %v702, %v947
        %v951 = vld [vmem:[%s3] sm:$0xff]
        %v952 = vld [vmem:[%s7] sm:$0x1]
        %v954 = vperm.slane %v952, 0
        %vm956 = vcmask 31744
        %v958 = vsel %vm956, %v951, 0
        %vm960 = vcmask 1043456
        %v962 = vsel %vm960, %v950, 0
        %964 = vmatpush.msra.mxu0 0.0
        %965 = vmatpush.msra.mxu0 0.0
        %966 = vmatpush.msra.mxu0 0.0
        %967 = vmatpush.msra.mxu0 0.0
        %968 = vmatpush.msra.mxu0 0.0
        %969 = vmatpush.msra.mxu0 0.0
        %970 = vmatpush.msra.mxu0 0.0
        %971 = vmatpush.msra.mxu0 0.0
        %972 = vmatpush.msra.mxu0 0.0
        %973 = vmatpush.msra.mxu0 0.0
        %974 = vmatpush.msra.mxu0 0.0
        %975 = vmatpush.msra.mxu0 0.0
        %976 = vmatpush.msra.mxu0 0.0
        %977 = vmatpush.msra.mxu0 0.0
        %978 = vmatpush.msra.mxu0 0.0
        %v979 = vand.u32 %v962, 4294901760
        %980 = vmatpush.msra.mxu0 %v979
        %v981 = vand.u32 %v958, 4294901760
        %v982 = vsub.f32 %v958, %v981
        %v983 = vand.u32 %v982, 4294901760
        %v984 = vsub.f32 %v982, %v983
        %v985 = vand.u32 %v984, 4294901760
        %986 = vmatmul.f32.gmra.mxu0 %v985
        %v987 = vpop.f32.mrf.mxu0
        %v988 = vadd.f32 %v954, %v987
        %989 = vdwg.mxu0
        %990 = vmatpush.msra.mxu0 0.0
        %991 = vmatpush.msra.mxu0 0.0
        %992 = vmatpush.msra.mxu0 0.0
        %993 = vmatpush.msra.mxu0 0.0
        %994 = vmatpush.msra.mxu0 0.0
        %995 = vmatpush.msra.mxu0 0.0
        %996 = vmatpush.msra.mxu0 0.0
        %997 = vmatpush.msra.mxu0 0.0
        %998 = vmatpush.msra.mxu0 0.0
        %999 = vmatpush.msra.mxu0 0.0
        %1000 = vmatpush.msra.mxu0 0.0
        %1001 = vmatpush.msra.mxu0 0.0
        %1002 = vmatpush.msra.mxu0 0.0
        %1003 = vmatpush.msra.mxu0 0.0
        %1004 = vmatpush.msra.mxu0 0.0
        %v1005 = vand.u32 %v962, 4294901760
        %v1006 = vsub.f32 %v962, %v1005
        %v1007 = vand.u32 %v1006, 4294901760
        %v1008 = vsub.f32 %v1006, %v1007
        %v1009 = vand.u32 %v1008, 4294901760
        %1010 = vmatpush.msra.mxu0 %v1009
        %v1011 = vand.u32 %v958, 4294901760
        %1012 = vmatmul.f32.gmra.mxu0 %v1011
        %v1013 = vpop.f32.mrf.mxu0
        %v1014 = vadd.f32 %v988, %v1013
        %1015 = vdwg.mxu0
        %1016 = vmatpush.msra.mxu0 0.0
        %1017 = vmatpush.msra.mxu0 0.0
        %1018 = vmatpush.msra.mxu0 0.0
        %1019 = vmatpush.msra.mxu0 0.0
        %1020 = vmatpush.msra.mxu0 0.0
        %1021 = vmatpush.msra.mxu0 0.0
        %1022 = vmatpush.msra.mxu0 0.0
        %1023 = vmatpush.msra.mxu0 0.0
        %1024 = vmatpush.msra.mxu0 0.0
        %1025 = vmatpush.msra.mxu0 0.0
        %1026 = vmatpush.msra.mxu0 0.0
        %1027 = vmatpush.msra.mxu0 0.0
        %1028 = vmatpush.msra.mxu0 0.0
        %1029 = vmatpush.msra.mxu0 0.0
        %1030 = vmatpush.msra.mxu0 0.0
        %v1031 = vand.u32 %v962, 4294901760
        %v1032 = vsub.f32 %v962, %v1031
        %1033 = vmatpush.msra.mxu0 %v1032
        %v1034 = vand.u32 %v958, 4294901760
        %v1035 = vsub.f32 %v958, %v1034
        %1036 = vmatmul.f32.gmra.mxu0 %v1035
        %v1037 = vpop.f32.mrf.mxu0
        %v1038 = vadd.f32 %v1014, %v1037
        %1039 = vdwg.mxu0
        %1040 = vmatpush.msra.mxu0 0.0
        %1041 = vmatpush.msra.mxu0 0.0
        %1042 = vmatpush.msra.mxu0 0.0
        %1043 = vmatpush.msra.mxu0 0.0
        %1044 = vmatpush.msra.mxu0 0.0
        %1045 = vmatpush.msra.mxu0 0.0
        %1046 = vmatpush.msra.mxu0 0.0
        %1047 = vmatpush.msra.mxu0 0.0
        %1048 = vmatpush.msra.mxu0 0.0
        %1049 = vmatpush.msra.mxu0 0.0
        %1050 = vmatpush.msra.mxu0 0.0
        %1051 = vmatpush.msra.mxu0 0.0
        %1052 = vmatpush.msra.mxu0 0.0
        %1053 = vmatpush.msra.mxu0 0.0
        %1054 = vmatpush.msra.mxu0 0.0
        %v1055 = vand.u32 %v962, 4294901760
        %1056 = vmatpush.msra.mxu0 %v1055
        %v1057 = vand.u32 %v958, 4294901760
        %v1058 = vsub.f32 %v958, %v1057
        %v1059 = vand.u32 %v1058, 4294901760
        %1060 = vmatmul.f32.gmra.mxu0 %v1059
        %v1061 = vpop.f32.mrf.mxu0
        %v1062 = vadd.f32 %v1038, %v1061
        %1063 = vdwg.mxu0
        %1064 = vmatpush.msra.mxu0 0.0
        %1065 = vmatpush.msra.mxu0 0.0
        %1066 = vmatpush.msra.mxu0 0.0
        %1067 = vmatpush.msra.mxu0 0.0
        %1068 = vmatpush.msra.mxu0 0.0
        %1069 = vmatpush.msra.mxu0 0.0
        %1070 = vmatpush.msra.mxu0 0.0
        %1071 = vmatpush.msra.mxu0 0.0
        %1072 = vmatpush.msra.mxu0 0.0
        %1073 = vmatpush.msra.mxu0 0.0
        %1074 = vmatpush.msra.mxu0 0.0
        %1075 = vmatpush.msra.mxu0 0.0
        %1076 = vmatpush.msra.mxu0 0.0
        %1077 = vmatpush.msra.mxu0 0.0
        %1078 = vmatpush.msra.mxu0 0.0
        %v1079 = vand.u32 %v962, 4294901760
        %v1080 = vsub.f32 %v962, %v1079
        %v1081 = vand.u32 %v1080, 4294901760
        %1082 = vmatpush.msra.mxu0 %v1081
        %v1083 = vand.u32 %v958, 4294901760
        %1084 = vmatmul.f32.gmra.mxu0 %v1083
        %v1085 = vpop.f32.mrf.mxu0
        %v1086 = vadd.f32 %v1062, %v1085
        %1087 = vdwg.mxu0
        %1088 = vmatpush.msra.mxu0 0.0
        %1089 = vmatpush.msra.mxu0 0.0
        %1090 = vmatpush.msra.mxu0 0.0
        %1091 = vmatpush.msra.mxu0 0.0
        %1092 = vmatpush.msra.mxu0 0.0
        %1093 = vmatpush.msra.mxu0 0.0
        %1094 = vmatpush.msra.mxu0 0.0
        %1095 = vmatpush.msra.mxu0 0.0
        %1096 = vmatpush.msra.mxu0 0.0
        %1097 = vmatpush.msra.mxu0 0.0
        %1098 = vmatpush.msra.mxu0 0.0
        %1099 = vmatpush.msra.mxu0 0.0
        %1100 = vmatpush.msra.mxu0 0.0
        %1101 = vmatpush.msra.mxu0 0.0
        %1102 = vmatpush.msra.mxu0 0.0
        %v1103 = vand.u32 %v962, 4294901760
        %1104 = vmatpush.msra.mxu0 %v1103
        %v1105 = vand.u32 %v958, 4294901760
        %1106 = vmatmul.f32.gmra.mxu0 %v1105
        %v1107 = vpop.f32.mrf.mxu0
        %v1108 = vadd.f32 %v1086, %v1107
        %1109 = vdwg.mxu0
        %vm1110 = vcmp.gt.f32.partialorder %v1108, 0.0
        %v1111 = vmul.f32 %v1108, 0.01
        %v1112 = vsel %vm1110, %v1108, %v1111
        %v1113 = vld [vmem:[%s6] sm:$0xff]
        %v1114 = vld [vmem:[%s6 + $0x8] sm:$0xff]
        %v1115 = vld [vmem:[%s6 + $0x10] sm:$0xff]
        %v1116 = vld [vmem:[%s6 + $0x18] sm:$0xff]
        %v1118 = vsel %vm949, %v1112, 0
        %1120 = vmatpush.msra.mxu0 0.0
        %1121 = vmatpush.msra.mxu0 0.0
        %1122 = vmatpush.msra.mxu0 0.0
        %1123 = vmatpush.msra.mxu0 0.0
        %1124 = vmatpush.msra.mxu0 0.0
        %1125 = vmatpush.msra.mxu0 0.0
        %1126 = vmatpush.msra.mxu0 0.0
        %1127 = vmatpush.msra.mxu0 0.0
        %1128 = vmatpush.msra.mxu0 0.0
        %1129 = vmatpush.msra.mxu0 0.0
        %1130 = vmatpush.msra.mxu0 0.0
        %1131 = vmatpush.msra.mxu0 0.0
        %v1132 = vand.u32 %v1116, 4294901760
        %1133 = vmatpush.msra.mxu0 %v1132
        %v1134 = vand.u32 %v1115, 4294901760
        %1135 = vmatpush.msra.mxu0 %v1134
        %v1136 = vand.u32 %v1114, 4294901760
        %1137 = vmatpush.msra.mxu0 %v1136
        %v1138 = vand.u32 %v1113, 4294901760
        %1139 = vmatpush.msra.mxu0 %v1138
        %v1140 = vand.u32 %v1118, 4294901760
        %v1141 = vsub.f32 %v1118, %v1140
        %v1142 = vand.u32 %v1141, 4294901760
        %v1143 = vsub.f32 %v1141, %v1142
        %v1144 = vand.u32 %v1143, 4294901760
        %1145 = vmatmul.f32.gmra.mxu0 %v1144
        %v1146 = vpop.f32.mrf.mxu0
        %v1147 = vadd.f32 0.0, %v1146
        %1148 = vdwg.mxu0
        %1149 = vmatpush.msra.mxu0 0.0
        %1150 = vmatpush.msra.mxu0 0.0
        %1151 = vmatpush.msra.mxu0 0.0
        %1152 = vmatpush.msra.mxu0 0.0
        %1153 = vmatpush.msra.mxu0 0.0
        %1154 = vmatpush.msra.mxu0 0.0
        %1155 = vmatpush.msra.mxu0 0.0
        %1156 = vmatpush.msra.mxu0 0.0
        %1157 = vmatpush.msra.mxu0 0.0
        %1158 = vmatpush.msra.mxu0 0.0
        %1159 = vmatpush.msra.mxu0 0.0
        %1160 = vmatpush.msra.mxu0 0.0
        %v1161 = vand.u32 %v1116, 4294901760
        %v1162 = vsub.f32 %v1116, %v1161
        %v1163 = vand.u32 %v1162, 4294901760
        %v1164 = vsub.f32 %v1162, %v1163
        %v1165 = vand.u32 %v1164, 4294901760
        %1166 = vmatpush.msra.mxu0 %v1165
        %v1167 = vand.u32 %v1115, 4294901760
        %v1168 = vsub.f32 %v1115, %v1167
        %v1169 = vand.u32 %v1168, 4294901760
        %v1170 = vsub.f32 %v1168, %v1169
        %v1171 = vand.u32 %v1170, 4294901760
        %1172 = vmatpush.msra.mxu0 %v1171
        %v1173 = vand.u32 %v1114, 4294901760
        %v1174 = vsub.f32 %v1114, %v1173
        %v1175 = vand.u32 %v1174, 4294901760
        %v1176 = vsub.f32 %v1174, %v1175
        %v1177 = vand.u32 %v1176, 4294901760
        %1178 = vmatpush.msra.mxu0 %v1177
        %v1179 = vand.u32 %v1113, 4294901760
        %v1180 = vsub.f32 %v1113, %v1179
        %v1181 = vand.u32 %v1180, 4294901760
        %v1182 = vsub.f32 %v1180, %v1181
        %v1183 = vand.u32 %v1182, 4294901760
        %1184 = vmatpush.msra.mxu0 %v1183
        %v1185 = vand.u32 %v1118, 4294901760
        %1186 = vmatmul.f32.gmra.mxu0 %v1185
        %v1187 = vpop.f32.mrf.mxu0
        %v1188 = vadd.f32 %v1147, %v1187
        %1189 = vdwg.mxu0
        %1190 = vmatpush.msra.mxu0 0.0
        %1191 = vmatpush.msra.mxu0 0.0
        %1192 = vmatpush.msra.mxu0 0.0
        %1193 = vmatpush.msra.mxu0 0.0
        %1194 = vmatpush.msra.mxu0 0.0
        %1195 = vmatpush.msra.mxu0 0.0
        %1196 = vmatpush.msra.mxu0 0.0
        %1197 = vmatpush.msra.mxu0 0.0
        %1198 = vmatpush.msra.mxu0 0.0
        %1199 = vmatpush.msra.mxu0 0.0
        %1200 = vmatpush.msra.mxu0 0.0
        %1201 = vmatpush.msra.mxu0 0.0
        %v1202 = vand.u32 %v1116, 4294901760
        %v1203 = vsub.f32 %v1116, %v1202
        %1204 = vmatpush.msra.mxu0 %v1203
        %v1205 = vand.u32 %v1115, 4294901760
        %v1206 = vsub.f32 %v1115, %v1205
        %1207 = vmatpush.msra.mxu0 %v1206
        %v1208 = vand.u32 %v1114, 4294901760
        %v1209 = vsub.f32 %v1114, %v1208
        %1210 = vmatpush.msra.mxu0 %v1209
        %v1211 = vand.u32 %v1113, 4294901760
        %v1212 = vsub.f32 %v1113, %v1211
        %1213 = vmatpush.msra.mxu0 %v1212
        %v1214 = vand.u32 %v1118, 4294901760
        %v1215 = vsub.f32 %v1118, %v1214
        %1216 = vmatmul.f32.gmra.mxu0 %v1215
        %v1217 = vpop.f32.mrf.mxu0
        %v1218 = vadd.f32 %v1188, %v1217
        %1219 = vdwg.mxu0
        %1220 = vmatpush.msra.mxu0 0.0
        %1221 = vmatpush.msra.mxu0 0.0
        %1222 = vmatpush.msra.mxu0 0.0
        %1223 = vmatpush.msra.mxu0 0.0
        %1224 = vmatpush.msra.mxu0 0.0
        %1225 = vmatpush.msra.mxu0 0.0
        %1226 = vmatpush.msra.mxu0 0.0
        %1227 = vmatpush.msra.mxu0 0.0
        %1228 = vmatpush.msra.mxu0 0.0
        %1229 = vmatpush.msra.mxu0 0.0
        %1230 = vmatpush.msra.mxu0 0.0
        %1231 = vmatpush.msra.mxu0 0.0
        %v1232 = vand.u32 %v1116, 4294901760
        %1233 = vmatpush.msra.mxu0 %v1232
        %v1234 = vand.u32 %v1115, 4294901760
        %1235 = vmatpush.msra.mxu0 %v1234
        %v1236 = vand.u32 %v1114, 4294901760
        %1237 = vmatpush.msra.mxu0 %v1236
        %v1238 = vand.u32 %v1113, 4294901760
        %1239 = vmatpush.msra.mxu0 %v1238
        %v1240 = vand.u32 %v1118, 4294901760
        %v1241 = vsub.f32 %v1118, %v1240
        %v1242 = vand.u32 %v1241, 4294901760
        %1243 = vmatmul.f32.gmra.mxu0 %v1242
        %v1244 = vpop.f32.mrf.mxu0
        %v1245 = vadd.f32 %v1218, %v1244
        %1246 = vdwg.mxu0
        %1247 = vmatpush.msra.mxu0 0.0
        %1248 = vmatpush.msra.mxu0 0.0
        %1249 = vmatpush.msra.mxu0 0.0
        %1250 = vmatpush.msra.mxu0 0.0
        %1251 = vmatpush.msra.mxu0 0.0
        %1252 = vmatpush.msra.mxu0 0.0
        %1253 = vmatpush.msra.mxu0 0.0
        %1254 = vmatpush.msra.mxu0 0.0
        %1255 = vmatpush.msra.mxu0 0.0
        %1256 = vmatpush.msra.mxu0 0.0
        %1257 = vmatpush.msra.mxu0 0.0
        %1258 = vmatpush.msra.mxu0 0.0
        %v1259 = vand.u32 %v1116, 4294901760
        %v1260 = vsub.f32 %v1116, %v1259
        %v1261 = vand.u32 %v1260, 4294901760
        %1262 = vmatpush.msra.mxu0 %v1261
        %v1263 = vand.u32 %v1115, 4294901760
        %v1264 = vsub.f32 %v1115, %v1263
        %v1265 = vand.u32 %v1264, 4294901760
        %1266 = vmatpush.msra.mxu0 %v1265
        %v1267 = vand.u32 %v1114, 4294901760
        %v1268 = vsub.f32 %v1114, %v1267
        %v1269 = vand.u32 %v1268, 4294901760
        %1270 = vmatpush.msra.mxu0 %v1269
        %v1271 = vand.u32 %v1113, 4294901760
        %v1272 = vsub.f32 %v1113, %v1271
        %v1273 = vand.u32 %v1272, 4294901760
        %1274 = vmatpush.msra.mxu0 %v1273
        %v1275 = vand.u32 %v1118, 4294901760
        %1276 = vmatmul.f32.gmra.mxu0 %v1275
        %v1277 = vpop.f32.mrf.mxu0
        %v1278 = vadd.f32 %v1245, %v1277
        %1279 = vdwg.mxu0
        %1280 = vmatpush.msra.mxu0 0.0
        %1281 = vmatpush.msra.mxu0 0.0
        %1282 = vmatpush.msra.mxu0 0.0
        %1283 = vmatpush.msra.mxu0 0.0
        %1284 = vmatpush.msra.mxu0 0.0
        %1285 = vmatpush.msra.mxu0 0.0
        %1286 = vmatpush.msra.mxu0 0.0
        %1287 = vmatpush.msra.mxu0 0.0
        %1288 = vmatpush.msra.mxu0 0.0
        %1289 = vmatpush.msra.mxu0 0.0
        %1290 = vmatpush.msra.mxu0 0.0
        %1291 = vmatpush.msra.mxu0 0.0
        %v1292 = vand.u32 %v1116, 4294901760
        %1293 = vmatpush.msra.mxu0 %v1292
        %v1294 = vand.u32 %v1115, 4294901760
        %1295 = vmatpush.msra.mxu0 %v1294
        %v1296 = vand.u32 %v1114, 4294901760
        %1297 = vmatpush.msra.mxu0 %v1296
        %v1298 = vand.u32 %v1113, 4294901760
        %1299 = vmatpush.msra.mxu0 %v1298
        %v1300 = vand.u32 %v1118, 4294901760
        %1301 = vmatmul.f32.gmra.mxu0 %v1300
        %v1302 = vpop.f32.mrf.mxu0
        %v1303 = vadd.f32 %v1278, %v1302
        %1304 = vdwg.mxu0
        %1305 = vrot.lane.b32.xlu0 %v1112, 96
        %v1306 = vpop.permute.xlu0 %1305
        %v1307 = vsel %vm949, %v1306, 0
        %1309 = vmatpush.msra.mxu0 0.0
        %1310 = vmatpush.msra.mxu0 0.0
        %1311 = vmatpush.msra.mxu0 0.0
        %1312 = vmatpush.msra.mxu0 0.0
        %1313 = vmatpush.msra.mxu0 0.0
        %1314 = vmatpush.msra.mxu0 0.0
        %1315 = vmatpush.msra.mxu0 0.0
        %1316 = vmatpush.msra.mxu0 0.0
        %1317 = vmatpush.msra.mxu0 0.0
        %1318 = vmatpush.msra.mxu0 0.0
        %1319 = vmatpush.msra.mxu0 0.0
        %1320 = vmatpush.msra.mxu0 0.0
        %v1321 = vand.u32 %v1116, 4294901760
        %1322 = vmatpush.msra.mxu0 %v1321
        %v1323 = vand.u32 %v1115, 4294901760
        %1324 = vmatpush.msra.mxu0 %v1323
        %v1325 = vand.u32 %v1114, 4294901760
        %1326 = vmatpush.msra.mxu0 %v1325
        %v1327 = vand.u32 %v1113, 4294901760
        %1328 = vmatpush.msra.mxu0 %v1327
        %v1329 = vand.u32 %v1307, 4294901760
        %v1330 = vsub.f32 %v1307, %v1329
        %v1331 = vand.u32 %v1330, 4294901760
        %v1332 = vsub.f32 %v1330, %v1331
        %v1333 = vand.u32 %v1332, 4294901760
        %1334 = vmatmul.f32.gmra.mxu0 %v1333
        %v1335 = vpop.f32.mrf.mxu0
        %v1336 = vadd.f32 0.0, %v1335
        %1337 = vdwg.mxu0
        %1338 = vmatpush.msra.mxu0 0.0
        %1339 = vmatpush.msra.mxu0 0.0
        %1340 = vmatpush.msra.mxu0 0.0
        %1341 = vmatpush.msra.mxu0 0.0
        %1342 = vmatpush.msra.mxu0 0.0
        %1343 = vmatpush.msra.mxu0 0.0
        %1344 = vmatpush.msra.mxu0 0.0
        %1345 = vmatpush.msra.mxu0 0.0
        %1346 = vmatpush.msra.mxu0 0.0
        %1347 = vmatpush.msra.mxu0 0.0
        %1348 = vmatpush.msra.mxu0 0.0
        %1349 = vmatpush.msra.mxu0 0.0
        %v1350 = vand.u32 %v1116, 4294901760
        %v1351 = vsub.f32 %v1116, %v1350
        %v1352 = vand.u32 %v1351, 4294901760
        %v1353 = vsub.f32 %v1351, %v1352
        %v1354 = vand.u32 %v1353, 4294901760
        %1355 = vmatpush.msra.mxu0 %v1354
        %v1356 = vand.u32 %v1115, 4294901760
        %v1357 = vsub.f32 %v1115, %v1356
        %v1358 = vand.u32 %v1357, 4294901760
        %v1359 = vsub.f32 %v1357, %v1358
        %v1360 = vand.u32 %v1359, 4294901760
        %1361 = vmatpush.msra.mxu0 %v1360
        %v1362 = vand.u32 %v1114, 4294901760
        %v1363 = vsub.f32 %v1114, %v1362
        %v1364 = vand.u32 %v1363, 4294901760
        %v1365 = vsub.f32 %v1363, %v1364
        %v1366 = vand.u32 %v1365, 4294901760
        %1367 = vmatpush.msra.mxu0 %v1366
        %v1368 = vand.u32 %v1113, 4294901760
        %v1369 = vsub.f32 %v1113, %v1368
        %v1370 = vand.u32 %v1369, 4294901760
        %v1371 = vsub.f32 %v1369, %v1370
        %v1372 = vand.u32 %v1371, 4294901760
        %1373 = vmatpush.msra.mxu0 %v1372
        %v1374 = vand.u32 %v1307, 4294901760
        %1375 = vmatmul.f32.gmra.mxu0 %v1374
        %v1376 = vpop.f32.mrf.mxu0
        %v1377 = vadd.f32 %v1336, %v1376
        %1378 = vdwg.mxu0
        %1379 = vmatpush.msra.mxu0 0.0
        %1380 = vmatpush.msra.mxu0 0.0
        %1381 = vmatpush.msra.mxu0 0.0
        %1382 = vmatpush.msra.mxu0 0.0
        %1383 = vmatpush.msra.mxu0 0.0
        %1384 = vmatpush.msra.mxu0 0.0
        %1385 = vmatpush.msra.mxu0 0.0
        %1386 = vmatpush.msra.mxu0 0.0
        %1387 = vmatpush.msra.mxu0 0.0
        %1388 = vmatpush.msra.mxu0 0.0
        %1389 = vmatpush.msra.mxu0 0.0
        %1390 = vmatpush.msra.mxu0 0.0
        %v1391 = vand.u32 %v1116, 4294901760
        %v1392 = vsub.f32 %v1116, %v1391
        %1393 = vmatpush.msra.mxu0 %v1392
        %v1394 = vand.u32 %v1115, 4294901760
        %v1395 = vsub.f32 %v1115, %v1394
        %1396 = vmatpush.msra.mxu0 %v1395
        %v1397 = vand.u32 %v1114, 4294901760
        %v1398 = vsub.f32 %v1114, %v1397
        %1399 = vmatpush.msra.mxu0 %v1398
        %v1400 = vand.u32 %v1113, 4294901760
        %v1401 = vsub.f32 %v1113, %v1400
        %1402 = vmatpush.msra.mxu0 %v1401
        %v1403 = vand.u32 %v1307, 4294901760
        %v1404 = vsub.f32 %v1307, %v1403
        %1405 = vmatmul.f32.gmra.mxu0 %v1404
        %v1406 = vpop.f32.mrf.mxu0
        %v1407 = vadd.f32 %v1377, %v1406
        %1408 = vdwg.mxu0
        %1409 = vmatpush.msra.mxu0 0.0
        %1410 = vmatpush.msra.mxu0 0.0
        %1411 = vmatpush.msra.mxu0 0.0
        %1412 = vmatpush.msra.mxu0 0.0
        %1413 = vmatpush.msra.mxu0 0.0
        %1414 = vmatpush.msra.mxu0 0.0
        %1415 = vmatpush.msra.mxu0 0.0
        %1416 = vmatpush.msra.mxu0 0.0
        %1417 = vmatpush.msra.mxu0 0.0
        %1418 = vmatpush.msra.mxu0 0.0
        %1419 = vmatpush.msra.mxu0 0.0
        %1420 = vmatpush.msra.mxu0 0.0
        %v1421 = vand.u32 %v1116, 4294901760
        %1422 = vmatpush.msra.mxu0 %v1421
        %v1423 = vand.u32 %v1115, 4294901760
        %1424 = vmatpush.msra.mxu0 %v1423
        %v1425 = vand.u32 %v1114, 4294901760
        %1426 = vmatpush.msra.mxu0 %v1425
        %v1427 = vand.u32 %v1113, 4294901760
        %1428 = vmatpush.msra.mxu0 %v1427
        %v1429 = vand.u32 %v1307, 4294901760
        %v1430 = vsub.f32 %v1307, %v1429
        %v1431 = vand.u32 %v1430, 4294901760
        %1432 = vmatmul.f32.gmra.mxu0 %v1431
        %v1433 = vpop.f32.mrf.mxu0
        %v1434 = vadd.f32 %v1407, %v1433
        %1435 = vdwg.mxu0
        %1436 = vmatpush.msra.mxu0 0.0
        %1437 = vmatpush.msra.mxu0 0.0
        %1438 = vmatpush.msra.mxu0 0.0
        %1439 = vmatpush.msra.mxu0 0.0
        %1440 = vmatpush.msra.mxu0 0.0
        %1441 = vmatpush.msra.mxu0 0.0
        %1442 = vmatpush.msra.mxu0 0.0
        %1443 = vmatpush.msra.mxu0 0.0
        %1444 = vmatpush.msra.mxu0 0.0
        %1445 = vmatpush.msra.mxu0 0.0
        %1446 = vmatpush.msra.mxu0 0.0
        %1447 = vmatpush.msra.mxu0 0.0
        %v1448 = vand.u32 %v1116, 4294901760
        %v1449 = vsub.f32 %v1116, %v1448
        %v1450 = vand.u32 %v1449, 4294901760
        %1451 = vmatpush.msra.mxu0 %v1450
        %v1452 = vand.u32 %v1115, 4294901760
        %v1453 = vsub.f32 %v1115, %v1452
        %v1454 = vand.u32 %v1453, 4294901760
        %1455 = vmatpush.msra.mxu0 %v1454
        %v1456 = vand.u32 %v1114, 4294901760
        %v1457 = vsub.f32 %v1114, %v1456
        %v1458 = vand.u32 %v1457, 4294901760
        %1459 = vmatpush.msra.mxu0 %v1458
        %v1460 = vand.u32 %v1113, 4294901760
        %v1461 = vsub.f32 %v1113, %v1460
        %v1462 = vand.u32 %v1461, 4294901760
        %1463 = vmatpush.msra.mxu0 %v1462
        %v1464 = vand.u32 %v1307, 4294901760
        %1465 = vmatmul.f32.gmra.mxu0 %v1464
        %v1466 = vpop.f32.mrf.mxu0
        %v1467 = vadd.f32 %v1434, %v1466
        %1468 = vdwg.mxu0
        %1469 = vmatpush.msra.mxu0 0.0
        %1470 = vmatpush.msra.mxu0 0.0
        %1471 = vmatpush.msra.mxu0 0.0
        %1472 = vmatpush.msra.mxu0 0.0
        %1473 = vmatpush.msra.mxu0 0.0
        %1474 = vmatpush.msra.mxu0 0.0
        %1475 = vmatpush.msra.mxu0 0.0
        %1476 = vmatpush.msra.mxu0 0.0
        %1477 = vmatpush.msra.mxu0 0.0
        %1478 = vmatpush.msra.mxu0 0.0
        %1479 = vmatpush.msra.mxu0 0.0
        %1480 = vmatpush.msra.mxu0 0.0
        %v1481 = vand.u32 %v1116, 4294901760
        %1482 = vmatpush.msra.mxu0 %v1481
        %v1483 = vand.u32 %v1115, 4294901760
        %1484 = vmatpush.msra.mxu0 %v1483
        %v1485 = vand.u32 %v1114, 4294901760
        %1486 = vmatpush.msra.mxu0 %v1485
        %v1487 = vand.u32 %v1113, 4294901760
        %1488 = vmatpush.msra.mxu0 %v1487
        %v1489 = vand.u32 %v1307, 4294901760
        %1490 = vmatmul.f32.gmra.mxu0 %v1489
        %v1491 = vpop.f32.mrf.mxu0
        %v1492 = vadd.f32 %v1467, %v1491
        %1493 = vdwg.mxu0
        %1495 = vrot.lane.b32.xlu0 %v1492, 16
        %v1496 = vpop.permute.xlu0 %1495
        %vm1498 = vcmask 130048
        %v1499 = vsel %vm1498, %v1303, %v1496
        %v1500 = vld [vmem:[%s4] sm:$0xff]
        %v1501 = vld [vmem:[%s4 + $0x8] sm:$0xff]
        %v1502 = vld [vmem:[%s8] sm:$0x1]
        %v1504 = vperm.slane %v1502, 0
        %vm1506 = vcmask 64512
        %v1508 = vsel %vm1506, %v1500, 0
        %v1511 = vsel %vm1506, %v1501, 0
        %1513 = vmatpush.msra.mxu0 0.0
        %1514 = vmatpush.msra.mxu0 0.0
        %1515 = vmatpush.msra.mxu0 0.0
        %1516 = vmatpush.msra.mxu0 0.0
        %1517 = vmatpush.msra.mxu0 0.0
        %1518 = vmatpush.msra.mxu0 0.0
        %1519 = vmatpush.msra.mxu0 0.0
        %1520 = vmatpush.msra.mxu0 0.0
        %1521 = vmatpush.msra.mxu0 0.0
        %1522 = vmatpush.msra.mxu0 0.0
        %1523 = vmatpush.msra.mxu0 0.0
        %1524 = vmatpush.msra.mxu0 0.0
        %1525 = vmatpush.msra.mxu0 0.0
        %1526 = vmatpush.msra.mxu0 0.0
        %1527 = vmatpush.msra.mxu0 0.0
        %v1528 = vand.u32 %v1499, 4294901760
        %1529 = vmatpush.msra.mxu0 %v1528
        %v1530 = vand.u32 %v1508, 4294901760
        %v1531 = vsub.f32 %v1508, %v1530
        %v1532 = vand.u32 %v1531, 4294901760
        %v1533 = vsub.f32 %v1531, %v1532
        %v1534 = vand.u32 %v1533, 4294901760
        %1535 = vmatmul.f32.gmra.mxu0 %v1534
        %v1536 = vpop.f32.mrf.mxu0
        %v1537 = vadd.f32 %v1504, %v1536
        %v1538 = vand.u32 %v1511, 4294901760
        %v1539 = vsub.f32 %v1511, %v1538
        %v1540 = vand.u32 %v1539, 4294901760
        %v1541 = vsub.f32 %v1539, %v1540
        %v1542 = vand.u32 %v1541, 4294901760
        %1543 = vmatmul.f32.gmra.mxu0 %v1542
        %v1544 = vpop.f32.mrf.mxu0
        %v1545 = vadd.f32 %v1504, %v1544
        %1546 = vdwg.mxu0
        %1547 = vmatpush.msra.mxu0 0.0
        %1548 = vmatpush.msra.mxu0 0.0
        %1549 = vmatpush.msra.mxu0 0.0
        %1550 = vmatpush.msra.mxu0 0.0
        %1551 = vmatpush.msra.mxu0 0.0
        %1552 = vmatpush.msra.mxu0 0.0
        %1553 = vmatpush.msra.mxu0 0.0
        %1554 = vmatpush.msra.mxu0 0.0
        %1555 = vmatpush.msra.mxu0 0.0
        %1556 = vmatpush.msra.mxu0 0.0
        %1557 = vmatpush.msra.mxu0 0.0
        %1558 = vmatpush.msra.mxu0 0.0
        %1559 = vmatpush.msra.mxu0 0.0
        %1560 = vmatpush.msra.mxu0 0.0
        %1561 = vmatpush.msra.mxu0 0.0
        %v1562 = vand.u32 %v1499, 4294901760
        %v1563 = vsub.f32 %v1499, %v1562
        %v1564 = vand.u32 %v1563, 4294901760
        %v1565 = vsub.f32 %v1563, %v1564
        %v1566 = vand.u32 %v1565, 4294901760
        %1567 = vmatpush.msra.mxu0 %v1566
        %v1568 = vand.u32 %v1508, 4294901760
        %1569 = vmatmul.f32.gmra.mxu0 %v1568
        %v1570 = vpop.f32.mrf.mxu0
        %v1571 = vadd.f32 %v1537, %v1570
        %v1572 = vand.u32 %v1511, 4294901760
        %1573 = vmatmul.f32.gmra.mxu0 %v1572
        %v1574 = vpop.f32.mrf.mxu0
        %v1575 = vadd.f32 %v1545, %v1574
        %1576 = vdwg.mxu0
        %1577 = vmatpush.msra.mxu0 0.0
        %1578 = vmatpush.msra.mxu0 0.0
        %1579 = vmatpush.msra.mxu0 0.0
        %1580 = vmatpush.msra.mxu0 0.0
        %1581 = vmatpush.msra.mxu0 0.0
        %1582 = vmatpush.msra.mxu0 0.0
        %1583 = vmatpush.msra.mxu0 0.0
        %1584 = vmatpush.msra.mxu0 0.0
        %1585 = vmatpush.msra.mxu0 0.0
        %1586 = vmatpush.msra.mxu0 0.0
        %1587 = vmatpush.msra.mxu0 0.0
        %1588 = vmatpush.msra.mxu0 0.0
        %1589 = vmatpush.msra.mxu0 0.0
        %1590 = vmatpush.msra.mxu0 0.0
        %1591 = vmatpush.msra.mxu0 0.0
        %v1592 = vand.u32 %v1499, 4294901760
        %v1593 = vsub.f32 %v1499, %v1592
        %1594 = vmatpush.msra.mxu0 %v1593
        %v1595 = vand.u32 %v1508, 4294901760
        %v1596 = vsub.f32 %v1508, %v1595
        %1597 = vmatmul.f32.gmra.mxu0 %v1596
        %v1598 = vpop.f32.mrf.mxu0
        %v1599 = vadd.f32 %v1571, %v1598
        %v1600 = vand.u32 %v1511, 4294901760
        %v1601 = vsub.f32 %v1511, %v1600
        %1602 = vmatmul.f32.gmra.mxu0 %v1601
        %v1603 = vpop.f32.mrf.mxu0
        %v1604 = vadd.f32 %v1575, %v1603
        %1605 = vdwg.mxu0
        %1606 = vmatpush.msra.mxu0 0.0
        %1607 = vmatpush.msra.mxu0 0.0
        %1608 = vmatpush.msra.mxu0 0.0
        %1609 = vmatpush.msra.mxu0 0.0
        %1610 = vmatpush.msra.mxu0 0.0
        %1611 = vmatpush.msra.mxu0 0.0
        %1612 = vmatpush.msra.mxu0 0.0
        %1613 = vmatpush.msra.mxu0 0.0
        %1614 = vmatpush.msra.mxu0 0.0
        %1615 = vmatpush.msra.mxu0 0.0
        %1616 = vmatpush.msra.mxu0 0.0
        %1617 = vmatpush.msra.mxu0 0.0
        %1618 = vmatpush.msra.mxu0 0.0
        %1619 = vmatpush.msra.mxu0 0.0
        %1620 = vmatpush.msra.mxu0 0.0
        %v1621 = vand.u32 %v1499, 4294901760
        %1622 = vmatpush.msra.mxu0 %v1621
        %v1623 = vand.u32 %v1508, 4294901760
        %v1624 = vsub.f32 %v1508, %v1623
        %v1625 = vand.u32 %v1624, 4294901760
        %1626 = vmatmul.f32.gmra.mxu0 %v1625
        %v1627 = vpop.f32.mrf.mxu0
        %v1628 = vadd.f32 %v1599, %v1627
        %v1629 = vand.u32 %v1511, 4294901760
        %v1630 = vsub.f32 %v1511, %v1629
        %v1631 = vand.u32 %v1630, 4294901760
        %1632 = vmatmul.f32.gmra.mxu0 %v1631
        %v1633 = vpop.f32.mrf.mxu0
        %v1634 = vadd.f32 %v1604, %v1633
        %1635 = vdwg.mxu0
        %1636 = vmatpush.msra.mxu0 0.0
        %1637 = vmatpush.msra.mxu0 0.0
        %1638 = vmatpush.msra.mxu0 0.0
        %1639 = vmatpush.msra.mxu0 0.0
        %1640 = vmatpush.msra.mxu0 0.0
        %1641 = vmatpush.msra.mxu0 0.0
        %1642 = vmatpush.msra.mxu0 0.0
        %1643 = vmatpush.msra.mxu0 0.0
        %1644 = vmatpush.msra.mxu0 0.0
        %1645 = vmatpush.msra.mxu0 0.0
        %1646 = vmatpush.msra.mxu0 0.0
        %1647 = vmatpush.msra.mxu0 0.0
        %1648 = vmatpush.msra.mxu0 0.0
        %1649 = vmatpush.msra.mxu0 0.0
        %1650 = vmatpush.msra.mxu0 0.0
        %v1651 = vand.u32 %v1499, 4294901760
        %v1652 = vsub.f32 %v1499, %v1651
        %v1653 = vand.u32 %v1652, 4294901760
        %1654 = vmatpush.msra.mxu0 %v1653
        %v1655 = vand.u32 %v1508, 4294901760
        %1656 = vmatmul.f32.gmra.mxu0 %v1655
        %v1657 = vpop.f32.mrf.mxu0
        %v1658 = vadd.f32 %v1628, %v1657
        %v1659 = vand.u32 %v1511, 4294901760
        %1660 = vmatmul.f32.gmra.mxu0 %v1659
        %v1661 = vpop.f32.mrf.mxu0
        %v1662 = vadd.f32 %v1634, %v1661
        %1663 = vdwg.mxu0
        %1664 = vmatpush.msra.mxu0 0.0
        %1665 = vmatpush.msra.mxu0 0.0
        %1666 = vmatpush.msra.mxu0 0.0
        %1667 = vmatpush.msra.mxu0 0.0
        %1668 = vmatpush.msra.mxu0 0.0
        %1669 = vmatpush.msra.mxu0 0.0
        %1670 = vmatpush.msra.mxu0 0.0
        %1671 = vmatpush.msra.mxu0 0.0
        %1672 = vmatpush.msra.mxu0 0.0
        %1673 = vmatpush.msra.mxu0 0.0
        %1674 = vmatpush.msra.mxu0 0.0
        %1675 = vmatpush.msra.mxu0 0.0
        %1676 = vmatpush.msra.mxu0 0.0
        %1677 = vmatpush.msra.mxu0 0.0
        %1678 = vmatpush.msra.mxu0 0.0
        %v1679 = vand.u32 %v1499, 4294901760
        %1680 = vmatpush.msra.mxu0 %v1679
        %v1681 = vand.u32 %v1508, 4294901760
        %1682 = vmatmul.f32.gmra.mxu0 %v1681
        %v1683 = vpop.f32.mrf.mxu0
        %v1684 = vadd.f32 %v1658, %v1683
        %v1685 = vand.u32 %v1511, 4294901760
        %1686 = vmatmul.f32.gmra.mxu0 %v1685
        %v1687 = vpop.f32.mrf.mxu0
        %v1688 = vadd.f32 %v1662, %v1687
        %1689 = vdwg.mxu0
        %v1690 = vld [vmem:[%s452] sm:$0xff]
        %v1691 = vld [vmem:[%s452 + $0x8] sm:$0xff]
        %v1692 = vld [vmem:[%s9] sm:$0xff]
        %v1693 = vld [vmem:[%s9 + $0x8] sm:$0xff]
        %v1694 = vld [vmem:[%s9 + $0x10] sm:$0xff]
        %v1695 = vld [vmem:[%s9 + $0x18] sm:$0xff]
        %v1696 = vld [vmem:[%s9 + $0x20] sm:$0xff]
        %v1697 = vld [vmem:[%s9 + $0x28] sm:$0xff]
        %v1698 = vld [vmem:[%s9 + $0x30] sm:$0xff]
        %v1699 = vld [vmem:[%s9 + $0x38] sm:$0xff]
        %v1701 = vsel %vm464, %v1690, 0
        %v1704 = vsel %vm464, %v1691, 0
        %1706 = vmatpush.msra.mxu0 0.0
        %1707 = vmatpush.msra.mxu0 0.0
        %1708 = vmatpush.msra.mxu0 0.0
        %1709 = vmatpush.msra.mxu0 0.0
        %1710 = vmatpush.msra.mxu0 0.0
        %1711 = vmatpush.msra.mxu0 0.0
        %1712 = vmatpush.msra.mxu0 0.0
        %1713 = vmatpush.msra.mxu0 0.0
        %v1714 = vand.u32 %v1699, 4294901760
        %1715 = vmatpush.msra.mxu0 %v1714
        %v1716 = vand.u32 %v1698, 4294901760
        %1717 = vmatpush.msra.mxu0 %v1716
        %v1718 = vand.u32 %v1697, 4294901760
        %1719 = vmatpush.msra.mxu0 %v1718
        %v1720 = vand.u32 %v1696, 4294901760
        %1721 = vmatpush.msra.mxu0 %v1720
        %v1722 = vand.u32 %v1695, 4294901760
        %1723 = vmatpush.msra.mxu0 %v1722
        %v1724 = vand.u32 %v1694, 4294901760
        %1725 = vmatpush.msra.mxu0 %v1724
        %v1726 = vand.u32 %v1693, 4294901760
        %1727 = vmatpush.msra.mxu0 %v1726
        %v1728 = vand.u32 %v1692, 4294901760
        %1729 = vmatpush.msra.mxu0 %v1728
        %v1730 = vand.u32 %v1701, 4294901760
        %v1731 = vsub.f32 %v1701, %v1730
        %v1732 = vand.u32 %v1731, 4294901760
        %v1733 = vsub.f32 %v1731, %v1732
        %v1734 = vand.u32 %v1733, 4294901760
        %1735 = vmatmul.f32.gmra.mxu0 %v1734
        %v1736 = vpop.f32.mrf.mxu0
        %v1737 = vadd.f32 0.0, %v1736
        %v1738 = vand.u32 %v1704, 4294901760
        %v1739 = vsub.f32 %v1704, %v1738
        %v1740 = vand.u32 %v1739, 4294901760
        %v1741 = vsub.f32 %v1739, %v1740
        %v1742 = vand.u32 %v1741, 4294901760
        %1743 = vmatmul.f32.gmra.mxu0 %v1742
        %v1744 = vpop.f32.mrf.mxu0
        %v1745 = vadd.f32 0.0, %v1744
        %1746 = vdwg.mxu0
        %1747 = vmatpush.msra.mxu0 0.0
        %1748 = vmatpush.msra.mxu0 0.0
        %1749 = vmatpush.msra.mxu0 0.0
        %1750 = vmatpush.msra.mxu0 0.0
        %1751 = vmatpush.msra.mxu0 0.0
        %1752 = vmatpush.msra.mxu0 0.0
        %1753 = vmatpush.msra.mxu0 0.0
        %1754 = vmatpush.msra.mxu0 0.0
        %v1755 = vand.u32 %v1699, 4294901760
        %v1756 = vsub.f32 %v1699, %v1755
        %v1757 = vand.u32 %v1756, 4294901760
        %v1758 = vsub.f32 %v1756, %v1757
        %v1759 = vand.u32 %v1758, 4294901760
        %1760 = vmatpush.msra.mxu0 %v1759
        %v1761 = vand.u32 %v1698, 4294901760
        %v1762 = vsub.f32 %v1698, %v1761
        %v1763 = vand.u32 %v1762, 4294901760
        %v1764 = vsub.f32 %v1762, %v1763
        %v1765 = vand.u32 %v1764, 4294901760
        %1766 = vmatpush.msra.mxu0 %v1765
        %v1767 = vand.u32 %v1697, 4294901760
        %v1768 = vsub.f32 %v1697, %v1767
        %v1769 = vand.u32 %v1768, 4294901760
        %v1770 = vsub.f32 %v1768, %v1769
        %v1771 = vand.u32 %v1770, 4294901760
        %1772 = vmatpush.msra.mxu0 %v1771
        %v1773 = vand.u32 %v1696, 4294901760
        %v1774 = vsub.f32 %v1696, %v1773
        %v1775 = vand.u32 %v1774, 4294901760
        %v1776 = vsub.f32 %v1774, %v1775
        %v1777 = vand.u32 %v1776, 4294901760
        %1778 = vmatpush.msra.mxu0 %v1777
        %v1779 = vand.u32 %v1695, 4294901760
        %v1780 = vsub.f32 %v1695, %v1779
        %v1781 = vand.u32 %v1780, 4294901760
        %v1782 = vsub.f32 %v1780, %v1781
        %v1783 = vand.u32 %v1782, 4294901760
        %1784 = vmatpush.msra.mxu0 %v1783
        %v1785 = vand.u32 %v1694, 4294901760
        %v1786 = vsub.f32 %v1694, %v1785
        %v1787 = vand.u32 %v1786, 4294901760
        %v1788 = vsub.f32 %v1786, %v1787
        %v1789 = vand.u32 %v1788, 4294901760
        %1790 = vmatpush.msra.mxu0 %v1789
        %v1791 = vand.u32 %v1693, 4294901760
        %v1792 = vsub.f32 %v1693, %v1791
        %v1793 = vand.u32 %v1792, 4294901760
        %v1794 = vsub.f32 %v1792, %v1793
        %v1795 = vand.u32 %v1794, 4294901760
        %1796 = vmatpush.msra.mxu0 %v1795
        %v1797 = vand.u32 %v1692, 4294901760
        %v1798 = vsub.f32 %v1692, %v1797
        %v1799 = vand.u32 %v1798, 4294901760
        %v1800 = vsub.f32 %v1798, %v1799
        %v1801 = vand.u32 %v1800, 4294901760
        %1802 = vmatpush.msra.mxu0 %v1801
        %v1803 = vand.u32 %v1701, 4294901760
        %1804 = vmatmul.f32.gmra.mxu0 %v1803
        %v1805 = vpop.f32.mrf.mxu0
        %v1806 = vadd.f32 %v1737, %v1805
        %v1807 = vand.u32 %v1704, 4294901760
        %1808 = vmatmul.f32.gmra.mxu0 %v1807
        %v1809 = vpop.f32.mrf.mxu0
        %v1810 = vadd.f32 %v1745, %v1809
        %1811 = vdwg.mxu0
        %1812 = vmatpush.msra.mxu0 0.0
        %1813 = vmatpush.msra.mxu0 0.0
        %1814 = vmatpush.msra.mxu0 0.0
        %1815 = vmatpush.msra.mxu0 0.0
        %1816 = vmatpush.msra.mxu0 0.0
        %1817 = vmatpush.msra.mxu0 0.0
        %1818 = vmatpush.msra.mxu0 0.0
        %1819 = vmatpush.msra.mxu0 0.0
        %v1820 = vand.u32 %v1699, 4294901760
        %v1821 = vsub.f32 %v1699, %v1820
        %1822 = vmatpush.msra.mxu0 %v1821
        %v1823 = vand.u32 %v1698, 4294901760
        %v1824 = vsub.f32 %v1698, %v1823
        %1825 = vmatpush.msra.mxu0 %v1824
        %v1826 = vand.u32 %v1697, 4294901760
        %v1827 = vsub.f32 %v1697, %v1826
        %1828 = vmatpush.msra.mxu0 %v1827
        %v1829 = vand.u32 %v1696, 4294901760
        %v1830 = vsub.f32 %v1696, %v1829
        %1831 = vmatpush.msra.mxu0 %v1830
        %v1832 = vand.u32 %v1695, 4294901760
        %v1833 = vsub.f32 %v1695, %v1832
        %1834 = vmatpush.msra.mxu0 %v1833
        %v1835 = vand.u32 %v1694, 4294901760
        %v1836 = vsub.f32 %v1694, %v1835
        %1837 = vmatpush.msra.mxu0 %v1836
        %v1838 = vand.u32 %v1693, 4294901760
        %v1839 = vsub.f32 %v1693, %v1838
        %1840 = vmatpush.msra.mxu0 %v1839
        %v1841 = vand.u32 %v1692, 4294901760
        %v1842 = vsub.f32 %v1692, %v1841
        %1843 = vmatpush.msra.mxu0 %v1842
        %v1844 = vand.u32 %v1701, 4294901760
        %v1845 = vsub.f32 %v1701, %v1844
        %1846 = vmatmul.f32.gmra.mxu0 %v1845
        %v1847 = vpop.f32.mrf.mxu0
        %v1848 = vadd.f32 %v1806, %v1847
        %v1849 = vand.u32 %v1704, 4294901760
        %v1850 = vsub.f32 %v1704, %v1849
        %1851 = vmatmul.f32.gmra.mxu0 %v1850
        %v1852 = vpop.f32.mrf.mxu0
        %v1853 = vadd.f32 %v1810, %v1852
        %1854 = vdwg.mxu0
        %1855 = vmatpush.msra.mxu0 0.0
        %1856 = vmatpush.msra.mxu0 0.0
        %1857 = vmatpush.msra.mxu0 0.0
        %1858 = vmatpush.msra.mxu0 0.0
        %1859 = vmatpush.msra.mxu0 0.0
        %1860 = vmatpush.msra.mxu0 0.0
        %1861 = vmatpush.msra.mxu0 0.0
        %1862 = vmatpush.msra.mxu0 0.0
        %v1863 = vand.u32 %v1699, 4294901760
        %1864 = vmatpush.msra.mxu0 %v1863
        %v1865 = vand.u32 %v1698, 4294901760
        %1866 = vmatpush.msra.mxu0 %v1865
        %v1867 = vand.u32 %v1697, 4294901760
        %1868 = vmatpush.msra.mxu0 %v1867
        %v1869 = vand.u32 %v1696, 4294901760
        %1870 = vmatpush.msra.mxu0 %v1869
        %v1871 = vand.u32 %v1695, 4294901760
        %1872 = vmatpush.msra.mxu0 %v1871
        %v1873 = vand.u32 %v1694, 4294901760
        %1874 = vmatpush.msra.mxu0 %v1873
        %v1875 = vand.u32 %v1693, 4294901760
        %1876 = vmatpush.msra.mxu0 %v1875
        %v1877 = vand.u32 %v1692, 4294901760
        %1878 = vmatpush.msra.mxu0 %v1877
        %v1879 = vand.u32 %v1701, 4294901760
        %v1880 = vsub.f32 %v1701, %v1879
        %v1881 = vand.u32 %v1880, 4294901760
        %1882 = vmatmul.f32.gmra.mxu0 %v1881
        %v1883 = vpop.f32.mrf.mxu0
        %v1884 = vadd.f32 %v1848, %v1883
        %v1885 = vand.u32 %v1704, 4294901760
        %v1886 = vsub.f32 %v1704, %v1885
        %v1887 = vand.u32 %v1886, 4294901760
        %1888 = vmatmul.f32.gmra.mxu0 %v1887
        %v1889 = vpop.f32.mrf.mxu0
        %v1890 = vadd.f32 %v1853, %v1889
        %1891 = vdwg.mxu0
        %1892 = vmatpush.msra.mxu0 0.0
        %1893 = vmatpush.msra.mxu0 0.0
        %1894 = vmatpush.msra.mxu0 0.0
        %1895 = vmatpush.msra.mxu0 0.0
        %1896 = vmatpush.msra.mxu0 0.0
        %1897 = vmatpush.msra.mxu0 0.0
        %1898 = vmatpush.msra.mxu0 0.0
        %1899 = vmatpush.msra.mxu0 0.0
        %v1900 = vand.u32 %v1699, 4294901760
        %v1901 = vsub.f32 %v1699, %v1900
        %v1902 = vand.u32 %v1901, 4294901760
        %1903 = vmatpush.msra.mxu0 %v1902
        %v1904 = vand.u32 %v1698, 4294901760
        %v1905 = vsub.f32 %v1698, %v1904
        %v1906 = vand.u32 %v1905, 4294901760
        %1907 = vmatpush.msra.mxu0 %v1906
        %v1908 = vand.u32 %v1697, 4294901760
        %v1909 = vsub.f32 %v1697, %v1908
        %v1910 = vand.u32 %v1909, 4294901760
        %1911 = vmatpush.msra.mxu0 %v1910
        %v1912 = vand.u32 %v1696, 4294901760
        %v1913 = vsub.f32 %v1696, %v1912
        %v1914 = vand.u32 %v1913, 4294901760
        %1915 = vmatpush.msra.mxu0 %v1914
        %v1916 = vand.u32 %v1695, 4294901760
        %v1917 = vsub.f32 %v1695, %v1916
        %v1918 = vand.u32 %v1917, 4294901760
        %1919 = vmatpush.msra.mxu0 %v1918
        %v1920 = vand.u32 %v1694, 4294901760
        %v1921 = vsub.f32 %v1694, %v1920
        %v1922 = vand.u32 %v1921, 4294901760
        %1923 = vmatpush.msra.mxu0 %v1922
        %v1924 = vand.u32 %v1693, 4294901760
        %v1925 = vsub.f32 %v1693, %v1924
        %v1926 = vand.u32 %v1925, 4294901760
        %1927 = vmatpush.msra.mxu0 %v1926
        %v1928 = vand.u32 %v1692, 4294901760
        %v1929 = vsub.f32 %v1692, %v1928
        %v1930 = vand.u32 %v1929, 4294901760
        %1931 = vmatpush.msra.mxu0 %v1930
        %v1932 = vand.u32 %v1701, 4294901760
        %1933 = vmatmul.f32.gmra.mxu0 %v1932
        %v1934 = vpop.f32.mrf.mxu0
        %v1935 = vadd.f32 %v1884, %v1934
        %v1936 = vand.u32 %v1704, 4294901760
        %1937 = vmatmul.f32.gmra.mxu0 %v1936
        %v1938 = vpop.f32.mrf.mxu0
        %v1939 = vadd.f32 %v1890, %v1938
        %1940 = vdwg.mxu0
        %1941 = vmatpush.msra.mxu0 0.0
        %1942 = vmatpush.msra.mxu0 0.0
        %1943 = vmatpush.msra.mxu0 0.0
        %1944 = vmatpush.msra.mxu0 0.0
        %1945 = vmatpush.msra.mxu0 0.0
        %1946 = vmatpush.msra.mxu0 0.0
        %1947 = vmatpush.msra.mxu0 0.0
        %1948 = vmatpush.msra.mxu0 0.0
        %v1949 = vand.u32 %v1699, 4294901760
        %1950 = vmatpush.msra.mxu0 %v1949
        %v1951 = vand.u32 %v1698, 4294901760
        %1952 = vmatpush.msra.mxu0 %v1951
        %v1953 = vand.u32 %v1697, 4294901760
        %1954 = vmatpush.msra.mxu0 %v1953
        %v1955 = vand.u32 %v1696, 4294901760
        %1956 = vmatpush.msra.mxu0 %v1955
        %v1957 = vand.u32 %v1695, 4294901760
        %1958 = vmatpush.msra.mxu0 %v1957
        %v1959 = vand.u32 %v1694, 4294901760
        %1960 = vmatpush.msra.mxu0 %v1959
        %v1961 = vand.u32 %v1693, 4294901760
        %1962 = vmatpush.msra.mxu0 %v1961
        %v1963 = vand.u32 %v1692, 4294901760
        %1964 = vmatpush.msra.mxu0 %v1963
        %v1965 = vand.u32 %v1701, 4294901760
        %1966 = vmatmul.f32.gmra.mxu0 %v1965
        %v1967 = vpop.f32.mrf.mxu0
        %v1968 = vadd.f32 %v1935, %v1967
        %v1969 = vand.u32 %v1704, 4294901760
        %1970 = vmatmul.f32.gmra.mxu0 %v1969
        %v1971 = vpop.f32.mrf.mxu0
        %v1972 = vadd.f32 %v1939, %v1971
        %1973 = vdwg.mxu0
        %1974 = vrot.lane.b32.xlu0 %v1690, 64
        %v1975 = vpop.permute.xlu0 %1974
        %1976 = vrot.lane.b32.xlu0 %v1691, 64
        %v1977 = vpop.permute.xlu0 %1976
        %v1978 = vsel %vm464, %v1975, 0
        %v1980 = vsel %vm464, %v1977, 0
        %1982 = vmatpush.msra.mxu0 0.0
        %1983 = vmatpush.msra.mxu0 0.0
        %1984 = vmatpush.msra.mxu0 0.0
        %1985 = vmatpush.msra.mxu0 0.0
        %1986 = vmatpush.msra.mxu0 0.0
        %1987 = vmatpush.msra.mxu0 0.0
        %1988 = vmatpush.msra.mxu0 0.0
        %1989 = vmatpush.msra.mxu0 0.0
        %v1990 = vand.u32 %v1699, 4294901760
        %1991 = vmatpush.msra.mxu0 %v1990
        %v1992 = vand.u32 %v1698, 4294901760
        %1993 = vmatpush.msra.mxu0 %v1992
        %v1994 = vand.u32 %v1697, 4294901760
        %1995 = vmatpush.msra.mxu0 %v1994
        %v1996 = vand.u32 %v1696, 4294901760
        %1997 = vmatpush.msra.mxu0 %v1996
        %v1998 = vand.u32 %v1695, 4294901760
        %1999 = vmatpush.msra.mxu0 %v1998
        %v2000 = vand.u32 %v1694, 4294901760
        %2001 = vmatpush.msra.mxu0 %v2000
        %v2002 = vand.u32 %v1693, 4294901760
        %2003 = vmatpush.msra.mxu0 %v2002
        %v2004 = vand.u32 %v1692, 4294901760
        %2005 = vmatpush.msra.mxu0 %v2004
        %v2006 = vand.u32 %v1978, 4294901760
        %v2007 = vsub.f32 %v1978, %v2006
        %v2008 = vand.u32 %v2007, 4294901760
        %v2009 = vsub.f32 %v2007, %v2008
        %v2010 = vand.u32 %v2009, 4294901760
        %2011 = vmatmul.f32.gmra.mxu0 %v2010
        %v2012 = vpop.f32.mrf.mxu0
        %v2013 = vadd.f32 0.0, %v2012
        %v2014 = vand.u32 %v1980, 4294901760
        %v2015 = vsub.f32 %v1980, %v2014
        %v2016 = vand.u32 %v2015, 4294901760
        %v2017 = vsub.f32 %v2015, %v2016
        %v2018 = vand.u32 %v2017, 4294901760
        %2019 = vmatmul.f32.gmra.mxu0 %v2018
        %v2020 = vpop.f32.mrf.mxu0
        %v2021 = vadd.f32 0.0, %v2020
        %2022 = vdwg.mxu0
        %2023 = vmatpush.msra.mxu0 0.0
        %2024 = vmatpush.msra.mxu0 0.0
        %2025 = vmatpush.msra.mxu0 0.0
        %2026 = vmatpush.msra.mxu0 0.0
        %2027 = vmatpush.msra.mxu0 0.0
        %2028 = vmatpush.msra.mxu0 0.0
        %2029 = vmatpush.msra.mxu0 0.0
        %2030 = vmatpush.msra.mxu0 0.0
        %v2031 = vand.u32 %v1699, 4294901760
        %v2032 = vsub.f32 %v1699, %v2031
        %v2033 = vand.u32 %v2032, 4294901760
        %v2034 = vsub.f32 %v2032, %v2033
        %v2035 = vand.u32 %v2034, 4294901760
        %2036 = vmatpush.msra.mxu0 %v2035
        %v2037 = vand.u32 %v1698, 4294901760
        %v2038 = vsub.f32 %v1698, %v2037
        %v2039 = vand.u32 %v2038, 4294901760
        %v2040 = vsub.f32 %v2038, %v2039
        %v2041 = vand.u32 %v2040, 4294901760
        %2042 = vmatpush.msra.mxu0 %v2041
        %v2043 = vand.u32 %v1697, 4294901760
        %v2044 = vsub.f32 %v1697, %v2043
        %v2045 = vand.u32 %v2044, 4294901760
        %v2046 = vsub.f32 %v2044, %v2045
        %v2047 = vand.u32 %v2046, 4294901760
        %2048 = vmatpush.msra.mxu0 %v2047
        %v2049 = vand.u32 %v1696, 4294901760
        %v2050 = vsub.f32 %v1696, %v2049
        %v2051 = vand.u32 %v2050, 4294901760
        %v2052 = vsub.f32 %v2050, %v2051
        %v2053 = vand.u32 %v2052, 4294901760
        %2054 = vmatpush.msra.mxu0 %v2053
        %v2055 = vand.u32 %v1695, 4294901760
        %v2056 = vsub.f32 %v1695, %v2055
        %v2057 = vand.u32 %v2056, 4294901760
        %v2058 = vsub.f32 %v2056, %v2057
        %v2059 = vand.u32 %v2058, 4294901760
        %2060 = vmatpush.msra.mxu0 %v2059
        %v2061 = vand.u32 %v1694, 4294901760
        %v2062 = vsub.f32 %v1694, %v2061
        %v2063 = vand.u32 %v2062, 4294901760
        %v2064 = vsub.f32 %v2062, %v2063
        %v2065 = vand.u32 %v2064, 4294901760
        %2066 = vmatpush.msra.mxu0 %v2065
        %v2067 = vand.u32 %v1693, 4294901760
        %v2068 = vsub.f32 %v1693, %v2067
        %v2069 = vand.u32 %v2068, 4294901760
        %v2070 = vsub.f32 %v2068, %v2069
        %v2071 = vand.u32 %v2070, 4294901760
        %2072 = vmatpush.msra.mxu0 %v2071
        %v2073 = vand.u32 %v1692, 4294901760
        %v2074 = vsub.f32 %v1692, %v2073
        %v2075 = vand.u32 %v2074, 4294901760
        %v2076 = vsub.f32 %v2074, %v2075
        %v2077 = vand.u32 %v2076, 4294901760
        %2078 = vmatpush.msra.mxu0 %v2077
        %v2079 = vand.u32 %v1978, 4294901760
        %2080 = vmatmul.f32.gmra.mxu0 %v2079
        %v2081 = vpop.f32.mrf.mxu0
        %v2082 = vadd.f32 %v2013, %v2081
        %v2083 = vand.u32 %v1980, 4294901760
        %2084 = vmatmul.f32.gmra.mxu0 %v2083
        %v2085 = vpop.f32.mrf.mxu0
        %v2086 = vadd.f32 %v2021, %v2085
        %2087 = vdwg.mxu0
        %2088 = vmatpush.msra.mxu0 0.0
        %2089 = vmatpush.msra.mxu0 0.0
        %2090 = vmatpush.msra.mxu0 0.0
        %2091 = vmatpush.msra.mxu0 0.0
        %2092 = vmatpush.msra.mxu0 0.0
        %2093 = vmatpush.msra.mxu0 0.0
        %2094 = vmatpush.msra.mxu0 0.0
        %2095 = vmatpush.msra.mxu0 0.0
        %v2096 = vand.u32 %v1699, 4294901760
        %v2097 = vsub.f32 %v1699, %v2096
        %2098 = vmatpush.msra.mxu0 %v2097
        %v2099 = vand.u32 %v1698, 4294901760
        %v2100 = vsub.f32 %v1698, %v2099
        %2101 = vmatpush.msra.mxu0 %v2100
        %v2102 = vand.u32 %v1697, 4294901760
        %v2103 = vsub.f32 %v1697, %v2102
        %2104 = vmatpush.msra.mxu0 %v2103
        %v2105 = vand.u32 %v1696, 4294901760
        %v2106 = vsub.f32 %v1696, %v2105
        %2107 = vmatpush.msra.mxu0 %v2106
        %v2108 = vand.u32 %v1695, 4294901760
        %v2109 = vsub.f32 %v1695, %v2108
        %2110 = vmatpush.msra.mxu0 %v2109
        %v2111 = vand.u32 %v1694, 4294901760
        %v2112 = vsub.f32 %v1694, %v2111
        %2113 = vmatpush.msra.mxu0 %v2112
        %v2114 = vand.u32 %v1693, 4294901760
        %v2115 = vsub.f32 %v1693, %v2114
        %2116 = vmatpush.msra.mxu0 %v2115
        %v2117 = vand.u32 %v1692, 4294901760
        %v2118 = vsub.f32 %v1692, %v2117
        %2119 = vmatpush.msra.mxu0 %v2118
        %v2120 = vand.u32 %v1978, 4294901760
        %v2121 = vsub.f32 %v1978, %v2120
        %2122 = vmatmul.f32.gmra.mxu0 %v2121
        %v2123 = vpop.f32.mrf.mxu0
        %v2124 = vadd.f32 %v2082, %v2123
        %v2125 = vand.u32 %v1980, 4294901760
        %v2126 = vsub.f32 %v1980, %v2125
        %2127 = vmatmul.f32.gmra.mxu0 %v2126
        %v2128 = vpop.f32.mrf.mxu0
        %v2129 = vadd.f32 %v2086, %v2128
        %2130 = vdwg.mxu0
        %2131 = vmatpush.msra.mxu0 0.0
        %2132 = vmatpush.msra.mxu0 0.0
        %2133 = vmatpush.msra.mxu0 0.0
        %2134 = vmatpush.msra.mxu0 0.0
        %2135 = vmatpush.msra.mxu0 0.0
        %2136 = vmatpush.msra.mxu0 0.0
        %2137 = vmatpush.msra.mxu0 0.0
        %2138 = vmatpush.msra.mxu0 0.0
        %v2139 = vand.u32 %v1699, 4294901760
        %2140 = vmatpush.msra.mxu0 %v2139
        %v2141 = vand.u32 %v1698, 4294901760
        %2142 = vmatpush.msra.mxu0 %v2141
        %v2143 = vand.u32 %v1697, 4294901760
        %2144 = vmatpush.msra.mxu0 %v2143
        %v2145 = vand.u32 %v1696, 4294901760
        %2146 = vmatpush.msra.mxu0 %v2145
        %v2147 = vand.u32 %v1695, 4294901760
        %2148 = vmatpush.msra.mxu0 %v2147
        %v2149 = vand.u32 %v1694, 4294901760
        %2150 = vmatpush.msra.mxu0 %v2149
        %v2151 = vand.u32 %v1693, 4294901760
        %2152 = vmatpush.msra.mxu0 %v2151
        %v2153 = vand.u32 %v1692, 4294901760
        %2154 = vmatpush.msra.mxu0 %v2153
        %v2155 = vand.u32 %v1978, 4294901760
        %v2156 = vsub.f32 %v1978, %v2155
        %v2157 = vand.u32 %v2156, 4294901760
        %2158 = vmatmul.f32.gmra.mxu0 %v2157
        %v2159 = vpop.f32.mrf.mxu0
        %v2160 = vadd.f32 %v2124, %v2159
        %v2161 = vand.u32 %v1980, 4294901760
        %v2162 = vsub.f32 %v1980, %v2161
        %v2163 = vand.u32 %v2162, 4294901760
        %2164 = vmatmul.f32.gmra.mxu0 %v2163
        %v2165 = vpop.f32.mrf.mxu0
        %v2166 = vadd.f32 %v2129, %v2165
        %2167 = vdwg.mxu0
        %2168 = vmatpush.msra.mxu0 0.0
        %2169 = vmatpush.msra.mxu0 0.0
        %2170 = vmatpush.msra.mxu0 0.0
        %2171 = vmatpush.msra.mxu0 0.0
        %2172 = vmatpush.msra.mxu0 0.0
        %2173 = vmatpush.msra.mxu0 0.0
        %2174 = vmatpush.msra.mxu0 0.0
        %2175 = vmatpush.msra.mxu0 0.0
        %v2176 = vand.u32 %v1699, 4294901760
        %v2177 = vsub.f32 %v1699, %v2176
        %v2178 = vand.u32 %v2177, 4294901760
        %2179 = vmatpush.msra.mxu0 %v2178
        %v2180 = vand.u32 %v1698, 4294901760
        %v2181 = vsub.f32 %v1698, %v2180
        %v2182 = vand.u32 %v2181, 4294901760
        %2183 = vmatpush.msra.mxu0 %v2182
        %v2184 = vand.u32 %v1697, 4294901760
        %v2185 = vsub.f32 %v1697, %v2184
        %v2186 = vand.u32 %v2185, 4294901760
        %2187 = vmatpush.msra.mxu0 %v2186
        %v2188 = vand.u32 %v1696, 4294901760
        %v2189 = vsub.f32 %v1696, %v2188
        %v2190 = vand.u32 %v2189, 4294901760
        %2191 = vmatpush.msra.mxu0 %v2190
        %v2192 = vand.u32 %v1695, 4294901760
        %v2193 = vsub.f32 %v1695, %v2192
        %v2194 = vand.u32 %v2193, 4294901760
        %2195 = vmatpush.msra.mxu0 %v2194
        %v2196 = vand.u32 %v1694, 4294901760
        %v2197 = vsub.f32 %v1694, %v2196
        %v2198 = vand.u32 %v2197, 4294901760
        %2199 = vmatpush.msra.mxu0 %v2198
        %v2200 = vand.u32 %v1693, 4294901760
        %v2201 = vsub.f32 %v1693, %v2200
        %v2202 = vand.u32 %v2201, 4294901760
        %2203 = vmatpush.msra.mxu0 %v2202
        %v2204 = vand.u32 %v1692, 4294901760
        %v2205 = vsub.f32 %v1692, %v2204
        %v2206 = vand.u32 %v2205, 4294901760
        %2207 = vmatpush.msra.mxu0 %v2206
        %v2208 = vand.u32 %v1978, 4294901760
        %2209 = vmatmul.f32.gmra.mxu0 %v2208
        %v2210 = vpop.f32.mrf.mxu0
        %v2211 = vadd.f32 %v2160, %v2210
        %v2212 = vand.u32 %v1980, 4294901760
        %2213 = vmatmul.f32.gmra.mxu0 %v2212
        %v2214 = vpop.f32.mrf.mxu0
        %v2215 = vadd.f32 %v2166, %v2214
        %2216 = vdwg.mxu0
        %2217 = vmatpush.msra.mxu0 0.0
        %2218 = vmatpush.msra.mxu0 0.0
        %2219 = vmatpush.msra.mxu0 0.0
        %2220 = vmatpush.msra.mxu0 0.0
        %2221 = vmatpush.msra.mxu0 0.0
        %2222 = vmatpush.msra.mxu0 0.0
        %2223 = vmatpush.msra.mxu0 0.0
        %2224 = vmatpush.msra.mxu0 0.0
        %v2225 = vand.u32 %v1699, 4294901760
        %2226 = vmatpush.msra.mxu0 %v2225
        %v2227 = vand.u32 %v1698, 4294901760
        %2228 = vmatpush.msra.mxu0 %v2227
        %v2229 = vand.u32 %v1697, 4294901760
        %2230 = vmatpush.msra.mxu0 %v2229
        %v2231 = vand.u32 %v1696, 4294901760
        %2232 = vmatpush.msra.mxu0 %v2231
        %v2233 = vand.u32 %v1695, 4294901760
        %2234 = vmatpush.msra.mxu0 %v2233
        %v2235 = vand.u32 %v1694, 4294901760
        %2236 = vmatpush.msra.mxu0 %v2235
        %v2237 = vand.u32 %v1693, 4294901760
        %2238 = vmatpush.msra.mxu0 %v2237
        %v2239 = vand.u32 %v1692, 4294901760
        %2240 = vmatpush.msra.mxu0 %v2239
        %v2241 = vand.u32 %v1978, 4294901760
        %2242 = vmatmul.f32.gmra.mxu0 %v2241
        %v2243 = vpop.f32.mrf.mxu0
        %v2244 = vadd.f32 %v2211, %v2243
        %v2245 = vand.u32 %v1980, 4294901760
        %2246 = vmatmul.f32.gmra.mxu0 %v2245
        %v2247 = vpop.f32.mrf.mxu0
        %v2248 = vadd.f32 %v2215, %v2247
        %2249 = vdwg.mxu0
        %2252 = vrot.lane.b32.xlu0 %v2244, 32
        %v2253 = vpop.permute.xlu0 %2252
        %2254 = vrot.lane.b32.xlu0 %v2248, 32
        %v2255 = vpop.permute.xlu0 %2254
        %v2258 = vsel %vm949, %v1968, %v2253
        %v2259 = vsel %vm949, %v1972, %v2255
        %v2260 = vld [vmem:[%s2] sm:$0xff]
        %v2261 = vld [vmem:[%s2 + $0x8] sm:$0xff]
        %v2262 = vld [vmem:[%s11] sm:$0x1]
        %v2264 = vperm.slane %v2262, 0
        %v2267 = vsel %vm1498, %v2260, 0
        %v2270 = vsel %vm1498, %v2261, 0
        %2272 = vmatpush.msra.mxu0 0.0
        %2273 = vmatpush.msra.mxu0 0.0
        %2274 = vmatpush.msra.mxu0 0.0
        %2275 = vmatpush.msra.mxu0 0.0
        %2276 = vmatpush.msra.mxu0 0.0
        %2277 = vmatpush.msra.mxu0 0.0
        %2278 = vmatpush.msra.mxu0 0.0
        %2279 = vmatpush.msra.mxu0 0.0
        %2280 = vmatpush.msra.mxu0 0.0
        %2281 = vmatpush.msra.mxu0 0.0
        %2282 = vmatpush.msra.mxu0 0.0
        %2283 = vmatpush.msra.mxu0 0.0
        %2284 = vmatpush.msra.mxu0 0.0
        %2285 = vmatpush.msra.mxu0 0.0
        %v2286 = vand.u32 %v2259, 4294901760
        %2287 = vmatpush.msra.mxu0 %v2286
        %v2288 = vand.u32 %v2258, 4294901760
        %2289 = vmatpush.msra.mxu0 %v2288
        %v2290 = vand.u32 %v2267, 4294901760
        %v2291 = vsub.f32 %v2267, %v2290
        %v2292 = vand.u32 %v2291, 4294901760
        %v2293 = vsub.f32 %v2291, %v2292
        %v2294 = vand.u32 %v2293, 4294901760
        %2295 = vmatmul.f32.gmra.mxu0 %v2294
        %v2296 = vpop.f32.mrf.mxu0
        %v2297 = vadd.f32 %v2264, %v2296
        %v2298 = vand.u32 %v2270, 4294901760
        %v2299 = vsub.f32 %v2270, %v2298
        %v2300 = vand.u32 %v2299, 4294901760
        %v2301 = vsub.f32 %v2299, %v2300
        %v2302 = vand.u32 %v2301, 4294901760
        %2303 = vmatmul.f32.gmra.mxu0 %v2302
        %v2304 = vpop.f32.mrf.mxu0
        %v2305 = vadd.f32 %v2264, %v2304
        %2306 = vdwg.mxu0
        %2307 = vmatpush.msra.mxu0 0.0
        %2308 = vmatpush.msra.mxu0 0.0
        %2309 = vmatpush.msra.mxu0 0.0
        %2310 = vmatpush.msra.mxu0 0.0
        %2311 = vmatpush.msra.mxu0 0.0
        %2312 = vmatpush.msra.mxu0 0.0
        %2313 = vmatpush.msra.mxu0 0.0
        %2314 = vmatpush.msra.mxu0 0.0
        %2315 = vmatpush.msra.mxu0 0.0
        %2316 = vmatpush.msra.mxu0 0.0
        %2317 = vmatpush.msra.mxu0 0.0
        %2318 = vmatpush.msra.mxu0 0.0
        %2319 = vmatpush.msra.mxu0 0.0
        %2320 = vmatpush.msra.mxu0 0.0
        %v2321 = vand.u32 %v2259, 4294901760
        %v2322 = vsub.f32 %v2259, %v2321
        %v2323 = vand.u32 %v2322, 4294901760
        %v2324 = vsub.f32 %v2322, %v2323
        %v2325 = vand.u32 %v2324, 4294901760
        %2326 = vmatpush.msra.mxu0 %v2325
        %v2327 = vand.u32 %v2258, 4294901760
        %v2328 = vsub.f32 %v2258, %v2327
        %v2329 = vand.u32 %v2328, 4294901760
        %v2330 = vsub.f32 %v2328, %v2329
        %v2331 = vand.u32 %v2330, 4294901760
        %2332 = vmatpush.msra.mxu0 %v2331
        %v2333 = vand.u32 %v2267, 4294901760
        %2334 = vmatmul.f32.gmra.mxu0 %v2333
        %v2335 = vpop.f32.mrf.mxu0
        %v2336 = vadd.f32 %v2297, %v2335
        %v2337 = vand.u32 %v2270, 4294901760
        %2338 = vmatmul.f32.gmra.mxu0 %v2337
        %v2339 = vpop.f32.mrf.mxu0
        %v2340 = vadd.f32 %v2305, %v2339
        %2341 = vdwg.mxu0
        %2342 = vmatpush.msra.mxu0 0.0
        %2343 = vmatpush.msra.mxu0 0.0
        %2344 = vmatpush.msra.mxu0 0.0
        %2345 = vmatpush.msra.mxu0 0.0
        %2346 = vmatpush.msra.mxu0 0.0
        %2347 = vmatpush.msra.mxu0 0.0
        %2348 = vmatpush.msra.mxu0 0.0
        %2349 = vmatpush.msra.mxu0 0.0
        %2350 = vmatpush.msra.mxu0 0.0
        %2351 = vmatpush.msra.mxu0 0.0
        %2352 = vmatpush.msra.mxu0 0.0
        %2353 = vmatpush.msra.mxu0 0.0
        %2354 = vmatpush.msra.mxu0 0.0
        %2355 = vmatpush.msra.mxu0 0.0
        %v2356 = vand.u32 %v2259, 4294901760
        %v2357 = vsub.f32 %v2259, %v2356
        %2358 = vmatpush.msra.mxu0 %v2357
        %v2359 = vand.u32 %v2258, 4294901760
        %v2360 = vsub.f32 %v2258, %v2359
        %2361 = vmatpush.msra.mxu0 %v2360
        %v2362 = vand.u32 %v2267, 4294901760
        %v2363 = vsub.f32 %v2267, %v2362
        %2364 = vmatmul.f32.gmra.mxu0 %v2363
        %v2365 = vpop.f32.mrf.mxu0
        %v2366 = vadd.f32 %v2336, %v2365
        %v2367 = vand.u32 %v2270, 4294901760
        %v2368 = vsub.f32 %v2270, %v2367
        %2369 = vmatmul.f32.gmra.mxu0 %v2368
        %v2370 = vpop.f32.mrf.mxu0
        %v2371 = vadd.f32 %v2340, %v2370
        %2372 = vdwg.mxu0
        %2373 = vmatpush.msra.mxu0 0.0
        %2374 = vmatpush.msra.mxu0 0.0
        %2375 = vmatpush.msra.mxu0 0.0
        %2376 = vmatpush.msra.mxu0 0.0
        %2377 = vmatpush.msra.mxu0 0.0
        %2378 = vmatpush.msra.mxu0 0.0
        %2379 = vmatpush.msra.mxu0 0.0
        %2380 = vmatpush.msra.mxu0 0.0
        %2381 = vmatpush.msra.mxu0 0.0
        %2382 = vmatpush.msra.mxu0 0.0
        %2383 = vmatpush.msra.mxu0 0.0
        %2384 = vmatpush.msra.mxu0 0.0
        %2385 = vmatpush.msra.mxu0 0.0
        %2386 = vmatpush.msra.mxu0 0.0
        %v2387 = vand.u32 %v2259, 4294901760
        %2388 = vmatpush.msra.mxu0 %v2387
        %v2389 = vand.u32 %v2258, 4294901760
        %2390 = vmatpush.msra.mxu0 %v2389
        %v2391 = vand.u32 %v2267, 4294901760
        %v2392 = vsub.f32 %v2267, %v2391
        %v2393 = vand.u32 %v2392, 4294901760
        %2394 = vmatmul.f32.gmra.mxu0 %v2393
        %v2395 = vpop.f32.mrf.mxu0
        %v2396 = vadd.f32 %v2366, %v2395
        %v2397 = vand.u32 %v2270, 4294901760
        %v2398 = vsub.f32 %v2270, %v2397
        %v2399 = vand.u32 %v2398, 4294901760
        %2400 = vmatmul.f32.gmra.mxu0 %v2399
        %v2401 = vpop.f32.mrf.mxu0
        %v2402 = vadd.f32 %v2371, %v2401
        %2403 = vdwg.mxu0
        %2404 = vmatpush.msra.mxu0 0.0
        %2405 = vmatpush.msra.mxu0 0.0
        %2406 = vmatpush.msra.mxu0 0.0
        %2407 = vmatpush.msra.mxu0 0.0
        %2408 = vmatpush.msra.mxu0 0.0
        %2409 = vmatpush.msra.mxu0 0.0
        %2410 = vmatpush.msra.mxu0 0.0
        %2411 = vmatpush.msra.mxu0 0.0
        %2412 = vmatpush.msra.mxu0 0.0
        %2413 = vmatpush.msra.mxu0 0.0
        %2414 = vmatpush.msra.mxu0 0.0
        %2415 = vmatpush.msra.mxu0 0.0
        %2416 = vmatpush.msra.mxu0 0.0
        %2417 = vmatpush.msra.mxu0 0.0
        %v2418 = vand.u32 %v2259, 4294901760
        %v2419 = vsub.f32 %v2259, %v2418
        %v2420 = vand.u32 %v2419, 4294901760
        %2421 = vmatpush.msra.mxu0 %v2420
        %v2422 = vand.u32 %v2258, 4294901760
        %v2423 = vsub.f32 %v2258, %v2422
        %v2424 = vand.u32 %v2423, 4294901760
        %2425 = vmatpush.msra.mxu0 %v2424
        %v2426 = vand.u32 %v2267, 4294901760
        %2427 = vmatmul.f32.gmra.mxu0 %v2426
        %v2428 = vpop.f32.mrf.mxu0
        %v2429 = vadd.f32 %v2396, %v2428
        %v2430 = vand.u32 %v2270, 4294901760
        %2431 = vmatmul.f32.gmra.mxu0 %v2430
        %v2432 = vpop.f32.mrf.mxu0
        %v2433 = vadd.f32 %v2402, %v2432
        %2434 = vdwg.mxu0
        %2435 = vmatpush.msra.mxu0 0.0
        %2436 = vmatpush.msra.mxu0 0.0
        %2437 = vmatpush.msra.mxu0 0.0
        %2438 = vmatpush.msra.mxu0 0.0
        %2439 = vmatpush.msra.mxu0 0.0
        %2440 = vmatpush.msra.mxu0 0.0
        %2441 = vmatpush.msra.mxu0 0.0
        %2442 = vmatpush.msra.mxu0 0.0
        %2443 = vmatpush.msra.mxu0 0.0
        %2444 = vmatpush.msra.mxu0 0.0
        %2445 = vmatpush.msra.mxu0 0.0
        %2446 = vmatpush.msra.mxu0 0.0
        %2447 = vmatpush.msra.mxu0 0.0
        %2448 = vmatpush.msra.mxu0 0.0
        %v2449 = vand.u32 %v2259, 4294901760
        %2450 = vmatpush.msra.mxu0 %v2449
        %v2451 = vand.u32 %v2258, 4294901760
        %2452 = vmatpush.msra.mxu0 %v2451
        %v2453 = vand.u32 %v2267, 4294901760
        %2454 = vmatmul.f32.gmra.mxu0 %v2453
        %v2455 = vpop.f32.mrf.mxu0
        %v2456 = vadd.f32 %v2429, %v2455
        %v2457 = vand.u32 %v2270, 4294901760
        %2458 = vmatmul.f32.gmra.mxu0 %v2457
        %v2459 = vpop.f32.mrf.mxu0
        %v2460 = vadd.f32 %v2433, %v2459
        %2461 = vdwg.mxu0
        %vm2462 = vcmp.gt.f32.partialorder %v2456, 0.0
        %vm2463 = vcmp.gt.f32.partialorder %v2460, 0.0
        %v2464 = vmul.f32 %v2456, 0.01
        %v2465 = vmul.f32 %v2460, 0.01
        %v2466 = vsel %vm2462, %v2456, %v2464
        %v2467 = vsel %vm2463, %v2460, %v2465
        %v2468 = vld [vmem:[%s10] sm:$0xff]
        %v2469 = vld [vmem:[%s10 + $0x8] sm:$0xff]
        %v2470 = vld [vmem:[%s10 + $0x10] sm:$0xff]
        %v2471 = vld [vmem:[%s10 + $0x18] sm:$0xff]
        %v2473 = vsel %vm949, %v2466, 0
        %v2476 = vsel %vm949, %v2467, 0
        %2478 = vmatpush.msra.mxu0 0.0
        %2479 = vmatpush.msra.mxu0 0.0
        %2480 = vmatpush.msra.mxu0 0.0
        %2481 = vmatpush.msra.mxu0 0.0
        %2482 = vmatpush.msra.mxu0 0.0
        %2483 = vmatpush.msra.mxu0 0.0
        %2484 = vmatpush.msra.mxu0 0.0
        %2485 = vmatpush.msra.mxu0 0.0
        %2486 = vmatpush.msra.mxu0 0.0
        %2487 = vmatpush.msra.mxu0 0.0
        %2488 = vmatpush.msra.mxu0 0.0
        %2489 = vmatpush.msra.mxu0 0.0
        %v2490 = vand.u32 %v2471, 4294901760
        %2491 = vmatpush.msra.mxu0 %v2490
        %v2492 = vand.u32 %v2470, 4294901760
        %2493 = vmatpush.msra.mxu0 %v2492
        %v2494 = vand.u32 %v2469, 4294901760
        %2495 = vmatpush.msra.mxu0 %v2494
        %v2496 = vand.u32 %v2468, 4294901760
        %2497 = vmatpush.msra.mxu0 %v2496
        %v2498 = vand.u32 %v2473, 4294901760
        %v2499 = vsub.f32 %v2473, %v2498
        %v2500 = vand.u32 %v2499, 4294901760
        %v2501 = vsub.f32 %v2499, %v2500
        %v2502 = vand.u32 %v2501, 4294901760
        %2503 = vmatmul.f32.gmra.mxu0 %v2502
        %v2504 = vpop.f32.mrf.mxu0
        %v2505 = vadd.f32 0.0, %v2504
        %v2506 = vand.u32 %v2476, 4294901760
        %v2507 = vsub.f32 %v2476, %v2506
        %v2508 = vand.u32 %v2507, 4294901760
        %v2509 = vsub.f32 %v2507, %v2508
        %v2510 = vand.u32 %v2509, 4294901760
        %2511 = vmatmul.f32.gmra.mxu0 %v2510
        %v2512 = vpop.f32.mrf.mxu0
        %v2513 = vadd.f32 0.0, %v2512
        %2514 = vdwg.mxu0
        %2515 = vmatpush.msra.mxu0 0.0
        %2516 = vmatpush.msra.mxu0 0.0
        %2517 = vmatpush.msra.mxu0 0.0
        %2518 = vmatpush.msra.mxu0 0.0
        %2519 = vmatpush.msra.mxu0 0.0
        %2520 = vmatpush.msra.mxu0 0.0
        %2521 = vmatpush.msra.mxu0 0.0
        %2522 = vmatpush.msra.mxu0 0.0
        %2523 = vmatpush.msra.mxu0 0.0
        %2524 = vmatpush.msra.mxu0 0.0
        %2525 = vmatpush.msra.mxu0 0.0
        %2526 = vmatpush.msra.mxu0 0.0
        %v2527 = vand.u32 %v2471, 4294901760
        %v2528 = vsub.f32 %v2471, %v2527
        %v2529 = vand.u32 %v2528, 4294901760
        %v2530 = vsub.f32 %v2528, %v2529
        %v2531 = vand.u32 %v2530, 4294901760
        %2532 = vmatpush.msra.mxu0 %v2531
        %v2533 = vand.u32 %v2470, 4294901760
        %v2534 = vsub.f32 %v2470, %v2533
        %v2535 = vand.u32 %v2534, 4294901760
        %v2536 = vsub.f32 %v2534, %v2535
        %v2537 = vand.u32 %v2536, 4294901760
        %2538 = vmatpush.msra.mxu0 %v2537
        %v2539 = vand.u32 %v2469, 4294901760
        %v2540 = vsub.f32 %v2469, %v2539
        %v2541 = vand.u32 %v2540, 4294901760
        %v2542 = vsub.f32 %v2540, %v2541
        %v2543 = vand.u32 %v2542, 4294901760
        %2544 = vmatpush.msra.mxu0 %v2543
        %v2545 = vand.u32 %v2468, 4294901760
        %v2546 = vsub.f32 %v2468, %v2545
        %v2547 = vand.u32 %v2546, 4294901760
        %v2548 = vsub.f32 %v2546, %v2547
        %v2549 = vand.u32 %v2548, 4294901760
        %2550 = vmatpush.msra.mxu0 %v2549
        %v2551 = vand.u32 %v2473, 4294901760
        %2552 = vmatmul.f32.gmra.mxu0 %v2551
        %v2553 = vpop.f32.mrf.mxu0
        %v2554 = vadd.f32 %v2505, %v2553
        %v2555 = vand.u32 %v2476, 4294901760
        %2556 = vmatmul.f32.gmra.mxu0 %v2555
        %v2557 = vpop.f32.mrf.mxu0
        %v2558 = vadd.f32 %v2513, %v2557
        %2559 = vdwg.mxu0
        %2560 = vmatpush.msra.mxu0 0.0
        %2561 = vmatpush.msra.mxu0 0.0
        %2562 = vmatpush.msra.mxu0 0.0
        %2563 = vmatpush.msra.mxu0 0.0
        %2564 = vmatpush.msra.mxu0 0.0
        %2565 = vmatpush.msra.mxu0 0.0
        %2566 = vmatpush.msra.mxu0 0.0
        %2567 = vmatpush.msra.mxu0 0.0
        %2568 = vmatpush.msra.mxu0 0.0
        %2569 = vmatpush.msra.mxu0 0.0
        %2570 = vmatpush.msra.mxu0 0.0
        %2571 = vmatpush.msra.mxu0 0.0
        %v2572 = vand.u32 %v2471, 4294901760
        %v2573 = vsub.f32 %v2471, %v2572
        %2574 = vmatpush.msra.mxu0 %v2573
        %v2575 = vand.u32 %v2470, 4294901760
        %v2576 = vsub.f32 %v2470, %v2575
        %2577 = vmatpush.msra.mxu0 %v2576
        %v2578 = vand.u32 %v2469, 4294901760
        %v2579 = vsub.f32 %v2469, %v2578
        %2580 = vmatpush.msra.mxu0 %v2579
        %v2581 = vand.u32 %v2468, 4294901760
        %v2582 = vsub.f32 %v2468, %v2581
        %2583 = vmatpush.msra.mxu0 %v2582
        %v2584 = vand.u32 %v2473, 4294901760
        %v2585 = vsub.f32 %v2473, %v2584
        %2586 = vmatmul.f32.gmra.mxu0 %v2585
        %v2587 = vpop.f32.mrf.mxu0
        %v2588 = vadd.f32 %v2554, %v2587
        %v2589 = vand.u32 %v2476, 4294901760
        %v2590 = vsub.f32 %v2476, %v2589
        %2591 = vmatmul.f32.gmra.mxu0 %v2590
        %v2592 = vpop.f32.mrf.mxu0
        %v2593 = vadd.f32 %v2558, %v2592
        %2594 = vdwg.mxu0
        %2595 = vmatpush.msra.mxu0 0.0
        %2596 = vmatpush.msra.mxu0 0.0
        %2597 = vmatpush.msra.mxu0 0.0
        %2598 = vmatpush.msra.mxu0 0.0
        %2599 = vmatpush.msra.mxu0 0.0
        %2600 = vmatpush.msra.mxu0 0.0
        %2601 = vmatpush.msra.mxu0 0.0
        %2602 = vmatpush.msra.mxu0 0.0
        %2603 = vmatpush.msra.mxu0 0.0
        %2604 = vmatpush.msra.mxu0 0.0
        %2605 = vmatpush.msra.mxu0 0.0
        %2606 = vmatpush.msra.mxu0 0.0
        %v2607 = vand.u32 %v2471, 4294901760
        %2608 = vmatpush.msra.mxu0 %v2607
        %v2609 = vand.u32 %v2470, 4294901760
        %2610 = vmatpush.msra.mxu0 %v2609
        %v2611 = vand.u32 %v2469, 4294901760
        %2612 = vmatpush.msra.mxu0 %v2611
        %v2613 = vand.u32 %v2468, 4294901760
        %2614 = vmatpush.msra.mxu0 %v2613
        %v2615 = vand.u32 %v2473, 4294901760
        %v2616 = vsub.f32 %v2473, %v2615
        %v2617 = vand.u32 %v2616, 4294901760
        %2618 = vmatmul.f32.gmra.mxu0 %v2617
        %v2619 = vpop.f32.mrf.mxu0
        %v2620 = vadd.f32 %v2588, %v2619
        %v2621 = vand.u32 %v2476, 4294901760
        %v2622 = vsub.f32 %v2476, %v2621
        %v2623 = vand.u32 %v2622, 4294901760
        %2624 = vmatmul.f32.gmra.mxu0 %v2623
        %v2625 = vpop.f32.mrf.mxu0
        %v2626 = vadd.f32 %v2593, %v2625
        %2627 = vdwg.mxu0
        %2628 = vmatpush.msra.mxu0 0.0
        %2629 = vmatpush.msra.mxu0 0.0
        %2630 = vmatpush.msra.mxu0 0.0
        %2631 = vmatpush.msra.mxu0 0.0
        %2632 = vmatpush.msra.mxu0 0.0
        %2633 = vmatpush.msra.mxu0 0.0
        %2634 = vmatpush.msra.mxu0 0.0
        %2635 = vmatpush.msra.mxu0 0.0
        %2636 = vmatpush.msra.mxu0 0.0
        %2637 = vmatpush.msra.mxu0 0.0
        %2638 = vmatpush.msra.mxu0 0.0
        %2639 = vmatpush.msra.mxu0 0.0
        %v2640 = vand.u32 %v2471, 4294901760
        %v2641 = vsub.f32 %v2471, %v2640
        %v2642 = vand.u32 %v2641, 4294901760
        %2643 = vmatpush.msra.mxu0 %v2642
        %v2644 = vand.u32 %v2470, 4294901760
        %v2645 = vsub.f32 %v2470, %v2644
        %v2646 = vand.u32 %v2645, 4294901760
        %2647 = vmatpush.msra.mxu0 %v2646
        %v2648 = vand.u32 %v2469, 4294901760
        %v2649 = vsub.f32 %v2469, %v2648
        %v2650 = vand.u32 %v2649, 4294901760
        %2651 = vmatpush.msra.mxu0 %v2650
        %v2652 = vand.u32 %v2468, 4294901760
        %v2653 = vsub.f32 %v2468, %v2652
        %v2654 = vand.u32 %v2653, 4294901760
        %2655 = vmatpush.msra.mxu0 %v2654
        %v2656 = vand.u32 %v2473, 4294901760
        %2657 = vmatmul.f32.gmra.mxu0 %v2656
        %v2658 = vpop.f32.mrf.mxu0
        %v2659 = vadd.f32 %v2620, %v2658
        %v2660 = vand.u32 %v2476, 4294901760
        %2661 = vmatmul.f32.gmra.mxu0 %v2660
        %v2662 = vpop.f32.mrf.mxu0
        %v2663 = vadd.f32 %v2626, %v2662
        %2664 = vdwg.mxu0
        %2665 = vmatpush.msra.mxu0 0.0
        %2666 = vmatpush.msra.mxu0 0.0
        %2667 = vmatpush.msra.mxu0 0.0
        %2668 = vmatpush.msra.mxu0 0.0
        %2669 = vmatpush.msra.mxu0 0.0
        %2670 = vmatpush.msra.mxu0 0.0
        %2671 = vmatpush.msra.mxu0 0.0
        %2672 = vmatpush.msra.mxu0 0.0
        %2673 = vmatpush.msra.mxu0 0.0
        %2674 = vmatpush.msra.mxu0 0.0
        %2675 = vmatpush.msra.mxu0 0.0
        %2676 = vmatpush.msra.mxu0 0.0
        %v2677 = vand.u32 %v2471, 4294901760
        %2678 = vmatpush.msra.mxu0 %v2677
        %v2679 = vand.u32 %v2470, 4294901760
        %2680 = vmatpush.msra.mxu0 %v2679
        %v2681 = vand.u32 %v2469, 4294901760
        %2682 = vmatpush.msra.mxu0 %v2681
        %v2683 = vand.u32 %v2468, 4294901760
        %2684 = vmatpush.msra.mxu0 %v2683
        %v2685 = vand.u32 %v2473, 4294901760
        %2686 = vmatmul.f32.gmra.mxu0 %v2685
        %v2687 = vpop.f32.mrf.mxu0
        %v2688 = vadd.f32 %v2659, %v2687
        %v2689 = vand.u32 %v2476, 4294901760
        %2690 = vmatmul.f32.gmra.mxu0 %v2689
        %v2691 = vpop.f32.mrf.mxu0
        %v2692 = vadd.f32 %v2663, %v2691
        %2693 = vdwg.mxu0
        %2694 = vrot.lane.b32.xlu0 %v2466, 96
        %v2695 = vpop.permute.xlu0 %2694
        %2696 = vrot.lane.b32.xlu0 %v2467, 96
        %v2697 = vpop.permute.xlu0 %2696
        %v2698 = vsel %vm949, %v2695, 0
        %v2700 = vsel %vm949, %v2697, 0
        %2702 = vmatpush.msra.mxu0 0.0
        %2703 = vmatpush.msra.mxu0 0.0
        %2704 = vmatpush.msra.mxu0 0.0
        %2705 = vmatpush.msra.mxu0 0.0
        %2706 = vmatpush.msra.mxu0 0.0
        %2707 = vmatpush.msra.mxu0 0.0
        %2708 = vmatpush.msra.mxu0 0.0
        %2709 = vmatpush.msra.mxu0 0.0
        %2710 = vmatpush.msra.mxu0 0.0
        %2711 = vmatpush.msra.mxu0 0.0
        %2712 = vmatpush.msra.mxu0 0.0
        %2713 = vmatpush.msra.mxu0 0.0
        %v2714 = vand.u32 %v2471, 4294901760
        %2715 = vmatpush.msra.mxu0 %v2714
        %v2716 = vand.u32 %v2470, 4294901760
        %2717 = vmatpush.msra.mxu0 %v2716
        %v2718 = vand.u32 %v2469, 4294901760
        %2719 = vmatpush.msra.mxu0 %v2718
        %v2720 = vand.u32 %v2468, 4294901760
        %2721 = vmatpush.msra.mxu0 %v2720
        %v2722 = vand.u32 %v2698, 4294901760
        %v2723 = vsub.f32 %v2698, %v2722
        %v2724 = vand.u32 %v2723, 4294901760
        %v2725 = vsub.f32 %v2723, %v2724
        %v2726 = vand.u32 %v2725, 4294901760
        %2727 = vmatmul.f32.gmra.mxu0 %v2726
        %v2728 = vpop.f32.mrf.mxu0
        %v2729 = vadd.f32 0.0, %v2728
        %v2730 = vand.u32 %v2700, 4294901760
        %v2731 = vsub.f32 %v2700, %v2730
        %v2732 = vand.u32 %v2731, 4294901760
        %v2733 = vsub.f32 %v2731, %v2732
        %v2734 = vand.u32 %v2733, 4294901760
        %2735 = vmatmul.f32.gmra.mxu0 %v2734
        %v2736 = vpop.f32.mrf.mxu0
        %v2737 = vadd.f32 0.0, %v2736
        %2738 = vdwg.mxu0
        %2739 = vmatpush.msra.mxu0 0.0
        %2740 = vmatpush.msra.mxu0 0.0
        %2741 = vmatpush.msra.mxu0 0.0
        %2742 = vmatpush.msra.mxu0 0.0
        %2743 = vmatpush.msra.mxu0 0.0
        %2744 = vmatpush.msra.mxu0 0.0
        %2745 = vmatpush.msra.mxu0 0.0
        %2746 = vmatpush.msra.mxu0 0.0
        %2747 = vmatpush.msra.mxu0 0.0
        %2748 = vmatpush.msra.mxu0 0.0
        %2749 = vmatpush.msra.mxu0 0.0
        %2750 = vmatpush.msra.mxu0 0.0
        %v2751 = vand.u32 %v2471, 4294901760
        %v2752 = vsub.f32 %v2471, %v2751
        %v2753 = vand.u32 %v2752, 4294901760
        %v2754 = vsub.f32 %v2752, %v2753
        %v2755 = vand.u32 %v2754, 4294901760
        %2756 = vmatpush.msra.mxu0 %v2755
        %v2757 = vand.u32 %v2470, 4294901760
        %v2758 = vsub.f32 %v2470, %v2757
        %v2759 = vand.u32 %v2758, 4294901760
        %v2760 = vsub.f32 %v2758, %v2759
        %v2761 = vand.u32 %v2760, 4294901760
        %2762 = vmatpush.msra.mxu0 %v2761
        %v2763 = vand.u32 %v2469, 4294901760
        %v2764 = vsub.f32 %v2469, %v2763
        %v2765 = vand.u32 %v2764, 4294901760
        %v2766 = vsub.f32 %v2764, %v2765
        %v2767 = vand.u32 %v2766, 4294901760
        %2768 = vmatpush.msra.mxu0 %v2767
        %v2769 = vand.u32 %v2468, 4294901760
        %v2770 = vsub.f32 %v2468, %v2769
        %v2771 = vand.u32 %v2770, 4294901760
        %v2772 = vsub.f32 %v2770, %v2771
        %v2773 = vand.u32 %v2772, 4294901760
        %2774 = vmatpush.msra.mxu0 %v2773
        %v2775 = vand.u32 %v2698, 4294901760
        %2776 = vmatmul.f32.gmra.mxu0 %v2775
        %v2777 = vpop.f32.mrf.mxu0
        %v2778 = vadd.f32 %v2729, %v2777
        %v2779 = vand.u32 %v2700, 4294901760
        %2780 = vmatmul.f32.gmra.mxu0 %v2779
        %v2781 = vpop.f32.mrf.mxu0
        %v2782 = vadd.f32 %v2737, %v2781
        %2783 = vdwg.mxu0
        %2784 = vmatpush.msra.mxu0 0.0
        %2785 = vmatpush.msra.mxu0 0.0
        %2786 = vmatpush.msra.mxu0 0.0
        %2787 = vmatpush.msra.mxu0 0.0
        %2788 = vmatpush.msra.mxu0 0.0
        %2789 = vmatpush.msra.mxu0 0.0
        %2790 = vmatpush.msra.mxu0 0.0
        %2791 = vmatpush.msra.mxu0 0.0
        %2792 = vmatpush.msra.mxu0 0.0
        %2793 = vmatpush.msra.mxu0 0.0
        %2794 = vmatpush.msra.mxu0 0.0
        %2795 = vmatpush.msra.mxu0 0.0
        %v2796 = vand.u32 %v2471, 4294901760
        %v2797 = vsub.f32 %v2471, %v2796
        %2798 = vmatpush.msra.mxu0 %v2797
        %v2799 = vand.u32 %v2470, 4294901760
        %v2800 = vsub.f32 %v2470, %v2799
        %2801 = vmatpush.msra.mxu0 %v2800
        %v2802 = vand.u32 %v2469, 4294901760
        %v2803 = vsub.f32 %v2469, %v2802
        %2804 = vmatpush.msra.mxu0 %v2803
        %v2805 = vand.u32 %v2468, 4294901760
        %v2806 = vsub.f32 %v2468, %v2805
        %2807 = vmatpush.msra.mxu0 %v2806
        %v2808 = vand.u32 %v2698, 4294901760
        %v2809 = vsub.f32 %v2698, %v2808
        %2810 = vmatmul.f32.gmra.mxu0 %v2809
        %v2811 = vpop.f32.mrf.mxu0
        %v2812 = vadd.f32 %v2778, %v2811
        %v2813 = vand.u32 %v2700, 4294901760
        %v2814 = vsub.f32 %v2700, %v2813
        %2815 = vmatmul.f32.gmra.mxu0 %v2814
        %v2816 = vpop.f32.mrf.mxu0
        %v2817 = vadd.f32 %v2782, %v2816
        %2818 = vdwg.mxu0
        %2819 = vmatpush.msra.mxu0 0.0
        %2820 = vmatpush.msra.mxu0 0.0
        %2821 = vmatpush.msra.mxu0 0.0
        %2822 = vmatpush.msra.mxu0 0.0
        %2823 = vmatpush.msra.mxu0 0.0
        %2824 = vmatpush.msra.mxu0 0.0
        %2825 = vmatpush.msra.mxu0 0.0
        %2826 = vmatpush.msra.mxu0 0.0
        %2827 = vmatpush.msra.mxu0 0.0
        %2828 = vmatpush.msra.mxu0 0.0
        %2829 = vmatpush.msra.mxu0 0.0
        %2830 = vmatpush.msra.mxu0 0.0
        %v2831 = vand.u32 %v2471, 4294901760
        %2832 = vmatpush.msra.mxu0 %v2831
        %v2833 = vand.u32 %v2470, 4294901760
        %2834 = vmatpush.msra.mxu0 %v2833
        %v2835 = vand.u32 %v2469, 4294901760
        %2836 = vmatpush.msra.mxu0 %v2835
        %v2837 = vand.u32 %v2468, 4294901760
        %2838 = vmatpush.msra.mxu0 %v2837
        %v2839 = vand.u32 %v2698, 4294901760
        %v2840 = vsub.f32 %v2698, %v2839
        %v2841 = vand.u32 %v2840, 4294901760
        %2842 = vmatmul.f32.gmra.mxu0 %v2841
        %v2843 = vpop.f32.mrf.mxu0
        %v2844 = vadd.f32 %v2812, %v2843
        %v2845 = vand.u32 %v2700, 4294901760
        %v2846 = vsub.f32 %v2700, %v2845
        %v2847 = vand.u32 %v2846, 4294901760
        %2848 = vmatmul.f32.gmra.mxu0 %v2847
        %v2849 = vpop.f32.mrf.mxu0
        %v2850 = vadd.f32 %v2817, %v2849
        %2851 = vdwg.mxu0
        %2852 = vmatpush.msra.mxu0 0.0
        %2853 = vmatpush.msra.mxu0 0.0
        %2854 = vmatpush.msra.mxu0 0.0
        %2855 = vmatpush.msra.mxu0 0.0
        %2856 = vmatpush.msra.mxu0 0.0
        %2857 = vmatpush.msra.mxu0 0.0
        %2858 = vmatpush.msra.mxu0 0.0
        %2859 = vmatpush.msra.mxu0 0.0
        %2860 = vmatpush.msra.mxu0 0.0
        %2861 = vmatpush.msra.mxu0 0.0
        %2862 = vmatpush.msra.mxu0 0.0
        %2863 = vmatpush.msra.mxu0 0.0
        %v2864 = vand.u32 %v2471, 4294901760
        %v2865 = vsub.f32 %v2471, %v2864
        %v2866 = vand.u32 %v2865, 4294901760
        %2867 = vmatpush.msra.mxu0 %v2866
        %v2868 = vand.u32 %v2470, 4294901760
        %v2869 = vsub.f32 %v2470, %v2868
        %v2870 = vand.u32 %v2869, 4294901760
        %2871 = vmatpush.msra.mxu0 %v2870
        %v2872 = vand.u32 %v2469, 4294901760
        %v2873 = vsub.f32 %v2469, %v2872
        %v2874 = vand.u32 %v2873, 4294901760
        %2875 = vmatpush.msra.mxu0 %v2874
        %v2876 = vand.u32 %v2468, 4294901760
        %v2877 = vsub.f32 %v2468, %v2876
        %v2878 = vand.u32 %v2877, 4294901760
        %2879 = vmatpush.msra.mxu0 %v2878
        %v2880 = vand.u32 %v2698, 4294901760
        %2881 = vmatmul.f32.gmra.mxu0 %v2880
        %v2882 = vpop.f32.mrf.mxu0
        %v2883 = vadd.f32 %v2844, %v2882
        %v2884 = vand.u32 %v2700, 4294901760
        %2885 = vmatmul.f32.gmra.mxu0 %v2884
        %v2886 = vpop.f32.mrf.mxu0
        %v2887 = vadd.f32 %v2850, %v2886
        %2888 = vdwg.mxu0
        %2889 = vmatpush.msra.mxu0 0.0
        %2890 = vmatpush.msra.mxu0 0.0
        %2891 = vmatpush.msra.mxu0 0.0
        %2892 = vmatpush.msra.mxu0 0.0
        %2893 = vmatpush.msra.mxu0 0.0
        %2894 = vmatpush.msra.mxu0 0.0
        %2895 = vmatpush.msra.mxu0 0.0
        %2896 = vmatpush.msra.mxu0 0.0
        %2897 = vmatpush.msra.mxu0 0.0
        %2898 = vmatpush.msra.mxu0 0.0
        %2899 = vmatpush.msra.mxu0 0.0
        %2900 = vmatpush.msra.mxu0 0.0
        %v2901 = vand.u32 %v2471, 4294901760
        %2902 = vmatpush.msra.mxu0 %v2901
        %v2903 = vand.u32 %v2470, 4294901760
        %2904 = vmatpush.msra.mxu0 %v2903
        %v2905 = vand.u32 %v2469, 4294901760
        %2906 = vmatpush.msra.mxu0 %v2905
        %v2907 = vand.u32 %v2468, 4294901760
        %2908 = vmatpush.msra.mxu0 %v2907
        %v2909 = vand.u32 %v2698, 4294901760
        %2910 = vmatmul.f32.gmra.mxu0 %v2909
        %v2911 = vpop.f32.mrf.mxu0
        %v2912 = vadd.f32 %v2883, %v2911
        %v2913 = vand.u32 %v2700, 4294901760
        %2914 = vmatmul.f32.gmra.mxu0 %v2913
        %v2915 = vpop.f32.mrf.mxu0
        %v2916 = vadd.f32 %v2887, %v2915
        %2917 = vdwg.mxu0
        %2920 = vrot.lane.b32.xlu0 %v2912, 16
        %v2921 = vpop.permute.xlu0 %2920
        %2922 = vrot.lane.b32.xlu0 %v2916, 16
        %v2923 = vpop.permute.xlu0 %2922
        %v2926 = vsel %vm1498, %v2688, %v2921
        %v2927 = vsel %vm1498, %v2692, %v2923
        %v2928 = vld [vmem:[%s12] sm:$0x1]
        %v2930 = vperm.slane %v2928, 0
        %2932 = vmatpush.msra.mxu0 0.0
        %2933 = vmatpush.msra.mxu0 0.0
        %2934 = vmatpush.msra.mxu0 0.0
        %2935 = vmatpush.msra.mxu0 0.0
        %2936 = vmatpush.msra.mxu0 0.0
        %2937 = vmatpush.msra.mxu0 0.0
        %2938 = vmatpush.msra.mxu0 0.0
        %2939 = vmatpush.msra.mxu0 0.0
        %2940 = vmatpush.msra.mxu0 0.0
        %2941 = vmatpush.msra.mxu0 0.0
        %2942 = vmatpush.msra.mxu0 0.0
        %2943 = vmatpush.msra.mxu0 0.0
        %2944 = vmatpush.msra.mxu0 0.0
        %2945 = vmatpush.msra.mxu0 0.0
        %v2946 = vand.u32 %v2927, 4294901760
        %2947 = vmatpush.msra.mxu0 %v2946
        %v2948 = vand.u32 %v2926, 4294901760
        %2949 = vmatpush.msra.mxu0 %v2948
        %v2950 = vand.u32 %v2267, 4294901760
        %v2951 = vsub.f32 %v2267, %v2950
        %v2952 = vand.u32 %v2951, 4294901760
        %v2953 = vsub.f32 %v2951, %v2952
        %v2954 = vand.u32 %v2953, 4294901760
        %2955 = vmatmul.f32.gmra.mxu0 %v2954
        %v2956 = vpop.f32.mrf.mxu0
        %v2957 = vadd.f32 %v2930, %v2956
        %v2958 = vand.u32 %v2270, 4294901760
        %v2959 = vsub.f32 %v2270, %v2958
        %v2960 = vand.u32 %v2959, 4294901760
        %v2961 = vsub.f32 %v2959, %v2960
        %v2962 = vand.u32 %v2961, 4294901760
        %2963 = vmatmul.f32.gmra.mxu0 %v2962
        %v2964 = vpop.f32.mrf.mxu0
        %v2965 = vadd.f32 %v2930, %v2964
        %2966 = vdwg.mxu0
        %2967 = vmatpush.msra.mxu0 0.0
        %2968 = vmatpush.msra.mxu0 0.0
        %2969 = vmatpush.msra.mxu0 0.0
        %2970 = vmatpush.msra.mxu0 0.0
        %2971 = vmatpush.msra.mxu0 0.0
        %2972 = vmatpush.msra.mxu0 0.0
        %2973 = vmatpush.msra.mxu0 0.0
        %2974 = vmatpush.msra.mxu0 0.0
        %2975 = vmatpush.msra.mxu0 0.0
        %2976 = vmatpush.msra.mxu0 0.0
        %2977 = vmatpush.msra.mxu0 0.0
        %2978 = vmatpush.msra.mxu0 0.0
        %2979 = vmatpush.msra.mxu0 0.0
        %2980 = vmatpush.msra.mxu0 0.0
        %v2981 = vand.u32 %v2927, 4294901760
        %v2982 = vsub.f32 %v2927, %v2981
        %v2983 = vand.u32 %v2982, 4294901760
        %v2984 = vsub.f32 %v2982, %v2983
        %v2985 = vand.u32 %v2984, 4294901760
        %2986 = vmatpush.msra.mxu0 %v2985
        %v2987 = vand.u32 %v2926, 4294901760
        %v2988 = vsub.f32 %v2926, %v2987
        %v2989 = vand.u32 %v2988, 4294901760
        %v2990 = vsub.f32 %v2988, %v2989
        %v2991 = vand.u32 %v2990, 4294901760
        %2992 = vmatpush.msra.mxu0 %v2991
        %v2993 = vand.u32 %v2267, 4294901760
        %2994 = vmatmul.f32.gmra.mxu0 %v2993
        %v2995 = vpop.f32.mrf.mxu0
        %v2996 = vadd.f32 %v2957, %v2995
        %v2997 = vand.u32 %v2270, 4294901760
        %2998 = vmatmul.f32.gmra.mxu0 %v2997
        %v2999 = vpop.f32.mrf.mxu0
        %v3000 = vadd.f32 %v2965, %v2999
        %3001 = vdwg.mxu0
        %3002 = vmatpush.msra.mxu0 0.0
        %3003 = vmatpush.msra.mxu0 0.0
        %3004 = vmatpush.msra.mxu0 0.0
        %3005 = vmatpush.msra.mxu0 0.0
        %3006 = vmatpush.msra.mxu0 0.0
        %3007 = vmatpush.msra.mxu0 0.0
        %3008 = vmatpush.msra.mxu0 0.0
        %3009 = vmatpush.msra.mxu0 0.0
        %3010 = vmatpush.msra.mxu0 0.0
        %3011 = vmatpush.msra.mxu0 0.0
        %3012 = vmatpush.msra.mxu0 0.0
        %3013 = vmatpush.msra.mxu0 0.0
        %3014 = vmatpush.msra.mxu0 0.0
        %3015 = vmatpush.msra.mxu0 0.0
        %v3016 = vand.u32 %v2927, 4294901760
        %v3017 = vsub.f32 %v2927, %v3016
        %3018 = vmatpush.msra.mxu0 %v3017
        %v3019 = vand.u32 %v2926, 4294901760
        %v3020 = vsub.f32 %v2926, %v3019
        %3021 = vmatpush.msra.mxu0 %v3020
        %v3022 = vand.u32 %v2267, 4294901760
        %v3023 = vsub.f32 %v2267, %v3022
        %3024 = vmatmul.f32.gmra.mxu0 %v3023
        %v3025 = vpop.f32.mrf.mxu0
        %v3026 = vadd.f32 %v2996, %v3025
        %v3027 = vand.u32 %v2270, 4294901760
        %v3028 = vsub.f32 %v2270, %v3027
        %3029 = vmatmul.f32.gmra.mxu0 %v3028
        %v3030 = vpop.f32.mrf.mxu0
        %v3031 = vadd.f32 %v3000, %v3030
        %3032 = vdwg.mxu0
        %3033 = vmatpush.msra.mxu0 0.0
        %3034 = vmatpush.msra.mxu0 0.0
        %3035 = vmatpush.msra.mxu0 0.0
        %3036 = vmatpush.msra.mxu0 0.0
        %3037 = vmatpush.msra.mxu0 0.0
        %3038 = vmatpush.msra.mxu0 0.0
        %3039 = vmatpush.msra.mxu0 0.0
        %3040 = vmatpush.msra.mxu0 0.0
        %3041 = vmatpush.msra.mxu0 0.0
        %3042 = vmatpush.msra.mxu0 0.0
        %3043 = vmatpush.msra.mxu0 0.0
        %3044 = vmatpush.msra.mxu0 0.0
        %3045 = vmatpush.msra.mxu0 0.0
        %3046 = vmatpush.msra.mxu0 0.0
        %v3047 = vand.u32 %v2927, 4294901760
        %3048 = vmatpush.msra.mxu0 %v3047
        %v3049 = vand.u32 %v2926, 4294901760
        %3050 = vmatpush.msra.mxu0 %v3049
        %v3051 = vand.u32 %v2267, 4294901760
        %v3052 = vsub.f32 %v2267, %v3051
        %v3053 = vand.u32 %v3052, 4294901760
        %3054 = vmatmul.f32.gmra.mxu0 %v3053
        %v3055 = vpop.f32.mrf.mxu0
        %v3056 = vadd.f32 %v3026, %v3055
        %v3057 = vand.u32 %v2270, 4294901760
        %v3058 = vsub.f32 %v2270, %v3057
        %v3059 = vand.u32 %v3058, 4294901760
        %3060 = vmatmul.f32.gmra.mxu0 %v3059
        %v3061 = vpop.f32.mrf.mxu0
        %v3062 = vadd.f32 %v3031, %v3061
        %3063 = vdwg.mxu0
        %3064 = vmatpush.msra.mxu0 0.0
        %3065 = vmatpush.msra.mxu0 0.0
        %3066 = vmatpush.msra.mxu0 0.0
        %3067 = vmatpush.msra.mxu0 0.0
        %3068 = vmatpush.msra.mxu0 0.0
        %3069 = vmatpush.msra.mxu0 0.0
        %3070 = vmatpush.msra.mxu0 0.0
        %3071 = vmatpush.msra.mxu0 0.0
        %3072 = vmatpush.msra.mxu0 0.0
        %3073 = vmatpush.msra.mxu0 0.0
        %3074 = vmatpush.msra.mxu0 0.0
        %3075 = vmatpush.msra.mxu0 0.0
        %3076 = vmatpush.msra.mxu0 0.0
        %3077 = vmatpush.msra.mxu0 0.0
        %v3078 = vand.u32 %v2927, 4294901760
        %v3079 = vsub.f32 %v2927, %v3078
        %v3080 = vand.u32 %v3079, 4294901760
        %3081 = vmatpush.msra.mxu0 %v3080
        %v3082 = vand.u32 %v2926, 4294901760
        %v3083 = vsub.f32 %v2926, %v3082
        %v3084 = vand.u32 %v3083, 4294901760
        %3085 = vmatpush.msra.mxu0 %v3084
        %v3086 = vand.u32 %v2267, 4294901760
        %3087 = vmatmul.f32.gmra.mxu0 %v3086
        %v3088 = vpop.f32.mrf.mxu0
        %v3089 = vadd.f32 %v3056, %v3088
        %v3090 = vand.u32 %v2270, 4294901760
        %3091 = vmatmul.f32.gmra.mxu0 %v3090
        %v3092 = vpop.f32.mrf.mxu0
        %v3093 = vadd.f32 %v3062, %v3092
        %3094 = vdwg.mxu0
        %3095 = vmatpush.msra.mxu0 0.0
        %3096 = vmatpush.msra.mxu0 0.0
        %3097 = vmatpush.msra.mxu0 0.0
        %3098 = vmatpush.msra.mxu0 0.0
        %3099 = vmatpush.msra.mxu0 0.0
        %3100 = vmatpush.msra.mxu0 0.0
        %3101 = vmatpush.msra.mxu0 0.0
        %3102 = vmatpush.msra.mxu0 0.0
        %3103 = vmatpush.msra.mxu0 0.0
        %3104 = vmatpush.msra.mxu0 0.0
        %3105 = vmatpush.msra.mxu0 0.0
        %3106 = vmatpush.msra.mxu0 0.0
        %3107 = vmatpush.msra.mxu0 0.0
        %3108 = vmatpush.msra.mxu0 0.0
        %v3109 = vand.u32 %v2927, 4294901760
        %3110 = vmatpush.msra.mxu0 %v3109
        %v3111 = vand.u32 %v2926, 4294901760
        %3112 = vmatpush.msra.mxu0 %v3111
        %v3113 = vand.u32 %v2267, 4294901760
        %3114 = vmatmul.f32.gmra.mxu0 %v3113
        %v3115 = vpop.f32.mrf.mxu0
        %v3116 = vadd.f32 %v3089, %v3115
        %v3117 = vand.u32 %v2270, 4294901760
        %3118 = vmatmul.f32.gmra.mxu0 %v3117
        %v3119 = vpop.f32.mrf.mxu0
        %v3120 = vadd.f32 %v3093, %v3119
        %3121 = vdwg.mxu0
        %v3122 = vmul.f32 %v1684, 0.01
        %v3123 = vmul.f32 %v1688, 0.01
        %v3124 = vmul.f32 %v3116, 0.99
        %v3125 = vmul.f32 %v3120, 0.99
        %v3126 = vadd.f32 %v3122, %v3124
        %v3127 = vadd.f32 %v3123, %v3125
        %3128 = vst.msk [vmem:[%s444] sm:$0xff] %vm949, %v3126
        %3129 = vst.msk [vmem:[%s444 + $0x8] sm:$0xff] %vm949, %v3127
        %s3130 = sand.u32 %s318, 1
        %s3131 = scalar_lea.sflag [#allocation3], %s3130
        %s3132 = sand.u32 %s318, 1
        %s3133 = smul.addr %s3132, 16
        %s3134 = scalar_lea.vmem [#allocation2], %s3133
        // Predicated region
        $region73: #{tpu_custom_call.1} parent=71 // pred_check
          %p3135 = pneg %p328
        $region74: #{tpu_custom_call.1} parent=71 // pred_check_branch
          %3137 = sbr.rel (%p3135) target = $region76
        $region75: #{tpu_custom_call.1} parent=71 // pred_region
          %3139 = vsyncadd %s3131, 0
          %s3140 = smul.addr %s27, 2
          %s3141 = smul.addr %s3140, 8
          %s3142 = scalar_lea.hbm %s13, %s3141
          %s3143 = sshll.u32 %s3134, 4
          %s3144 = int_to_ptr.vmem [resolvable:$true] %s3143
          %s3145 = sshll.u32 %s3142, 4
          %s3146 = int_to_ptr.hbm [resolvable:$true] %s3145
          %3151 = dma.vmem_to_hbm [thread:$0]  %s3144, 256, %s3146, %s3131, 128, 128, 8
        $region76: #{tpu_custom_call.1} parent=71 // pred_fallthru
          _
      $region72: #{tpu_custom_call.1} parent=5 // pred_fallthru
        _
      %p3152 = scmp.le.s32.totalorder 2, %s22
      // Predicated region
      $region77: #{tpu_custom_call.1} parent=5 // pred_check
        %p3153 = pneg %p3152
      $region78: #{tpu_custom_call.1} parent=5 // pred_check_branch
        %3155 = sbr.rel (%p3153) target = $region80
      $region79: #{tpu_custom_call.1} parent=5 // pred_region
        %s3156 = ssub.s32 %s22, 2
        // Predicated region
        $region81: #{tpu_custom_call.1} parent=79 // pred_check
          %p3157 = pneg %p334
        $region82: #{tpu_custom_call.1} parent=79 // pred_check_branch
          %3159 = sbr.rel (%p3157) target = $region84
        $region83: #{tpu_custom_call.1} parent=79 // pred_region
          %s3160 = sand.u32 %s319, 1
          %s3161 = scalar_lea.sflag [#allocation3], %s3160
          %s3162 = sand.u32 %s319, 1
          %s3163 = smul.addr %s3162, 16
          %s3164 = scalar_lea.vmem [#allocation2], %s3163
          %3166 = dma.done %s3161, 256
        $region84: #{tpu_custom_call.1} parent=79 // pred_fallthru
          _
      $region80: #{tpu_custom_call.1} parent=5 // pred_fallthru
        _
    $region6: #{tpu_custom_call.1} parent=1 // loop_footer
      %s26 = sadd.s32 1, %s22
    $region7: #{tpu_custom_call.1} parent=1 // loop_footer_branch
      %21 = sbr.rel target = $region3
    $region8: #{tpu_custom_call.1} parent=1 // loop_exit
      _
    %3167 = vsyncpa [#allocation3], 1
    %s3168 = scalar_lea.sflag [#allocation3], 1
    %3169 = vsyncpa %s3168, 1

</llo_original>
